<compile_context>
chip_gen: v6e
topology: v6e:2x2x1
jax: 0.10.0
libtpu: 0.0.40
codegen_flags: <defaults>
</compile_context>

<pallas_src>
import jax
import jax.numpy as jnp
from jax import lax
from jax.experimental import pallas as pl
from jax.experimental.pallas import tpu as pltpu


# ----------------------------- Pallas kernels ------------------------------

def conv_mm_kernel(p_ref, w_ref, b_ref, o_ref):
    # p_ref: (1, TP, Kc)    im2col patch tile (Kc = 9*Cin padded), bf16
    # w_ref: (Kc, Cout)     conv weight, bf16
    # b_ref: (1, Cout)      conv bias, f32
    # o_ref: (1, TP, Cout)  activation tile, bf16 (HWC-flatten order)
    acc = jnp.dot(p_ref[0], w_ref[...], preferred_element_type=jnp.float32)
    o_ref[0] = jnp.maximum(acc + b_ref[...], 0.0).astype(o_ref.dtype)


def linear_kernel(x_ref, w_ref, b_ref, o_ref, acc_ref):
    # x_ref: (N, tk)   bf16 activation slab
    # w_ref: (Out, tk) bf16 weight slab (lane-dense, contraction on lanes)
    # b_ref: (1, Out)  f32
    # o_ref: (N, Out)  f32
    # acc_ref: (N, Out) f32 VMEM scratch, resident across the K reduction.
    k = pl.program_id(0)

    @pl.when(k == 0)
    def _():
        acc_ref[...] = jnp.zeros_like(acc_ref)

    acc_ref[...] += lax.dot_general(
        x_ref[...], w_ref[...],
        dimension_numbers=(((1,), (1,)), ((), ())),   # contract last dims (B.T)
        preferred_element_type=jnp.float32)

    @pl.when(k == pl.num_programs(0) - 1)
    def _():
        o_ref[...] = acc_ref[...] + b_ref[...]


# ----------------------------- tiling helpers ------------------------------

def _pick_tile_rows(P, target=2048):
    """Largest multiple-of-16 divisor of P that is <= target, else P (full)."""
    if P <= target:
        return P
    tp = (target // 16) * 16
    while tp >= 16:
        if P % tp == 0:
            return tp
        tp -= 16
    return P


def _pick_tk(F, target=64 * 1024):
    """Largest multiple-of-128 divisor of F that is <= target, else F (full)."""
    if F <= target:
        return F
    tk = (target // 128) * 128
    while tk >= 128:
        if F % tk == 0:
            return tk
        tk -= 128
    return F


# ------------------------------ host wrappers -------------------------------

def conv3x3_relu(patches, w_c, b_c):
    """patches: (N, H*W, Kc) bf16 -> (N, H*W, Cout) bf16 activations."""
    N, P, Kc = patches.shape
    Cout = w_c.shape[1]
    TP = _pick_tile_rows(P)
    return pl.pallas_call(
        conv_mm_kernel,
        out_shape=jax.ShapeDtypeStruct((N, P, Cout), jnp.bfloat16),
        grid=(N, P // TP),
        in_specs=[
            pl.BlockSpec((1, TP, Kc), lambda n, r: (n, r, 0)),
            pl.BlockSpec((Kc, Cout), lambda n, r: (0, 0)),
            pl.BlockSpec((1, Cout), lambda n, r: (0, 0)),
        ],
        out_specs=pl.BlockSpec((1, TP, Cout), lambda n, r: (n, r, 0)),
        compiler_params=pltpu.CompilerParams(
            dimension_semantics=("parallel", "parallel")),
    )(patches, w_c, b_c)


def linear(x, w_of, b):
    """x: (N, F) bf16; w_of: (Out, F) bf16; b: (1, Out) f32 -> (N, Out) f32."""
    N, F = x.shape
    Out = w_of.shape[0]
    tk = _pick_tk(F)
    nk = F // tk

    w_spec = pl.BlockSpec((Out, tk), lambda k: (0, k))
    if nk >= 3:
        try:  # deeper pipelining on the HBM-bound weight stream
            w_spec = pl.BlockSpec((Out, tk), lambda k: (0, k),
                                  pipeline_mode=pl.Buffered(3))
        except (TypeError, AttributeError):
            pass

    return pl.pallas_call(
        linear_kernel,
        out_shape=jax.ShapeDtypeStruct((N, Out), jnp.float32),
        grid=(nk,),
        in_specs=[
            pl.BlockSpec((N, tk), lambda k: (0, k)),
            w_spec,
            pl.BlockSpec((1, Out), lambda k: (0, 0)),
        ],
        out_specs=pl.BlockSpec((N, Out), lambda k: (0, 0)),
        scratch_shapes=[pltpu.VMEM((N, Out), jnp.float32)],
        compiler_params=pltpu.CompilerParams(
            dimension_semantics=("arbitrary",)),
    )(x, w_of, b)


def prepare_params(torch_params, H, W):
    """One-time parameter repack (hoisted out of the forward path)."""
    w_conv, b_conv, w_lin, b_lin = torch_params
    Cout, Cin = w_conv.shape[0], w_conv.shape[1]
    K = 9 * Cin
    Kc = ((K + 15) // 16) * 16                      # 27 -> 32
    # OIHW -> (kh, kw, Cin, Cout) -> (9*Cin, Cout), zero-pad K, bf16.
    w_c = jnp.transpose(w_conv, (2, 3, 1, 0)).reshape(K, Cout)
    w_c = jnp.pad(w_c, ((0, Kc - K), (0, 0))).astype(jnp.bfloat16)
    Out = w_lin.shape[0]
    # torch CHW-flatten order -> HWC-flatten order, kept as (Out, F) so the
    # streamed weight blocks have the contraction dim on lanes (lane-dense).
    w_l = (w_lin.reshape(Out, Cout, H, W).transpose(0, 2, 3, 1)
                .reshape(Out, H * W * Cout).astype(jnp.bfloat16))
    return (w_c, b_conv.astype(jnp.float32).reshape(1, Cout),
            w_l, b_lin.astype(jnp.float32).reshape(1, Out))


def _im2col_3x3(x_nchw, Kc):
    """(N,Cin,H,W) -> (N, H*W, Kc) bf16; column index = (kh*3+kw)*Cin + ci."""
    N, Cin, H, W = x_nchw.shape
    xp = jnp.pad(x_nchw, ((0, 0), (0, 0), (1, 1), (1, 1)))
    cols = [xp[:, :, kh:kh + H, kw:kw + W] for kh in range(3) for kw in range(3)]
    p = jnp.stack(cols, axis=1)                                 # (N, 9, Cin, H, W)
    p = p.transpose(0, 3, 4, 1, 2).reshape(N, H * W, 9 * Cin)   # (N, H*W, 9*Cin)
    p = jnp.pad(p, ((0, 0), (0, 0), (0, Kc - 9 * Cin)))
    return p.astype(jnp.bfloat16)


def unet_forward(x_nchw, prepared):
    """Pallas implementation of UNet.forward (NCHW input, like PyTorch)."""
    w_c, b_c, w_l, b_l = prepared
    N, Cin, H, W = x_nchw.shape
    Kc, Cout = w_c.shape
    patches = _im2col_3x3(x_nchw, Kc)          # (N, H*W, 32) bf16
    y = conv3x3_relu(patches, w_c, b_c)        # (N, H*W, Cout) bf16
    y_flat = y.reshape(N, H * W * Cout)        # HWC order == Flatten(NCHW conv)
    return linear(y_flat, w_l, b_l)            # (N, Out) f32


# ------------------------------- reference ---------------------------------

def reference_forward(x_nchw, torch_params):
    w_conv, b_conv, w_lin, b_lin = torch_params
    y = lax.conv_general_dilated(
        x_nchw, w_conv, window_strides=(1, 1), padding="SAME",
        dimension_numbers=("NCHW", "OIHW", "NCHW"))
    y = jnp.maximum(y + b_conv[None, :, None, None], 0.0)
    return y.reshape(x_nchw.shape[0], -1) @ w_lin.T + b_lin


# --------------------------------- main -------------------------------------

if __name__ == "__main__":
    N, Cin, H, W = 2, 3, 16, 16
    Cmid, Out = 64, 7

    key = jax.random.PRNGKey(0)
    k0, k1, k2, k3, k4 = jax.random.split(key, 5)

    x = jax.random.normal(k0, (N, Cin, H, W), jnp.float32)
    w_conv = jax.random.normal(k1, (Cmid, Cin, 3, 3), jnp.float32) * 0.1
    b_conv = jax.random.normal(k2, (Cmid,), jnp.float32) * 0.1
    w_lin = jax.random.normal(k3, (Out, Cmid * H * W), jnp.float32) * 0.01
    b_lin = jax.random.normal(k4, (Out,), jnp.float32) * 0.1
    torch_params = (w_conv, b_conv, w_lin, b_lin)

    prepared = prepare_params(torch_params, H, W)   # one-time, outside forward
    fwd = jax.jit(unet_forward)

    out = jax.block_until_ready(fwd(x, prepared))
    ref = jax.block_until_ready(reference_forward(x, torch_params))

    assert out.shape == (N, Out), out.shape
    # bf16 weights/activations with f32 accumulation -> compare against the
    # pure-f32 reference with a bf16-appropriate tolerance.
    max_err = float(jnp.max(jnp.abs(out - ref)))
    assert jnp.allclose(out, ref, rtol=5e-2, atol=5e-2), f"max abs diff {max_err}"
    print("KERNEL_OK")
</pallas_src>

<mosaic_0001>
module attributes {stable_mosaic.version = 11 : i64} {
  func.func @conv_mm_kernel(%arg0: i32, %arg1: i32, %arg2: memref<1x256x32xbf16, #tpu.memory_space<vmem>>, %arg3: memref<32x64xbf16, #tpu.memory_space<vmem>>, %arg4: memref<1x64xf32, #tpu.memory_space<vmem>>, %arg5: memref<1x256x64xbf16, #tpu.memory_space<vmem>>) attributes {dimension_semantics = [#tpu.dimension_semantics<parallel>, #tpu.dimension_semantics<parallel>], iteration_bounds = array<i64: 2, 1>, scalar_prefetch = 0 : i64, scratch_operands = 0 : i64, tpu.core_type = #tpu.core_type<tc>, window_params = [{transform_indices = @transform_0, window_bounds = array<i64: 1, 256, 32>}, {pipeline_mode = #tpu.pipeline_mode<synchronous>, transform_indices = @transform_1, window_bounds = array<i64: 32, 64>}, {pipeline_mode = #tpu.pipeline_mode<synchronous>, transform_indices = @transform_2, window_bounds = array<i64: 1, 64>}, {transform_indices = @transform_3, window_bounds = array<i64: 1, 256, 64>}]} {
    %c0 = arith.constant 0 : index
    %c0_0 = arith.constant 0 : index
    %c0_1 = arith.constant 0 : index
    %0 = vector.load %arg2[%c0, %c0_0, %c0_1] : memref<1x256x32xbf16, #tpu.memory_space<vmem>>, vector<1x256x32xbf16>
    %1 = vector.shape_cast %0 : vector<1x256x32xbf16> to vector<256x32xbf16>
    %c0_2 = arith.constant 0 : index
    %c0_3 = arith.constant 0 : index
    %2 = vector.load %arg3[%c0_2, %c0_3] : memref<32x64xbf16, #tpu.memory_space<vmem>>, vector<32x64xbf16>
    %cst = arith.constant dense<0.000000e+00> : vector<256x64xf32>
    %3 = tpu.matmul %1, %2, %cst {dimension_numbers = #tpu.dot_dimension_numbers<[1], [0], [0], [1], [0, 0, 1, 1], [], []>} : vector<256x32xbf16>, vector<32x64xbf16>, vector<256x64xf32> -> vector<256x64xf32>
    %c0_4 = arith.constant 0 : index
    %c0_5 = arith.constant 0 : index
    %4 = vector.load %arg4[%c0_4, %c0_5] : memref<1x64xf32, #tpu.memory_space<vmem>>, vector<1x64xf32>
    %5 = vector.broadcast %4 : vector<1x64xf32> to vector<256x64xf32>
    %6 = arith.addf %3, %5 : vector<256x64xf32>
    %cst_6 = arith.constant 0.000000e+00 : f32
    %7 = vector.broadcast %cst_6 : f32 to vector<256x64xf32>
    %8 = arith.maximumf %6, %7 : vector<256x64xf32>
    %9 = arith.truncf %8 : vector<256x64xf32> to vector<256x64xbf16>
    %c0_7 = arith.constant 0 : index
    %c0_8 = arith.constant 0 : index
    %c0_9 = arith.constant 0 : index
    %10 = vector.load %arg5[%c0_7, %c0_8, %c0_9] : memref<1x256x64xbf16, #tpu.memory_space<vmem>>, vector<1x256x64xbf16>
    %11 = vector.shape_cast %10 : vector<1x256x64xbf16> to vector<256x64xbf16>
    %12 = vector.shape_cast %9 : vector<256x64xbf16> to vector<1x256x64xbf16>
    tpu.vector_store %arg5[%c0_7, %c0_8, %c0_9], %12 {strides = array<i32>} : memref<1x256x64xbf16, #tpu.memory_space<vmem>>, vector<1x256x64xbf16>,
    return
  }
  func.func @transform_0(%arg0: i32, %arg1: i32) -> (i32, i32, i32) {
    %c0_i32 = arith.constant 0 : i32
    %c0_i32_0 = arith.constant 0 : i32
    return %arg0, %arg1, %c0_i32 : i32, i32, i32
  }
  func.func @transform_1(%arg0: i32, %arg1: i32) -> (i32, i32) {
    %c0_i32 = arith.constant 0 : i32
    %c0_i32_0 = arith.constant 0 : i32
    %c0_i32_1 = arith.constant 0 : i32
    return %c0_i32, %c0_i32_0 : i32, i32
  }
  func.func @transform_2(%arg0: i32, %arg1: i32) -> (i32, i32) {
    %c0_i32 = arith.constant 0 : i32
    %c0_i32_0 = arith.constant 0 : i32
    %c0_i32_1 = arith.constant 0 : i32
    return %c0_i32, %c0_i32_0 : i32, i32
  }
  func.func @transform_3(%arg0: i32, %arg1: i32) -> (i32, i32, i32) {
    %c0_i32 = arith.constant 0 : i32
    %c0_i32_0 = arith.constant 0 : i32
    return %arg0, %arg1, %c0_i32 : i32, i32, i32
  }
}

module attributes {stable_mosaic.version = 11 : i64} {
  func.func @linear_kernel(%arg0: i32, %arg1: memref<2x16384xbf16, #tpu.memory_space<vmem>>, %arg2: memref<7x16384xbf16, #tpu.memory_space<vmem>>, %arg3: memref<1x7xf32, #tpu.memory_space<vmem>>, %arg4: memref<2x7xf32, #tpu.memory_space<vmem>>, %arg5: memref<2x7xf32, #tpu.memory_space<vmem>>) attributes {dimension_semantics = [#tpu.dimension_semantics<arbitrary>], iteration_bounds = array<i64: 1>, scalar_prefetch = 0 : i64, scratch_operands = 1 : i64, tpu.core_type = #tpu.core_type<tc>, window_params = [{transform_indices = @transform_0, window_bounds = array<i64: 2, 16384>}, {transform_indices = @transform_1, window_bounds = array<i64: 7, 16384>}, {pipeline_mode = #tpu.pipeline_mode<synchronous>, transform_indices = @transform_2, window_bounds = array<i64: 1, 7>}, {pipeline_mode = #tpu.pipeline_mode<synchronous>, transform_indices = @transform_3, window_bounds = array<i64: 2, 7>}]} {
    %c0_i32 = arith.constant 0 : i32
    %0 = arith.cmpi eq, %arg0, %c0_i32 : i32
    %1 = arith.extui %0 : i1 to i32
    %c0_i32_0 = arith.constant 0 : i32
    %2 = arith.cmpi ne, %1, %c0_i32_0 : i32
    scf.if %2 {
      %cst_10 = arith.constant 0.000000e+00 : f32
      %12 = vector.broadcast %cst_10 : f32 to vector<2x7xf32>
      %c0_11 = arith.constant 0 : index
      %c0_12 = arith.constant 0 : index
      %13 = vector.load %arg5[%c0_11, %c0_12] : memref<2x7xf32, #tpu.memory_space<vmem>>, vector<2x7xf32>
      tpu.vector_store %arg5[%c0_11, %c0_12], %12 {strides = array<i32>} : memref<2x7xf32, #tpu.memory_space<vmem>>, vector<2x7xf32>,
    } else {
    }
    %c0 = arith.constant 0 : index
    %c0_1 = arith.constant 0 : index
    %3 = vector.load %arg5[%c0, %c0_1] : memref<2x7xf32, #tpu.memory_space<vmem>>, vector<2x7xf32>
    %c0_2 = arith.constant 0 : index
    %c0_3 = arith.constant 0 : index
    %4 = vector.load %arg1[%c0_2, %c0_3] : memref<2x16384xbf16, #tpu.memory_space<vmem>>, vector<2x16384xbf16>
    %c0_4 = arith.constant 0 : index
    %c0_5 = arith.constant 0 : index
    %5 = vector.load %arg2[%c0_4, %c0_5] : memref<7x16384xbf16, #tpu.memory_space<vmem>>, vector<7x16384xbf16>
    %cst = arith.constant dense<0.000000e+00> : vector<2x7xf32>
    %6 = tpu.matmul %4, %5, %cst {dimension_numbers = #tpu.dot_dimension_numbers<[1], [1], [0], [0], [0, 0, 1, 0], [], []>} : vector<2x16384xbf16>, vector<7x16384xbf16>, vector<2x7xf32> -> vector<2x7xf32>
    %7 = arith.addf %3, %6 : vector<2x7xf32>
    %c0_6 = arith.constant 0 : index
    %c0_7 = arith.constant 0 : index
    %8 = vector.load %arg5[%c0_6, %c0_7] : memref<2x7xf32, #tpu.memory_space<vmem>>, vector<2x7xf32>
    tpu.vector_store %arg5[%c0_6, %c0_7], %7 {strides = array<i32>} : memref<2x7xf32, #tpu.memory_space<vmem>>, vector<2x7xf32>,
    %c0_i32_8 = arith.constant 0 : i32
    %9 = arith.cmpi eq, %arg0, %c0_i32_8 : i32
    %10 = arith.extui %9 : i1 to i32
    %c0_i32_9 = arith.constant 0 : i32
    %11 = arith.cmpi ne, %10, %c0_i32_9 : i32
    scf.if %11 {
      %c0_10 = arith.constant 0 : index
      %c0_11 = arith.constant 0 : index
      %12 = vector.load %arg5[%c0_10, %c0_11] : memref<2x7xf32, #tpu.memory_space<vmem>>, vector<2x7xf32>
      %c0_12 = arith.constant 0 : index
      %c0_13 = arith.constant 0 : index
      %13 = vector.load %arg3[%c0_12, %c0_13] : memref<1x7xf32, #tpu.memory_space<vmem>>, vector<1x7xf32>
      %14 = vector.broadcast %13 : vector<1x7xf32> to vector<2x7xf32>
      %15 = arith.addf %12, %14 : vector<2x7xf32>
      %c0_14 = arith.constant 0 : index
      %c0_15 = arith.constant 0 : index
      %16 = vector.load %arg4[%c0_14, %c0_15] : memref<2x7xf32, #tpu.memory_space<vmem>>, vector<2x7xf32>
      tpu.vector_store %arg4[%c0_14, %c0_15], %15 {strides = array<i32>} : memref<2x7xf32, #tpu.memory_space<vmem>>, vector<2x7xf32>,
    } else {
    }
    return
  }
  func.func @transform_0(%arg0: i32) -> (i32, i32) {
    %c0_i32 = arith.constant 0 : i32
    %c0_i32_0 = arith.constant 0 : i32
    return %c0_i32, %arg0 : i32, i32
  }
  func.func @transform_1(%arg0: i32) -> (i32, i32) {
    %c0_i32 = arith.constant 0 : i32
    %c0_i32_0 = arith.constant 0 : i32
    return %c0_i32, %arg0 : i32, i32
  }
  func.func @transform_2(%arg0: i32) -> (i32, i32) {
    %c0_i32 = arith.constant 0 : i32
    %c0_i32_0 = arith.constant 0 : i32
    %c0_i32_1 = arith.constant 0 : i32
    return %c0_i32, %c0_i32_0 : i32, i32
  }
  func.func @transform_3(%arg0: i32) -> (i32, i32) {
    %c0_i32 = arith.constant 0 : i32
    %c0_i32_0 = arith.constant 0 : i32
    %c0_i32_1 = arith.constant 0 : i32
    return %c0_i32, %c0_i32_0 : i32, i32
  }
}

</mosaic_0001>

<llo_original>
// kernel: unet_forward.2
$region0: #{unet_forward.2}
  #allocation0 [shape = 'u32[]', space=smem, size = 0x4, offset = 0x4, fixed_abs, tag = 'smem constant byte address 0x4 - core index']
  #allocation1 [shape = 'u32[144,128]{1,0:T(1,128)}', space=vmem, size = 0x12000, scoped, tag = 'internal scratch']
  %s0 = inlined_call_operand.vmem [shape: bf16[2,256,32], index: 0, kind: input, shape index: {}]
  %s1 = inlined_call_operand.vmem [shape: bf16[32,64], index: 1, kind: input, shape index: {}]
  %s2 = inlined_call_operand.vmem [shape: f32[1,64], index: 2, kind: input, shape index: {}]
  %s3 = inlined_call_operand.vmem [shape: bf16[2,256,64], index: 3, kind: output, shape index: {}]
  %s4 = sld [smem:[#allocation0]]
  $region45: #{unet_forward.2} parent=0
    _
  %s6 = ssub.s32 1, %s4
  %s7 = scalar_select 0, %s6, %s4
  loop: start=0, step=1, limit=4
  $region2: #{unet_forward.2} parent=0 // loop_pre_header
    _
  $region3: #{unet_forward.2} parent=0 // loop_header
    %s9 = sphi 0, %s13
    %p10 = scmp.ge.s32.totalorder %s9, 4
    %s16 = sphi 0, %s28
    %s17 = sphi 0, %s24
    %s18 = sphi 0, %s16
    %s19 = sphi 0, %s17
    %s20 = sphi 0, %s18
    %s21 = sphi 0, %s19
    %s33 = sphi 0, %s35
    %s36 = sphi 0, %s33
    %s37 = sphi 0, %s36
    %s53 = sphi 0, %s37
    %s57 = sphi 0, %s57
    %s59 = sphi 0, %s57
    %s60 = sphi 0, %s59
    %s74 = sphi 0, %s60
    %s78 = sphi 0, %s78
    %s80 = sphi 0, %s78
    %s81 = sphi 0, %s80
    %s95 = sphi 0, %s81
    %s103 = sphi 0, %s105
    %s106 = sphi 0, %s103
    %s107 = sphi 0, %s106
    %s123 = sphi 0, %s107
  $region4: #{unet_forward.2} parent=0 // loop_header_branch
    %12 = sbr.rel (%p10) target = $region8
  $region5: #{unet_forward.2} parent=0 // loop_body
    %s14 = ssub.s32 %s9, 1
    %s15 = ssub.s32 %s9, 2
    %s22 = sadd.s32 1, %s17
    %p23 = scmp.ge.s32.totalorder %s22, 1
    %s24 = scalar_select %p23, 0, %s22
    %s25 = sadd.s32 1, %s16
    %s26 = scalar_select %p23, %s25, %s16
    %p27 = scmp.ge.s32.totalorder %s26, 2
    %s28 = scalar_select %p27, 0, %s26
    %s29 = ssub.s32 %s16, %s28
    %s30 = ssub.s32 %s17, %s24
    %s31 = sor.u32 %s29, %s30
    %p32 = scmp.eq.s32.totalorder %s31, 0
    %s34 = sadd.s32 %s33, 1
    %s35 = scalar_select %p32, %s33, %s34
    %p38 = pneg %p32
    %p39 = scmp.eq.s32.totalorder %s9, 1
    %p40 = por %p38, %p39
    %p41 = scmp.ne.s32.totalorder %s33, %s36
    %p42 = scmp.eq.s32.totalorder %s9, 0
    %p43 = por %p41, %p42
    %p44 = scmp.ne.s32.totalorder %s33, %s36
    %p45 = scmp.eq.s32.totalorder %s14, 1
    %p46 = por %p44, %p45
    %p47 = scmp.ne.s32.totalorder %s36, %s37
    %p48 = scmp.eq.s32.totalorder %s14, 0
    %p49 = por %p47, %p48
    %p50 = scmp.ne.s32.totalorder %s36, %s37
    %p51 = scmp.eq.s32.totalorder %s15, 1
    %p52 = por %p50, %p51
    %p54 = scmp.ne.s32.totalorder %s37, %s53
    %p55 = scmp.eq.s32.totalorder %s15, 0
    %p56 = por %p54, %p55
    %s58 = sadd.s32 %s57, 1
    %p61 = scmp.eq.s32.totalorder %s9, 1
    %p62 = scmp.ne.s32.totalorder %s57, %s59
    %p63 = scmp.eq.s32.totalorder %s9, 0
    %p64 = por %p62, %p63
    %p65 = scmp.ne.s32.totalorder %s57, %s59
    %p66 = scmp.eq.s32.totalorder %s14, 1
    %p67 = por %p65, %p66
    %p68 = scmp.ne.s32.totalorder %s59, %s60
    %p69 = scmp.eq.s32.totalorder %s14, 0
    %p70 = por %p68, %p69
    %p71 = scmp.ne.s32.totalorder %s59, %s60
    %p72 = scmp.eq.s32.totalorder %s15, 1
    %p73 = por %p71, %p72
    %p75 = scmp.ne.s32.totalorder %s60, %s74
    %p76 = scmp.eq.s32.totalorder %s15, 0
    %p77 = por %p75, %p76
    %s79 = sadd.s32 %s78, 1
    %p82 = scmp.eq.s32.totalorder %s9, 1
    %p83 = scmp.ne.s32.totalorder %s78, %s80
    %p84 = scmp.eq.s32.totalorder %s9, 0
    %p85 = por %p83, %p84
    %p86 = scmp.ne.s32.totalorder %s78, %s80
    %p87 = scmp.eq.s32.totalorder %s14, 1
    %p88 = por %p86, %p87
    %p89 = scmp.ne.s32.totalorder %s80, %s81
    %p90 = scmp.eq.s32.totalorder %s14, 0
    %p91 = por %p89, %p90
    %p92 = scmp.ne.s32.totalorder %s80, %s81
    %p93 = scmp.eq.s32.totalorder %s15, 1
    %p94 = por %p92, %p93
    %p96 = scmp.ne.s32.totalorder %s81, %s95
    %p97 = scmp.eq.s32.totalorder %s15, 0
    %p98 = por %p96, %p97
    %s99 = ssub.s32 %s16, %s28
    %s100 = ssub.s32 %s17, %s24
    %s101 = sor.u32 %s99, %s100
    %p102 = scmp.eq.s32.totalorder %s101, 0
    %s104 = sadd.s32 %s103, 1
    %s105 = scalar_select %p102, %s103, %s104
    %p108 = pneg %p102
    %p109 = scmp.eq.s32.totalorder %s9, 1
    %p110 = por %p108, %p109
    %p111 = scmp.ne.s32.totalorder %s103, %s106
    %p112 = scmp.eq.s32.totalorder %s9, 0
    %p113 = por %p111, %p112
    %p114 = scmp.ne.s32.totalorder %s103, %s106
    %p115 = scmp.eq.s32.totalorder %s14, 1
    %p116 = por %p114, %p115
    %p117 = scmp.ne.s32.totalorder %s106, %s107
    %p118 = scmp.eq.s32.totalorder %s14, 0
    %p119 = por %p117, %p118
    %p120 = scmp.ne.s32.totalorder %s106, %s107
    %p121 = scmp.eq.s32.totalorder %s15, 1
    %p122 = por %p120, %p121
    %p124 = scmp.ne.s32.totalorder %s107, %s123
    %p125 = scmp.eq.s32.totalorder %s15, 0
    %p126 = por %p124, %p125
    %p127 = scmp.le.s32.totalorder 1, %s9
    %p128 = scmp.lt.s32.totalorder %s9, 3
    %p129 = pnand %p127, %p128
    %p130 = pneg %p129
    // Predicated region
    $region9: #{unet_forward.2} parent=5 // pred_check
      _
    $region10: #{unet_forward.2} parent=5 // pred_check_branch
      %132 = sbr.rel (%p129) target = $region12
    $region11: #{unet_forward.2} parent=5 // pred_region
      %s133 = ssub.s32 %s9, 1
      // Predicated region
      $region13: #{unet_forward.2} parent=11 // pred_check
        %p134 = pneg %p70
      $region14: #{unet_forward.2} parent=11 // pred_check_branch
        %136 = sbr.rel (%p134) target = $region16
      $region15: #{unet_forward.2} parent=11 // pred_region
        _
      $region16: #{unet_forward.2} parent=11 // pred_fallthru
        _
      // Predicated region
      $region17: #{unet_forward.2} parent=11 // pred_check
        %p137 = pneg %p91
      $region18: #{unet_forward.2} parent=11 // pred_check_branch
        %139 = sbr.rel (%p137) target = $region20
      $region19: #{unet_forward.2} parent=11 // pred_region
        _
      $region20: #{unet_forward.2} parent=11 // pred_fallthru
        _
    $region12: #{unet_forward.2} parent=5 // pred_fallthru
      _
    %p140 = scmp.lt.s32.totalorder %s9, 2
    // Predicated region
    $region21: #{unet_forward.2} parent=5 // pred_check
      %p141 = pneg %p140
    $region22: #{unet_forward.2} parent=5 // pred_check_branch
      %143 = sbr.rel (%p141) target = $region24
    $region23: #{unet_forward.2} parent=5 // pred_region
      // Predicated region
      $region25: #{unet_forward.2} parent=23 // pred_check
        %p144 = pneg %p43
      $region26: #{unet_forward.2} parent=23 // pred_check_branch
        %146 = sbr.rel (%p144) target = $region28
      $region27: #{unet_forward.2} parent=23 // pred_region
        %s147 = smul.u32 32, %s17
        %p148 = scmp.lt.s32.totalorder %s16, 1
        %s149 = scalar_select %p148, %s16, 1
        %p150 = scmp.lt.s32.totalorder %s147, 31
        %s151 = scalar_select %p150, %s147, 31
        %s152 = smul.addr %s149, 32
        %s153 = sadd.s32 %s151, %s152
        %s154 = smul.addr %s153, 4
        %s155 = scalar_lea.vmem %s0, %s154
        %s156 = smul.u32 32, %s17
      $region28: #{unet_forward.2} parent=23 // pred_fallthru
        _
    $region24: #{unet_forward.2} parent=5 // pred_fallthru
      _
    %p157 = scmp.le.s32.totalorder 1, %s9
    %p158 = scmp.lt.s32.totalorder %s9, 3
    %p159 = pnand %p157, %p158
    %p160 = pneg %p159
    // Predicated region
    $region29: #{unet_forward.2} parent=5 // pred_check
      _
    $region30: #{unet_forward.2} parent=5 // pred_check_branch
      %162 = sbr.rel (%p159) target = $region32
    $region31: #{unet_forward.2} parent=5 // pred_region
      %s163 = ssub.s32 %s9, 1
      %s164 = smul.u32 32, %s19
      %p165 = scmp.lt.s32.totalorder %s18, 1
      %s166 = scalar_select %p165, %s18, 1
      %p167 = scmp.lt.s32.totalorder %s164, 31
      %s168 = scalar_select %p167, %s164, 31
      %s169 = smul.addr %s166, 32
      %s170 = sadd.s32 %s168, %s169
      %s171 = smul.addr %s170, 4
      %s172 = scalar_lea.vmem %s0, %s171
      %p173 = pneg %p49
      %p174 = pneg %p46
      %p175 = pneg %p70
      %p176 = pneg %p67
      %p177 = pneg %p91
      %p178 = pneg %p88
      %p179 = pneg %p119
      %p180 = pneg %p116
      %s181 = smul.u32 32, %s19
      %p182 = scmp.lt.s32.totalorder %s18, 1
      %s183 = scalar_select %p182, %s18, 1
      %p184 = scmp.lt.s32.totalorder %s181, 31
      %s185 = scalar_select %p184, %s181, 31
      %s186 = smul.addr %s183, 32
      %s187 = sadd.s32 %s185, %s186
      %s188 = smul.addr %s187, 4
      %s189 = scalar_lea.vmem %s3, %s188
      %s190 = smul.u32 32, %s19
      %p191 = scmp.lt.s32.totalorder %s18, 1
      %s192 = scalar_select %p191, %s18, 1
      %p193 = scmp.lt.s32.totalorder %s190, 31
      %s194 = scalar_select %p193, %s190, 31
      %s195 = smul.addr %s192, 32
      %s196 = sadd.s32 %s194, %s195
      %s197 = smul.addr %s196, 4
      %s198 = scalar_lea.vmem %s0, %s197
      %s199 = smul.u32 32, %s19
      %s200 = smul.u32 32, %s19
      %p201 = scmp.lt.s32.totalorder %s18, 1
      %s202 = scalar_select %p201, %s18, 1
      %p203 = scmp.lt.s32.totalorder %s200, 31
      %s204 = scalar_select %p203, %s200, 31
      %s205 = smul.addr %s202, 32
      %s206 = sadd.s32 %s204, %s205
      %s207 = smul.addr %s206, 4
      %s208 = scalar_lea.vmem %s3, %s207
      %s209 = smul.u32 32, %s19
      %v211 = vld [vmem:[%s198] sm:$0xf]
      %v212 = vld [vmem:[%s198 + $0x4] sm:$0xf]
      %v213 = vld [vmem:[%s198 + $0x8] sm:$0xf]
      %v214 = vld [vmem:[%s198 + $0xc] sm:$0xf]
      %v215 = vld [vmem:[%s198 + $0x10] sm:$0xf]
      %v216 = vld [vmem:[%s198 + $0x14] sm:$0xf]
      %v217 = vld [vmem:[%s198 + $0x18] sm:$0xf]
      %v218 = vld [vmem:[%s198 + $0x1c] sm:$0xf]
      %v219 = vld [vmem:[%s198 + $0x20] sm:$0xf]
      %v220 = vld [vmem:[%s198 + $0x24] sm:$0xf]
      %v221 = vld [vmem:[%s198 + $0x28] sm:$0xf]
      %v222 = vld [vmem:[%s198 + $0x2c] sm:$0xf]
      %v223 = vld [vmem:[%s198 + $0x30] sm:$0xf]
      %v224 = vld [vmem:[%s198 + $0x34] sm:$0xf]
      %v225 = vld [vmem:[%s198 + $0x38] sm:$0xf]
      %v226 = vld [vmem:[%s198 + $0x3c] sm:$0xf]
      %v227 = vld [vmem:[%s198 + $0x40] sm:$0xf]
      %v228 = vld [vmem:[%s198 + $0x44] sm:$0xf]
      %v229 = vld [vmem:[%s198 + $0x48] sm:$0xf]
      %v230 = vld [vmem:[%s198 + $0x4c] sm:$0xf]
      %v231 = vld [vmem:[%s198 + $0x50] sm:$0xf]
      %v232 = vld [vmem:[%s198 + $0x54] sm:$0xf]
      %v233 = vld [vmem:[%s198 + $0x58] sm:$0xf]
      %v234 = vld [vmem:[%s198 + $0x5c] sm:$0xf]
      %v235 = vld [vmem:[%s198 + $0x60] sm:$0xf]
      %v236 = vld [vmem:[%s198 + $0x64] sm:$0xf]
      %v237 = vld [vmem:[%s198 + $0x68] sm:$0xf]
      %v238 = vld [vmem:[%s198 + $0x6c] sm:$0xf]
      %v239 = vld [vmem:[%s198 + $0x70] sm:$0xf]
      %v240 = vld [vmem:[%s198 + $0x74] sm:$0xf]
      %v241 = vld [vmem:[%s198 + $0x78] sm:$0xf]
      %v242 = vld [vmem:[%s198 + $0x7c] sm:$0xf]
      %v243 = vld [vmem:[%s1] sm:$0xf]
      %v244 = vld [vmem:[%s1 + $0x4] sm:$0xf]
      %v245 = vld [vmem:[%s1 + $0x8] sm:$0xf]
      %v246 = vld [vmem:[%s1 + $0xc] sm:$0xf]
      %v247 = vld [vmem:[%s2] sm:$0x1]
      %v249 = vlaneseq
      %v250 = vshrl.u32 %v249, 7
      %v251 = vsub.s32 0, %v250
      %v252 = vrot.slane %v247, %v251
      %v286 = vunpack.c.l.b16 %v211
      %v287 = vunpack.c.l.b16 %v212
      %v288 = vunpack.c.l.b16 %v213
      %v289 = vunpack.c.l.b16 %v214
      %v290 = vunpack.c.l.b16 %v215
      %v291 = vunpack.c.l.b16 %v216
      %v292 = vunpack.c.l.b16 %v217
      %v293 = vunpack.c.l.b16 %v218
      %v294 = vunpack.c.l.b16 %v219
      %v295 = vunpack.c.l.b16 %v220
      %v296 = vunpack.c.l.b16 %v221
      %v297 = vunpack.c.l.b16 %v222
      %v298 = vunpack.c.l.b16 %v223
      %v299 = vunpack.c.l.b16 %v224
      %v300 = vunpack.c.l.b16 %v225
      %v301 = vunpack.c.l.b16 %v226
      %v302 = vunpack.c.l.b16 %v227
      %v303 = vunpack.c.l.b16 %v228
      %v304 = vunpack.c.l.b16 %v229
      %v305 = vunpack.c.l.b16 %v230
      %v306 = vunpack.c.l.b16 %v231
      %v307 = vunpack.c.l.b16 %v232
      %v308 = vunpack.c.l.b16 %v233
      %v309 = vunpack.c.l.b16 %v234
      %v310 = vunpack.c.l.b16 %v235
      %v311 = vunpack.c.l.b16 %v236
      %v312 = vunpack.c.l.b16 %v237
      %v313 = vunpack.c.l.b16 %v238
      %v314 = vunpack.c.l.b16 %v239
      %v315 = vunpack.c.l.b16 %v240
      %v316 = vunpack.c.l.b16 %v241
      %v317 = vunpack.c.l.b16 %v242
      %v318 = vpack.c.b16 %v287, %v286
      %v319 = vpack.c.b16 %v289, %v288
      %v320 = vpack.c.b16 %v291, %v290
      %v321 = vpack.c.b16 %v293, %v292
      %v322 = vpack.c.b16 %v295, %v294
      %v323 = vpack.c.b16 %v297, %v296
      %v324 = vpack.c.b16 %v299, %v298
      %v325 = vpack.c.b16 %v301, %v300
      %v326 = vpack.c.b16 %v303, %v302
      %v327 = vpack.c.b16 %v305, %v304
      %v328 = vpack.c.b16 %v307, %v306
      %v329 = vpack.c.b16 %v309, %v308
      %v330 = vpack.c.b16 %v311, %v310
      %v331 = vpack.c.b16 %v313, %v312
      %v332 = vpack.c.b16 %v315, %v314
      %v333 = vpack.c.b16 %v317, %v316
      %v338 = vunpack.c.l.b16 %v243
      %v339 = vunpack.c.l.b16 %v244
      %v340 = vunpack.c.l.b16 %v245
      %v341 = vunpack.c.l.b16 %v246
      %v342 = vpack.c.b16 %v339, %v338
      %v343 = vpack.c.b16 %v341, %v340
      %vm346 = vcmask 261120
      %v348 = vsel %vm346, %v318, 0
      %v351 = vsel %vm346, %v319, 0
      %v354 = vsel %vm346, %v320, 0
      %v357 = vsel %vm346, %v321, 0
      %v360 = vsel %vm346, %v322, 0
      %v363 = vsel %vm346, %v323, 0
      %v366 = vsel %vm346, %v324, 0
      %v369 = vsel %vm346, %v325, 0
      %v372 = vsel %vm346, %v326, 0
      %v375 = vsel %vm346, %v327, 0
      %v378 = vsel %vm346, %v328, 0
      %v381 = vsel %vm346, %v329, 0
      %v384 = vsel %vm346, %v330, 0
      %v387 = vsel %vm346, %v331, 0
      %v390 = vsel %vm346, %v332, 0
      %v393 = vsel %vm346, %v333, 0
      %395 = vmatprep.subr.bf16.mxu0 0
      %396 = vmatpush1.bf16.msra.mxu0 0
      %397 = vmatprep.subr.bf16.mxu0 0
      %398 = vmatpush1.bf16.msra.mxu0 0
      %399 = vmatprep.subr.bf16.mxu0 0
      %400 = vmatpush1.bf16.msra.mxu0 0
      %401 = vmatprep.subr.bf16.mxu0 0
      %402 = vmatpush1.bf16.msra.mxu0 0
      %403 = vmatprep.subr.bf16.mxu0 0
      %404 = vmatpush1.bf16.msra.mxu0 0
      %405 = vmatprep.subr.bf16.mxu0 0
      %406 = vmatpush1.bf16.msra.mxu0 0
      %407 = vmatprep.subr.bf16.mxu0 0
      %408 = vmatpush1.bf16.msra.mxu0 %v343
      %409 = vmatprep.subr.bf16.mxu0 0
      %410 = vmatpush1.bf16.msra.mxu0 %v342
      %411 = vmatprep.subr.bf16.mxu0 0
      %412 = vmatpush2.bf16.msra.mxu0 0
      %413 = vmatprep.subr.bf16.mxu0 0
      %414 = vmatpush2.bf16.msra.mxu0 0
      %415 = vmatprep.subr.bf16.mxu0 0
      %416 = vmatpush2.bf16.msra.mxu0 0
      %417 = vmatprep.subr.bf16.mxu0 0
      %418 = vmatpush2.bf16.msra.mxu0 0
      %419 = vmatprep.subr.bf16.mxu0 0
      %420 = vmatpush2.bf16.msra.mxu0 0
      %421 = vmatprep.subr.bf16.mxu0 0
      %422 = vmatpush2.bf16.msra.mxu0 0
      %423 = vmatprep.subr.bf16.mxu0 0
      %424 = vmatpush2.bf16.msra.mxu0 0
      %425 = vmatprep.subr.bf16.mxu0 0
      %426 = vmatpush2.bf16.msra.mxu0 0
      %427 = vmatprep.mubr.bf16.mxu0 0
      %428 = vmatmul.mubr.bf16.gmra.mxu0 %v348
      %v429 = vpop.f32.mrf.mxu0
      %v430 = vadd.f32 %v252, %v429
      %v431 = vpop.f32.mrf.mxu0
      %v432 = vpop.f32.mrf.mxu0
      %v433 = vadd.f32 %v252, %v432
      %v434 = vpop.f32.mrf.mxu0
      %435 = vmatprep.mubr.bf16.mxu0 0
      %436 = vmatmul.mubr.bf16.gmra.mxu0 %v351
      %v437 = vpop.f32.mrf.mxu0
      %v438 = vadd.f32 %v252, %v437
      %v439 = vpop.f32.mrf.mxu0
      %v440 = vpop.f32.mrf.mxu0
      %v441 = vadd.f32 %v252, %v440
      %v442 = vpop.f32.mrf.mxu0
      %443 = vmatprep.mubr.bf16.mxu0 0
      %444 = vmatmul.mubr.bf16.gmra.mxu0 %v354
      %v445 = vpop.f32.mrf.mxu0
      %v446 = vadd.f32 %v252, %v445
      %v447 = vpop.f32.mrf.mxu0
      %v448 = vpop.f32.mrf.mxu0
      %v449 = vadd.f32 %v252, %v448
      %v450 = vpop.f32.mrf.mxu0
      %451 = vmatprep.mubr.bf16.mxu0 0
      %452 = vmatmul.mubr.bf16.gmra.mxu0 %v357
      %v453 = vpop.f32.mrf.mxu0
      %v454 = vadd.f32 %v252, %v453
      %v455 = vpop.f32.mrf.mxu0
      %v456 = vpop.f32.mrf.mxu0
      %v457 = vadd.f32 %v252, %v456
      %v458 = vpop.f32.mrf.mxu0
      %459 = vmatprep.mubr.bf16.mxu0 0
      %460 = vmatmul.mubr.bf16.gmra.mxu0 %v360
      %v461 = vpop.f32.mrf.mxu0
      %v462 = vadd.f32 %v252, %v461
      %v463 = vpop.f32.mrf.mxu0
      %v464 = vpop.f32.mrf.mxu0
      %v465 = vadd.f32 %v252, %v464
      %v466 = vpop.f32.mrf.mxu0
      %467 = vmatprep.mubr.bf16.mxu0 0
      %468 = vmatmul.mubr.bf16.gmra.mxu0 %v363
      %v469 = vpop.f32.mrf.mxu0
      %v470 = vadd.f32 %v252, %v469
      %v471 = vpop.f32.mrf.mxu0
      %v472 = vpop.f32.mrf.mxu0
      %v473 = vadd.f32 %v252, %v472
      %v474 = vpop.f32.mrf.mxu0
      %475 = vmatprep.mubr.bf16.mxu0 0
      %476 = vmatmul.mubr.bf16.gmra.mxu0 %v366
      %v477 = vpop.f32.mrf.mxu0
      %v478 = vadd.f32 %v252, %v477
      %v479 = vpop.f32.mrf.mxu0
      %v480 = vpop.f32.mrf.mxu0
      %v481 = vadd.f32 %v252, %v480
      %v482 = vpop.f32.mrf.mxu0
      %483 = vmatprep.mubr.bf16.mxu0 0
      %484 = vmatmul.mubr.bf16.gmra.mxu0 %v369
      %v485 = vpop.f32.mrf.mxu0
      %v486 = vadd.f32 %v252, %v485
      %v487 = vpop.f32.mrf.mxu0
      %v488 = vpop.f32.mrf.mxu0
      %v489 = vadd.f32 %v252, %v488
      %v490 = vpop.f32.mrf.mxu0
      %491 = vmatprep.mubr.bf16.mxu0 0
      %492 = vmatmul.mubr.bf16.gmra.mxu0 %v372
      %v493 = vpop.f32.mrf.mxu0
      %v494 = vadd.f32 %v252, %v493
      %v495 = vpop.f32.mrf.mxu0
      %v496 = vpop.f32.mrf.mxu0
      %v497 = vadd.f32 %v252, %v496
      %v498 = vpop.f32.mrf.mxu0
      %499 = vmatprep.mubr.bf16.mxu0 0
      %500 = vmatmul.mubr.bf16.gmra.mxu0 %v375
      %v501 = vpop.f32.mrf.mxu0
      %v502 = vadd.f32 %v252, %v501
      %v503 = vpop.f32.mrf.mxu0
      %v504 = vpop.f32.mrf.mxu0
      %v505 = vadd.f32 %v252, %v504
      %v506 = vpop.f32.mrf.mxu0
      %507 = vmatprep.mubr.bf16.mxu0 0
      %508 = vmatmul.mubr.bf16.gmra.mxu0 %v378
      %v509 = vpop.f32.mrf.mxu0
      %v510 = vadd.f32 %v252, %v509
      %v511 = vpop.f32.mrf.mxu0
      %v512 = vpop.f32.mrf.mxu0
      %v513 = vadd.f32 %v252, %v512
      %v514 = vpop.f32.mrf.mxu0
      %515 = vmatprep.mubr.bf16.mxu0 0
      %516 = vmatmul.mubr.bf16.gmra.mxu0 %v381
      %v517 = vpop.f32.mrf.mxu0
      %v518 = vadd.f32 %v252, %v517
      %v519 = vpop.f32.mrf.mxu0
      %v520 = vpop.f32.mrf.mxu0
      %v521 = vadd.f32 %v252, %v520
      %v522 = vpop.f32.mrf.mxu0
      %523 = vmatprep.mubr.bf16.mxu0 0
      %524 = vmatmul.mubr.bf16.gmra.mxu0 %v384
      %v525 = vpop.f32.mrf.mxu0
      %v526 = vadd.f32 %v252, %v525
      %v527 = vpop.f32.mrf.mxu0
      %v528 = vpop.f32.mrf.mxu0
      %v529 = vadd.f32 %v252, %v528
      %v530 = vpop.f32.mrf.mxu0
      %531 = vmatprep.mubr.bf16.mxu0 0
      %532 = vmatmul.mubr.bf16.gmra.mxu0 %v387
      %v533 = vpop.f32.mrf.mxu0
      %v534 = vadd.f32 %v252, %v533
      %v535 = vpop.f32.mrf.mxu0
      %v536 = vpop.f32.mrf.mxu0
      %v537 = vadd.f32 %v252, %v536
      %v538 = vpop.f32.mrf.mxu0
      %539 = vmatprep.mubr.bf16.mxu0 0
      %540 = vmatmul.mubr.bf16.gmra.mxu0 %v390
      %v541 = vpop.f32.mrf.mxu0
      %v542 = vadd.f32 %v252, %v541
      %v543 = vpop.f32.mrf.mxu0
      %v544 = vpop.f32.mrf.mxu0
      %v545 = vadd.f32 %v252, %v544
      %v546 = vpop.f32.mrf.mxu0
      %547 = vmatprep.mubr.bf16.mxu0 0
      %548 = vmatmul.mubr.bf16.gmra.mxu0 %v393
      %v549 = vpop.f32.mrf.mxu0
      %v550 = vadd.f32 %v252, %v549
      %v551 = vpop.f32.mrf.mxu0
      %v552 = vpop.f32.mrf.mxu0
      %v553 = vadd.f32 %v252, %v552
      %v554 = vpop.f32.mrf.mxu0
      %555 = vdwg.mxu0
      %v556 = vmax.f32 %v430, 0.0
      %v557 = vmax.f32 %v433, 0.0
      %v558 = vmax.f32 %v438, 0.0
      %v559 = vmax.f32 %v441, 0.0
      %v560 = vmax.f32 %v446, 0.0
      %v561 = vmax.f32 %v449, 0.0
      %v562 = vmax.f32 %v454, 0.0
      %v563 = vmax.f32 %v457, 0.0
      %v564 = vmax.f32 %v462, 0.0
      %v565 = vmax.f32 %v465, 0.0
      %v566 = vmax.f32 %v470, 0.0
      %v567 = vmax.f32 %v473, 0.0
      %v568 = vmax.f32 %v478, 0.0
      %v569 = vmax.f32 %v481, 0.0
      %v570 = vmax.f32 %v486, 0.0
      %v571 = vmax.f32 %v489, 0.0
      %v572 = vmax.f32 %v494, 0.0
      %v573 = vmax.f32 %v497, 0.0
      %v574 = vmax.f32 %v502, 0.0
      %v575 = vmax.f32 %v505, 0.0
      %v576 = vmax.f32 %v510, 0.0
      %v577 = vmax.f32 %v513, 0.0
      %v578 = vmax.f32 %v518, 0.0
      %v579 = vmax.f32 %v521, 0.0
      %v580 = vmax.f32 %v526, 0.0
      %v581 = vmax.f32 %v529, 0.0
      %v582 = vmax.f32 %v534, 0.0
      %v583 = vmax.f32 %v537, 0.0
      %v584 = vmax.f32 %v542, 0.0
      %v585 = vmax.f32 %v545, 0.0
      %v586 = vmax.f32 %v550, 0.0
      %v587 = vmax.f32 %v553, 0.0
      %v588 = vpack.c.bf16 %v557, %v556
      %v589 = vpack.c.bf16 %v559, %v558
      %v590 = vpack.c.bf16 %v561, %v560
      %v591 = vpack.c.bf16 %v563, %v562
      %v592 = vpack.c.bf16 %v565, %v564
      %v593 = vpack.c.bf16 %v567, %v566
      %v594 = vpack.c.bf16 %v569, %v568
      %v595 = vpack.c.bf16 %v571, %v570
      %v596 = vpack.c.bf16 %v573, %v572
      %v597 = vpack.c.bf16 %v575, %v574
      %v598 = vpack.c.bf16 %v577, %v576
      %v599 = vpack.c.bf16 %v579, %v578
      %v600 = vpack.c.bf16 %v581, %v580
      %v601 = vpack.c.bf16 %v583, %v582
      %v602 = vpack.c.bf16 %v585, %v584
      %v603 = vpack.c.bf16 %v587, %v586
      %v620 = vunpack.c.l.b16 %v588
      %v621 = vunpack.c.h.b16 %v588
      %v622 = vunpack.c.l.b16 %v589
      %v623 = vunpack.c.h.b16 %v589
      %v624 = vunpack.c.l.b16 %v590
      %v625 = vunpack.c.h.b16 %v590
      %v626 = vunpack.c.l.b16 %v591
      %v627 = vunpack.c.h.b16 %v591
      %v628 = vunpack.c.l.b16 %v592
      %v629 = vunpack.c.h.b16 %v592
      %v630 = vunpack.c.l.b16 %v593
      %v631 = vunpack.c.h.b16 %v593
      %v632 = vunpack.c.l.b16 %v594
      %v633 = vunpack.c.h.b16 %v594
      %v634 = vunpack.c.l.b16 %v595
      %v635 = vunpack.c.h.b16 %v595
      %v636 = vunpack.c.l.b16 %v596
      %v637 = vunpack.c.h.b16 %v596
      %v638 = vunpack.c.l.b16 %v597
      %v639 = vunpack.c.h.b16 %v597
      %v640 = vunpack.c.l.b16 %v598
      %v641 = vunpack.c.h.b16 %v598
      %v642 = vunpack.c.l.b16 %v599
      %v643 = vunpack.c.h.b16 %v599
      %v644 = vunpack.c.l.b16 %v600
      %v645 = vunpack.c.h.b16 %v600
      %v646 = vunpack.c.l.b16 %v601
      %v647 = vunpack.c.h.b16 %v601
      %v648 = vunpack.c.l.b16 %v602
      %v649 = vunpack.c.h.b16 %v602
      %v650 = vunpack.c.l.b16 %v603
      %v651 = vunpack.c.h.b16 %v603
      %v652 = vpack.c.b16 %v620, %v620
      %v653 = vpack.c.b16 %v621, %v621
      %v654 = vpack.c.b16 %v622, %v622
      %v655 = vpack.c.b16 %v623, %v623
      %v656 = vpack.c.b16 %v624, %v624
      %v657 = vpack.c.b16 %v625, %v625
      %v658 = vpack.c.b16 %v626, %v626
      %v659 = vpack.c.b16 %v627, %v627
      %v660 = vpack.c.b16 %v628, %v628
      %v661 = vpack.c.b16 %v629, %v629
      %v662 = vpack.c.b16 %v630, %v630
      %v663 = vpack.c.b16 %v631, %v631
      %v664 = vpack.c.b16 %v632, %v632
      %v665 = vpack.c.b16 %v633, %v633
      %v666 = vpack.c.b16 %v634, %v634
      %v667 = vpack.c.b16 %v635, %v635
      %v668 = vpack.c.b16 %v636, %v636
      %v669 = vpack.c.b16 %v637, %v637
      %v670 = vpack.c.b16 %v638, %v638
      %v671 = vpack.c.b16 %v639, %v639
      %v672 = vpack.c.b16 %v640, %v640
      %v673 = vpack.c.b16 %v641, %v641
      %v674 = vpack.c.b16 %v642, %v642
      %v675 = vpack.c.b16 %v643, %v643
      %v676 = vpack.c.b16 %v644, %v644
      %v677 = vpack.c.b16 %v645, %v645
      %v678 = vpack.c.b16 %v646, %v646
      %v679 = vpack.c.b16 %v647, %v647
      %v680 = vpack.c.b16 %v648, %v648
      %v681 = vpack.c.b16 %v649, %v649
      %v682 = vpack.c.b16 %v650, %v650
      %v683 = vpack.c.b16 %v651, %v651
      %vm716 = vcmask 519168
      %717 = vst.msk [vmem:[%s208] sm:$0xf] %vm716, %v652
      %718 = vst.msk [vmem:[%s208 + $0x4] sm:$0xf] %vm716, %v653
      %719 = vst.msk [vmem:[%s208 + $0x8] sm:$0xf] %vm716, %v654
      %720 = vst.msk [vmem:[%s208 + $0xc] sm:$0xf] %vm716, %v655
      %721 = vst.msk [vmem:[%s208 + $0x10] sm:$0xf] %vm716, %v656
      %722 = vst.msk [vmem:[%s208 + $0x14] sm:$0xf] %vm716, %v657
      %723 = vst.msk [vmem:[%s208 + $0x18] sm:$0xf] %vm716, %v658
      %724 = vst.msk [vmem:[%s208 + $0x1c] sm:$0xf] %vm716, %v659
      %725 = vst.msk [vmem:[%s208 + $0x20] sm:$0xf] %vm716, %v660
      %726 = vst.msk [vmem:[%s208 + $0x24] sm:$0xf] %vm716, %v661
      %727 = vst.msk [vmem:[%s208 + $0x28] sm:$0xf] %vm716, %v662
      %728 = vst.msk [vmem:[%s208 + $0x2c] sm:$0xf] %vm716, %v663
      %729 = vst.msk [vmem:[%s208 + $0x30] sm:$0xf] %vm716, %v664
      %730 = vst.msk [vmem:[%s208 + $0x34] sm:$0xf] %vm716, %v665
      %731 = vst.msk [vmem:[%s208 + $0x38] sm:$0xf] %vm716, %v666
      %732 = vst.msk [vmem:[%s208 + $0x3c] sm:$0xf] %vm716, %v667
      %733 = vst.msk [vmem:[%s208 + $0x40] sm:$0xf] %vm716, %v668
      %734 = vst.msk [vmem:[%s208 + $0x44] sm:$0xf] %vm716, %v669
      %735 = vst.msk [vmem:[%s208 + $0x48] sm:$0xf] %vm716, %v670
      %736 = vst.msk [vmem:[%s208 + $0x4c] sm:$0xf] %vm716, %v671
      %737 = vst.msk [vmem:[%s208 + $0x50] sm:$0xf] %vm716, %v672
      %738 = vst.msk [vmem:[%s208 + $0x54] sm:$0xf] %vm716, %v673
      %739 = vst.msk [vmem:[%s208 + $0x58] sm:$0xf] %vm716, %v674
      %740 = vst.msk [vmem:[%s208 + $0x5c] sm:$0xf] %vm716, %v675
      %741 = vst.msk [vmem:[%s208 + $0x60] sm:$0xf] %vm716, %v676
      %742 = vst.msk [vmem:[%s208 + $0x64] sm:$0xf] %vm716, %v677
      %743 = vst.msk [vmem:[%s208 + $0x68] sm:$0xf] %vm716, %v678
      %744 = vst.msk [vmem:[%s208 + $0x6c] sm:$0xf] %vm716, %v679
      %745 = vst.msk [vmem:[%s208 + $0x70] sm:$0xf] %vm716, %v680
      %746 = vst.msk [vmem:[%s208 + $0x74] sm:$0xf] %vm716, %v681
      %747 = vst.msk [vmem:[%s208 + $0x78] sm:$0xf] %vm716, %v682
      %748 = vst.msk [vmem:[%s208 + $0x7c] sm:$0xf] %vm716, %v683
      %s749 = smul.u32 32, %s19
      %p750 = scmp.lt.s32.totalorder %s18, 1
      %s751 = scalar_select %p750, %s18, 1
      %p752 = scmp.lt.s32.totalorder %s749, 31
      %s753 = scalar_select %p752, %s749, 31
      %s754 = smul.addr %s751, 32
      %s755 = sadd.s32 %s753, %s754
      %s756 = smul.addr %s755, 4
      %s757 = scalar_lea.vmem %s3, %s756
      // Predicated region
      $region33: #{unet_forward.2} parent=31 // pred_check
        %p758 = pneg %p116
      $region34: #{unet_forward.2} parent=31 // pred_check_branch
        %760 = sbr.rel (%p758) target = $region36
      $region35: #{unet_forward.2} parent=31 // pred_region
        %s761 = smul.u32 32, %s19
      $region36: #{unet_forward.2} parent=31 // pred_fallthru
        _
    $region32: #{unet_forward.2} parent=5 // pred_fallthru
      _
    %p762 = scmp.le.s32.totalorder 2, %s9
    // Predicated region
    $region37: #{unet_forward.2} parent=5 // pred_check
      %p763 = pneg %p762
    $region38: #{unet_forward.2} parent=5 // pred_check_branch
      %765 = sbr.rel (%p763) target = $region40
    $region39: #{unet_forward.2} parent=5 // pred_region
      %s766 = ssub.s32 %s9, 2
      // Predicated region
      $region41: #{unet_forward.2} parent=39 // pred_check
        %p767 = pneg %p122
      $region42: #{unet_forward.2} parent=39 // pred_check_branch
        %769 = sbr.rel (%p767) target = $region44
      $region43: #{unet_forward.2} parent=39 // pred_region
        %s770 = smul.u32 32, %s21
        %p771 = scmp.lt.s32.totalorder %s20, 1
        %s772 = scalar_select %p771, %s20, 1
        %p773 = scmp.lt.s32.totalorder %s770, 31
        %s774 = scalar_select %p773, %s770, 31
        %s775 = smul.addr %s772, 32
        %s776 = sadd.s32 %s774, %s775
        %s777 = smul.addr %s776, 4
        %s778 = scalar_lea.vmem %s3, %s777
      $region44: #{unet_forward.2} parent=39 // pred_fallthru
        _
    $region40: #{unet_forward.2} parent=5 // pred_fallthru
      _
  $region6: #{unet_forward.2} parent=0 // loop_footer
    %s13 = sadd.s32 1, %s9
  $region7: #{unet_forward.2} parent=0 // loop_footer_branch
    %8 = sbr.rel target = $region3
  $region8: #{unet_forward.2} parent=0 // loop_exit
    _

// kernel: unet_forward.3
$region0: #{unet_forward.3}
  #allocation0 [shape = 'u32[]', space=smem, size = 0x4, offset = 0x4, fixed_abs, tag = 'smem constant byte address 0x4 - core index']
  #allocation1 [shape = 'u32[144,128]{1,0:T(1,128)}', space=vmem, size = 0x12000, scoped, tag = 'internal scratch']
  #allocation2 [shape = 'f32[2,7]{1,0:T(2,128)}', space=vmem, size = 0x400, scoped, tag = 'scratch operand']
  %s0 = inlined_call_operand.vmem [shape: bf16[2,16384], index: 0, kind: input, shape index: {}]
  %s1 = inlined_call_operand.vmem [shape: bf16[7,16384], index: 1, kind: input, shape index: {}]
  %s2 = inlined_call_operand.vmem [shape: f32[1,7], index: 2, kind: input, shape index: {}]
  %s3 = inlined_call_operand.hbm [shape: f32[2,7], index: 3, kind: output, shape index: {}]
  %s4 = sld [smem:[#allocation0]]
  $region30: #{unet_forward.3} parent=0
    _
  %s6 = ssub.s32 1, %s4
  %s7 = scalar_select 0, %s6, %s4
  $region1: #{unet_forward.3} parent=0
    #allocation3 [shape = 'u8[1024]{0}', space=vmem, size = 0x400, scoped, tag = 'output window, operand 0, single buffered']
    #allocation4 [shape = 's32[1]{0}', space=sflag, size = 0x4, scoped, tag = 'scoped memory for unet_forward.3']
    %8 = vsyncpa [#allocation4], 0
    // Predicated region
    $region2: #{unet_forward.3} parent=1 // pred_check
      _
    $region3: #{unet_forward.3} parent=1 // pred_check_branch
      %10 = sbr.rel (0) target = $region5
    $region4: #{unet_forward.3} parent=1 // pred_region
      _
    $region5: #{unet_forward.3} parent=1 // pred_fallthru
      _
    // Predicated region
    $region6: #{unet_forward.3} parent=1 // pred_check
      _
    $region7: #{unet_forward.3} parent=1 // pred_check_branch
      %12 = sbr.rel (0) target = $region9
    $region8: #{unet_forward.3} parent=1 // pred_region
      _
    $region9: #{unet_forward.3} parent=1 // pred_fallthru
      _
    // Predicated region
    $region10: #{unet_forward.3} parent=1 // pred_check
      _
    $region11: #{unet_forward.3} parent=1 // pred_check_branch
      %14 = sbr.rel (0) target = $region13
    $region12: #{unet_forward.3} parent=1 // pred_region
      _
    $region13: #{unet_forward.3} parent=1 // pred_fallthru
      _
    %p16 = scmp.eq.s32.totalorder 0, 0
    // Predicated region
    $region14: #{unet_forward.3} parent=1 // pred_check
      %p17 = pneg %p16
    $region15: #{unet_forward.3} parent=1 // pred_check_branch
      %19 = sbr.rel (%p17) target = $region17
    $region16: #{unet_forward.3} parent=1 // pred_region
      %vm20 = vcmask 50176
      %21 = vst.msk [vmem:[#allocation2] sm:$0x3] %vm20, 0.0
    $region17: #{unet_forward.3} parent=1 // pred_fallthru
      _
    %v22 = vld [vmem:[#allocation2] sm:$0x3]
    %v23 = vld [vmem:[%s0] sm:$0xff]
    %v24 = vld [vmem:[%s0 + $0x8] sm:$0xff]
    %v25 = vld [vmem:[%s0 + $0x10] sm:$0xff]
    %v26 = vld [vmem:[%s0 + $0x18] sm:$0xff]
    %v27 = vld [vmem:[%s0 + $0x20] sm:$0xff]
    %v28 = vld [vmem:[%s0 + $0x28] sm:$0xff]
    %v29 = vld [vmem:[%s0 + $0x30] sm:$0xff]
    %v30 = vld [vmem:[%s0 + $0x38] sm:$0xff]
    %v31 = vld [vmem:[%s0 + $0x40] sm:$0xff]
    %v32 = vld [vmem:[%s0 + $0x48] sm:$0xff]
    %v33 = vld [vmem:[%s0 + $0x50] sm:$0xff]
    %v34 = vld [vmem:[%s0 + $0x58] sm:$0xff]
    %v35 = vld [vmem:[%s0 + $0x60] sm:$0xff]
    %v36 = vld [vmem:[%s0 + $0x68] sm:$0xff]
    %v37 = vld [vmem:[%s0 + $0x70] sm:$0xff]
    %v38 = vld [vmem:[%s0 + $0x78] sm:$0xff]
    %v39 = vld [vmem:[%s1] sm:$0xff]
    %v40 = vld [vmem:[%s1 + $0x8] sm:$0xff]
    %v41 = vld [vmem:[%s1 + $0x10] sm:$0xff]
    %v42 = vld [vmem:[%s1 + $0x18] sm:$0xff]
    %v43 = vld [vmem:[%s1 + $0x20] sm:$0xff]
    %v44 = vld [vmem:[%s1 + $0x28] sm:$0xff]
    %v45 = vld [vmem:[%s1 + $0x30] sm:$0xff]
    %v46 = vld [vmem:[%s1 + $0x38] sm:$0xff]
    %v47 = vld [vmem:[%s1 + $0x40] sm:$0xff]
    %v48 = vld [vmem:[%s1 + $0x48] sm:$0xff]
    %v49 = vld [vmem:[%s1 + $0x50] sm:$0xff]
    %v50 = vld [vmem:[%s1 + $0x58] sm:$0xff]
    %v51 = vld [vmem:[%s1 + $0x60] sm:$0xff]
    %v52 = vld [vmem:[%s1 + $0x68] sm:$0xff]
    %v53 = vld [vmem:[%s1 + $0x70] sm:$0xff]
    %v54 = vld [vmem:[%s1 + $0x78] sm:$0xff]
    %v55 = vld [vmem:[%s1 + $0x80] sm:$0xff]
    %v56 = vld [vmem:[%s1 + $0x88] sm:$0xff]
    %v57 = vld [vmem:[%s1 + $0x90] sm:$0xff]
    %v58 = vld [vmem:[%s1 + $0x98] sm:$0xff]
    %v59 = vld [vmem:[%s1 + $0xa0] sm:$0xff]
    %v60 = vld [vmem:[%s1 + $0xa8] sm:$0xff]
    %v61 = vld [vmem:[%s1 + $0xb0] sm:$0xff]
    %v62 = vld [vmem:[%s1 + $0xb8] sm:$0xff]
    %v63 = vld [vmem:[%s1 + $0xc0] sm:$0xff]
    %v64 = vld [vmem:[%s1 + $0xc8] sm:$0xff]
    %v65 = vld [vmem:[%s1 + $0xd0] sm:$0xff]
    %v66 = vld [vmem:[%s1 + $0xd8] sm:$0xff]
    %v67 = vld [vmem:[%s1 + $0xe0] sm:$0xff]
    %v68 = vld [vmem:[%s1 + $0xe8] sm:$0xff]
    %v69 = vld [vmem:[%s1 + $0xf0] sm:$0xff]
    %v70 = vld [vmem:[%s1 + $0xf8] sm:$0xff]
    %v71 = vld [vmem:[%s1 + $0x100] sm:$0xff]
    %v72 = vld [vmem:[%s1 + $0x108] sm:$0xff]
    %v73 = vld [vmem:[%s1 + $0x110] sm:$0xff]
    %v74 = vld [vmem:[%s1 + $0x118] sm:$0xff]
    %v75 = vld [vmem:[%s1 + $0x120] sm:$0xff]
    %v76 = vld [vmem:[%s1 + $0x128] sm:$0xff]
    %v77 = vld [vmem:[%s1 + $0x130] sm:$0xff]
    %v78 = vld [vmem:[%s1 + $0x138] sm:$0xff]
    %v79 = vld [vmem:[%s1 + $0x140] sm:$0xff]
    %v80 = vld [vmem:[%s1 + $0x148] sm:$0xff]
    %v81 = vld [vmem:[%s1 + $0x150] sm:$0xff]
    %v82 = vld [vmem:[%s1 + $0x158] sm:$0xff]
    %v83 = vld [vmem:[%s1 + $0x160] sm:$0xff]
    %v84 = vld [vmem:[%s1 + $0x168] sm:$0xff]
    %v85 = vld [vmem:[%s1 + $0x170] sm:$0xff]
    %v86 = vld [vmem:[%s1 + $0x178] sm:$0xff]
    %v87 = vld [vmem:[%s1 + $0x180] sm:$0xff]
    %v88 = vld [vmem:[%s1 + $0x188] sm:$0xff]
    %v89 = vld [vmem:[%s1 + $0x190] sm:$0xff]
    %v90 = vld [vmem:[%s1 + $0x198] sm:$0xff]
    %v91 = vld [vmem:[%s1 + $0x1a0] sm:$0xff]
    %v92 = vld [vmem:[%s1 + $0x1a8] sm:$0xff]
    %v93 = vld [vmem:[%s1 + $0x1b0] sm:$0xff]
    %v94 = vld [vmem:[%s1 + $0x1b8] sm:$0xff]
    %v95 = vld [vmem:[%s1 + $0x1c0] sm:$0xff]
    %v96 = vld [vmem:[%s1 + $0x1c8] sm:$0xff]
    %v97 = vld [vmem:[%s1 + $0x1d0] sm:$0xff]
    %v98 = vld [vmem:[%s1 + $0x1d8] sm:$0xff]
    %v99 = vld [vmem:[%s1 + $0x1e0] sm:$0xff]
    %v100 = vld [vmem:[%s1 + $0x1e8] sm:$0xff]
    %v101 = vld [vmem:[%s1 + $0x1f0] sm:$0xff]
    %v102 = vld [vmem:[%s1 + $0x1f8] sm:$0xff]
    %v119 = vcombine.high %v23, %v23
    %v121 = vunpack.c.l.s4 1966171168
    %v122 = vunpack.c.0.s8 %v121
    %v123 = vlaneseq
    %v124 = vshrl.u32 %v123, 7
    %v125 = vsub.s32 %v122, %v124
    %v126 = vrot.slane %v23, %v125
    %v128 = vunpack.c.l.s4 1966171168
    %v129 = vunpack.c.0.s8 %v128
    %v130 = vlaneseq
    %v131 = vshrl.u32 %v130, 7
    %v132 = vsub.s32 %v129, %v131
    %v133 = vrot.slane %v119, %v132
    %v134 = vcombine.high %v126, %v126
    %v135 = vcombine.high %v133, %v133
    %v137 = vunpack.c.l.s4 1966171168
    %v138 = vunpack.c.0.s8 %v137
    %v139 = vlaneseq
    %v140 = vshrl.u32 %v139, 7
    %v141 = vsub.s32 %v138, %v140
    %v142 = vrot.slane %v126, %v141
    %v144 = vunpack.c.l.s4 1966171168
    %v145 = vunpack.c.0.s8 %v144
    %v146 = vlaneseq
    %v147 = vshrl.u32 %v146, 7
    %v148 = vsub.s32 %v145, %v147
    %v149 = vrot.slane %v133, %v148
    %v151 = vunpack.c.l.s4 1966171168
    %v152 = vunpack.c.0.s8 %v151
    %v153 = vlaneseq
    %v154 = vshrl.u32 %v153, 7
    %v155 = vsub.s32 %v152, %v154
    %v156 = vrot.slane %v134, %v155
    %v158 = vunpack.c.l.s4 1966171168
    %v159 = vunpack.c.0.s8 %v158
    %v160 = vlaneseq
    %v161 = vshrl.u32 %v160, 7
    %v162 = vsub.s32 %v159, %v161
    %v163 = vrot.slane %v135, %v162
    %v164 = vcombine.high %v142, %v142
    %v165 = vcombine.high %v149, %v149
    %v166 = vcombine.high %v156, %v156
    %v167 = vcombine.high %v163, %v163
    %v168 = vcombine.high %v24, %v24
    %v170 = vunpack.c.l.s4 1966171168
    %v171 = vunpack.c.0.s8 %v170
    %v172 = vlaneseq
    %v173 = vshrl.u32 %v172, 7
    %v174 = vsub.s32 %v171, %v173
    %v175 = vrot.slane %v24, %v174
    %v177 = vunpack.c.l.s4 1966171168
    %v178 = vunpack.c.0.s8 %v177
    %v179 = vlaneseq
    %v180 = vshrl.u32 %v179, 7
    %v181 = vsub.s32 %v178, %v180
    %v182 = vrot.slane %v168, %v181
    %v183 = vcombine.high %v175, %v175
    %v184 = vcombine.high %v182, %v182
    %v186 = vunpack.c.l.s4 1966171168
    %v187 = vunpack.c.0.s8 %v186
    %v188 = vlaneseq
    %v189 = vshrl.u32 %v188, 7
    %v190 = vsub.s32 %v187, %v189
    %v191 = vrot.slane %v175, %v190
    %v193 = vunpack.c.l.s4 1966171168
    %v194 = vunpack.c.0.s8 %v193
    %v195 = vlaneseq
    %v196 = vshrl.u32 %v195, 7
    %v197 = vsub.s32 %v194, %v196
    %v198 = vrot.slane %v182, %v197
    %v200 = vunpack.c.l.s4 1966171168
    %v201 = vunpack.c.0.s8 %v200
    %v202 = vlaneseq
    %v203 = vshrl.u32 %v202, 7
    %v204 = vsub.s32 %v201, %v203
    %v205 = vrot.slane %v183, %v204
    %v207 = vunpack.c.l.s4 1966171168
    %v208 = vunpack.c.0.s8 %v207
    %v209 = vlaneseq
    %v210 = vshrl.u32 %v209, 7
    %v211 = vsub.s32 %v208, %v210
    %v212 = vrot.slane %v184, %v211
    %v213 = vcombine.high %v191, %v191
    %v214 = vcombine.high %v198, %v198
    %v215 = vcombine.high %v205, %v205
    %v216 = vcombine.high %v212, %v212
    %v217 = vcombine.high %v25, %v25
    %v219 = vunpack.c.l.s4 1966171168
    %v220 = vunpack.c.0.s8 %v219
    %v221 = vlaneseq
    %v222 = vshrl.u32 %v221, 7
    %v223 = vsub.s32 %v220, %v222
    %v224 = vrot.slane %v25, %v223
    %v226 = vunpack.c.l.s4 1966171168
    %v227 = vunpack.c.0.s8 %v226
    %v228 = vlaneseq
    %v229 = vshrl.u32 %v228, 7
    %v230 = vsub.s32 %v227, %v229
    %v231 = vrot.slane %v217, %v230
    %v232 = vcombine.high %v224, %v224
    %v233 = vcombine.high %v231, %v231
    %v235 = vunpack.c.l.s4 1966171168
    %v236 = vunpack.c.0.s8 %v235
    %v237 = vlaneseq
    %v238 = vshrl.u32 %v237, 7
    %v239 = vsub.s32 %v236, %v238
    %v240 = vrot.slane %v224, %v239
    %v242 = vunpack.c.l.s4 1966171168
    %v243 = vunpack.c.0.s8 %v242
    %v244 = vlaneseq
    %v245 = vshrl.u32 %v244, 7
    %v246 = vsub.s32 %v243, %v245
    %v247 = vrot.slane %v231, %v246
    %v249 = vunpack.c.l.s4 1966171168
    %v250 = vunpack.c.0.s8 %v249
    %v251 = vlaneseq
    %v252 = vshrl.u32 %v251, 7
    %v253 = vsub.s32 %v250, %v252
    %v254 = vrot.slane %v232, %v253
    %v256 = vunpack.c.l.s4 1966171168
    %v257 = vunpack.c.0.s8 %v256
    %v258 = vlaneseq
    %v259 = vshrl.u32 %v258, 7
    %v260 = vsub.s32 %v257, %v259
    %v261 = vrot.slane %v233, %v260
    %v262 = vcombine.high %v240, %v240
    %v263 = vcombine.high %v247, %v247
    %v264 = vcombine.high %v254, %v254
    %v265 = vcombine.high %v261, %v261
    %v266 = vcombine.high %v26, %v26
    %v268 = vunpack.c.l.s4 1966171168
    %v269 = vunpack.c.0.s8 %v268
    %v270 = vlaneseq
    %v271 = vshrl.u32 %v270, 7
    %v272 = vsub.s32 %v269, %v271
    %v273 = vrot.slane %v26, %v272
    %v275 = vunpack.c.l.s4 1966171168
    %v276 = vunpack.c.0.s8 %v275
    %v277 = vlaneseq
    %v278 = vshrl.u32 %v277, 7
    %v279 = vsub.s32 %v276, %v278
    %v280 = vrot.slane %v266, %v279
    %v281 = vcombine.high %v273, %v273
    %v282 = vcombine.high %v280, %v280
    %v284 = vunpack.c.l.s4 1966171168
    %v285 = vunpack.c.0.s8 %v284
    %v286 = vlaneseq
    %v287 = vshrl.u32 %v286, 7
    %v288 = vsub.s32 %v285, %v287
    %v289 = vrot.slane %v273, %v288
    %v291 = vunpack.c.l.s4 1966171168
    %v292 = vunpack.c.0.s8 %v291
    %v293 = vlaneseq
    %v294 = vshrl.u32 %v293, 7
    %v295 = vsub.s32 %v292, %v294
    %v296 = vrot.slane %v280, %v295
    %v298 = vunpack.c.l.s4 1966171168
    %v299 = vunpack.c.0.s8 %v298
    %v300 = vlaneseq
    %v301 = vshrl.u32 %v300, 7
    %v302 = vsub.s32 %v299, %v301
    %v303 = vrot.slane %v281, %v302
    %v305 = vunpack.c.l.s4 1966171168
    %v306 = vunpack.c.0.s8 %v305
    %v307 = vlaneseq
    %v308 = vshrl.u32 %v307, 7
    %v309 = vsub.s32 %v306, %v308
    %v310 = vrot.slane %v282, %v309
    %v311 = vcombine.high %v289, %v289
    %v312 = vcombine.high %v296, %v296
    %v313 = vcombine.high %v303, %v303
    %v314 = vcombine.high %v310, %v310
    %v315 = vcombine.high %v27, %v27
    %v317 = vunpack.c.l.s4 1966171168
    %v318 = vunpack.c.0.s8 %v317
    %v319 = vlaneseq
    %v320 = vshrl.u32 %v319, 7
    %v321 = vsub.s32 %v318, %v320
    %v322 = vrot.slane %v27, %v321
    %v324 = vunpack.c.l.s4 1966171168
    %v325 = vunpack.c.0.s8 %v324
    %v326 = vlaneseq
    %v327 = vshrl.u32 %v326, 7
    %v328 = vsub.s32 %v325, %v327
    %v329 = vrot.slane %v315, %v328
    %v330 = vcombine.high %v322, %v322
    %v331 = vcombine.high %v329, %v329
    %v333 = vunpack.c.l.s4 1966171168
    %v334 = vunpack.c.0.s8 %v333
    %v335 = vlaneseq
    %v336 = vshrl.u32 %v335, 7
    %v337 = vsub.s32 %v334, %v336
    %v338 = vrot.slane %v322, %v337
    %v340 = vunpack.c.l.s4 1966171168
    %v341 = vunpack.c.0.s8 %v340
    %v342 = vlaneseq
    %v343 = vshrl.u32 %v342, 7
    %v344 = vsub.s32 %v341, %v343
    %v345 = vrot.slane %v329, %v344
    %v347 = vunpack.c.l.s4 1966171168
    %v348 = vunpack.c.0.s8 %v347
    %v349 = vlaneseq
    %v350 = vshrl.u32 %v349, 7
    %v351 = vsub.s32 %v348, %v350
    %v352 = vrot.slane %v330, %v351
    %v354 = vunpack.c.l.s4 1966171168
    %v355 = vunpack.c.0.s8 %v354
    %v356 = vlaneseq
    %v357 = vshrl.u32 %v356, 7
    %v358 = vsub.s32 %v355, %v357
    %v359 = vrot.slane %v331, %v358
    %v360 = vcombine.high %v338, %v338
    %v361 = vcombine.high %v345, %v345
    %v362 = vcombine.high %v352, %v352
    %v363 = vcombine.high %v359, %v359
    %v364 = vcombine.high %v28, %v28
    %v366 = vunpack.c.l.s4 1966171168
    %v367 = vunpack.c.0.s8 %v366
    %v368 = vlaneseq
    %v369 = vshrl.u32 %v368, 7
    %v370 = vsub.s32 %v367, %v369
    %v371 = vrot.slane %v28, %v370
    %v373 = vunpack.c.l.s4 1966171168
    %v374 = vunpack.c.0.s8 %v373
    %v375 = vlaneseq
    %v376 = vshrl.u32 %v375, 7
    %v377 = vsub.s32 %v374, %v376
    %v378 = vrot.slane %v364, %v377
    %v379 = vcombine.high %v371, %v371
    %v380 = vcombine.high %v378, %v378
    %v382 = vunpack.c.l.s4 1966171168
    %v383 = vunpack.c.0.s8 %v382
    %v384 = vlaneseq
    %v385 = vshrl.u32 %v384, 7
    %v386 = vsub.s32 %v383, %v385
    %v387 = vrot.slane %v371, %v386
    %v389 = vunpack.c.l.s4 1966171168
    %v390 = vunpack.c.0.s8 %v389
    %v391 = vlaneseq
    %v392 = vshrl.u32 %v391, 7
    %v393 = vsub.s32 %v390, %v392
    %v394 = vrot.slane %v378, %v393
    %v396 = vunpack.c.l.s4 1966171168
    %v397 = vunpack.c.0.s8 %v396
    %v398 = vlaneseq
    %v399 = vshrl.u32 %v398, 7
    %v400 = vsub.s32 %v397, %v399
    %v401 = vrot.slane %v379, %v400
    %v403 = vunpack.c.l.s4 1966171168
    %v404 = vunpack.c.0.s8 %v403
    %v405 = vlaneseq
    %v406 = vshrl.u32 %v405, 7
    %v407 = vsub.s32 %v404, %v406
    %v408 = vrot.slane %v380, %v407
    %v409 = vcombine.high %v387, %v387
    %v410 = vcombine.high %v394, %v394
    %v411 = vcombine.high %v401, %v401
    %v412 = vcombine.high %v408, %v408
    %v413 = vcombine.high %v29, %v29
    %v415 = vunpack.c.l.s4 1966171168
    %v416 = vunpack.c.0.s8 %v415
    %v417 = vlaneseq
    %v418 = vshrl.u32 %v417, 7
    %v419 = vsub.s32 %v416, %v418
    %v420 = vrot.slane %v29, %v419
    %v422 = vunpack.c.l.s4 1966171168
    %v423 = vunpack.c.0.s8 %v422
    %v424 = vlaneseq
    %v425 = vshrl.u32 %v424, 7
    %v426 = vsub.s32 %v423, %v425
    %v427 = vrot.slane %v413, %v426
    %v428 = vcombine.high %v420, %v420
    %v429 = vcombine.high %v427, %v427
    %v431 = vunpack.c.l.s4 1966171168
    %v432 = vunpack.c.0.s8 %v431
    %v433 = vlaneseq
    %v434 = vshrl.u32 %v433, 7
    %v435 = vsub.s32 %v432, %v434
    %v436 = vrot.slane %v420, %v435
    %v438 = vunpack.c.l.s4 1966171168
    %v439 = vunpack.c.0.s8 %v438
    %v440 = vlaneseq
    %v441 = vshrl.u32 %v440, 7
    %v442 = vsub.s32 %v439, %v441
    %v443 = vrot.slane %v427, %v442
    %v445 = vunpack.c.l.s4 1966171168
    %v446 = vunpack.c.0.s8 %v445
    %v447 = vlaneseq
    %v448 = vshrl.u32 %v447, 7
    %v449 = vsub.s32 %v446, %v448
    %v450 = vrot.slane %v428, %v449
    %v452 = vunpack.c.l.s4 1966171168
    %v453 = vunpack.c.0.s8 %v452
    %v454 = vlaneseq
    %v455 = vshrl.u32 %v454, 7
    %v456 = vsub.s32 %v453, %v455
    %v457 = vrot.slane %v429, %v456
    %v458 = vcombine.high %v436, %v436
    %v459 = vcombine.high %v443, %v443
    %v460 = vcombine.high %v450, %v450
    %v461 = vcombine.high %v457, %v457
    %v462 = vcombine.high %v30, %v30
    %v464 = vunpack.c.l.s4 1966171168
    %v465 = vunpack.c.0.s8 %v464
    %v466 = vlaneseq
    %v467 = vshrl.u32 %v466, 7
    %v468 = vsub.s32 %v465, %v467
    %v469 = vrot.slane %v30, %v468
    %v471 = vunpack.c.l.s4 1966171168
    %v472 = vunpack.c.0.s8 %v471
    %v473 = vlaneseq
    %v474 = vshrl.u32 %v473, 7
    %v475 = vsub.s32 %v472, %v474
    %v476 = vrot.slane %v462, %v475
    %v477 = vcombine.high %v469, %v469
    %v478 = vcombine.high %v476, %v476
    %v480 = vunpack.c.l.s4 1966171168
    %v481 = vunpack.c.0.s8 %v480
    %v482 = vlaneseq
    %v483 = vshrl.u32 %v482, 7
    %v484 = vsub.s32 %v481, %v483
    %v485 = vrot.slane %v469, %v484
    %v487 = vunpack.c.l.s4 1966171168
    %v488 = vunpack.c.0.s8 %v487
    %v489 = vlaneseq
    %v490 = vshrl.u32 %v489, 7
    %v491 = vsub.s32 %v488, %v490
    %v492 = vrot.slane %v476, %v491
    %v494 = vunpack.c.l.s4 1966171168
    %v495 = vunpack.c.0.s8 %v494
    %v496 = vlaneseq
    %v497 = vshrl.u32 %v496, 7
    %v498 = vsub.s32 %v495, %v497
    %v499 = vrot.slane %v477, %v498
    %v501 = vunpack.c.l.s4 1966171168
    %v502 = vunpack.c.0.s8 %v501
    %v503 = vlaneseq
    %v504 = vshrl.u32 %v503, 7
    %v505 = vsub.s32 %v502, %v504
    %v506 = vrot.slane %v478, %v505
    %v507 = vcombine.high %v485, %v485
    %v508 = vcombine.high %v492, %v492
    %v509 = vcombine.high %v499, %v499
    %v510 = vcombine.high %v506, %v506
    %v511 = vcombine.high %v31, %v31
    %v513 = vunpack.c.l.s4 1966171168
    %v514 = vunpack.c.0.s8 %v513
    %v515 = vlaneseq
    %v516 = vshrl.u32 %v515, 7
    %v517 = vsub.s32 %v514, %v516
    %v518 = vrot.slane %v31, %v517
    %v520 = vunpack.c.l.s4 1966171168
    %v521 = vunpack.c.0.s8 %v520
    %v522 = vlaneseq
    %v523 = vshrl.u32 %v522, 7
    %v524 = vsub.s32 %v521, %v523
    %v525 = vrot.slane %v511, %v524
    %v526 = vcombine.high %v518, %v518
    %v527 = vcombine.high %v525, %v525
    %v529 = vunpack.c.l.s4 1966171168
    %v530 = vunpack.c.0.s8 %v529
    %v531 = vlaneseq
    %v532 = vshrl.u32 %v531, 7
    %v533 = vsub.s32 %v530, %v532
    %v534 = vrot.slane %v518, %v533
    %v536 = vunpack.c.l.s4 1966171168
    %v537 = vunpack.c.0.s8 %v536
    %v538 = vlaneseq
    %v539 = vshrl.u32 %v538, 7
    %v540 = vsub.s32 %v537, %v539
    %v541 = vrot.slane %v525, %v540
    %v543 = vunpack.c.l.s4 1966171168
    %v544 = vunpack.c.0.s8 %v543
    %v545 = vlaneseq
    %v546 = vshrl.u32 %v545, 7
    %v547 = vsub.s32 %v544, %v546
    %v548 = vrot.slane %v526, %v547
    %v550 = vunpack.c.l.s4 1966171168
    %v551 = vunpack.c.0.s8 %v550
    %v552 = vlaneseq
    %v553 = vshrl.u32 %v552, 7
    %v554 = vsub.s32 %v551, %v553
    %v555 = vrot.slane %v527, %v554
    %v556 = vcombine.high %v534, %v534
    %v557 = vcombine.high %v541, %v541
    %v558 = vcombine.high %v548, %v548
    %v559 = vcombine.high %v555, %v555
    %v560 = vcombine.high %v32, %v32
    %v562 = vunpack.c.l.s4 1966171168
    %v563 = vunpack.c.0.s8 %v562
    %v564 = vlaneseq
    %v565 = vshrl.u32 %v564, 7
    %v566 = vsub.s32 %v563, %v565
    %v567 = vrot.slane %v32, %v566
    %v569 = vunpack.c.l.s4 1966171168
    %v570 = vunpack.c.0.s8 %v569
    %v571 = vlaneseq
    %v572 = vshrl.u32 %v571, 7
    %v573 = vsub.s32 %v570, %v572
    %v574 = vrot.slane %v560, %v573
    %v575 = vcombine.high %v567, %v567
    %v576 = vcombine.high %v574, %v574
    %v578 = vunpack.c.l.s4 1966171168
    %v579 = vunpack.c.0.s8 %v578
    %v580 = vlaneseq
    %v581 = vshrl.u32 %v580, 7
    %v582 = vsub.s32 %v579, %v581
    %v583 = vrot.slane %v567, %v582
    %v585 = vunpack.c.l.s4 1966171168
    %v586 = vunpack.c.0.s8 %v585
    %v587 = vlaneseq
    %v588 = vshrl.u32 %v587, 7
    %v589 = vsub.s32 %v586, %v588
    %v590 = vrot.slane %v574, %v589
    %v592 = vunpack.c.l.s4 1966171168
    %v593 = vunpack.c.0.s8 %v592
    %v594 = vlaneseq
    %v595 = vshrl.u32 %v594, 7
    %v596 = vsub.s32 %v593, %v595
    %v597 = vrot.slane %v575, %v596
    %v599 = vunpack.c.l.s4 1966171168
    %v600 = vunpack.c.0.s8 %v599
    %v601 = vlaneseq
    %v602 = vshrl.u32 %v601, 7
    %v603 = vsub.s32 %v600, %v602
    %v604 = vrot.slane %v576, %v603
    %v605 = vcombine.high %v583, %v583
    %v606 = vcombine.high %v590, %v590
    %v607 = vcombine.high %v597, %v597
    %v608 = vcombine.high %v604, %v604
    %v609 = vcombine.high %v33, %v33
    %v611 = vunpack.c.l.s4 1966171168
    %v612 = vunpack.c.0.s8 %v611
    %v613 = vlaneseq
    %v614 = vshrl.u32 %v613, 7
    %v615 = vsub.s32 %v612, %v614
    %v616 = vrot.slane %v33, %v615
    %v618 = vunpack.c.l.s4 1966171168
    %v619 = vunpack.c.0.s8 %v618
    %v620 = vlaneseq
    %v621 = vshrl.u32 %v620, 7
    %v622 = vsub.s32 %v619, %v621
    %v623 = vrot.slane %v609, %v622
    %v624 = vcombine.high %v616, %v616
    %v625 = vcombine.high %v623, %v623
    %v627 = vunpack.c.l.s4 1966171168
    %v628 = vunpack.c.0.s8 %v627
    %v629 = vlaneseq
    %v630 = vshrl.u32 %v629, 7
    %v631 = vsub.s32 %v628, %v630
    %v632 = vrot.slane %v616, %v631
    %v634 = vunpack.c.l.s4 1966171168
    %v635 = vunpack.c.0.s8 %v634
    %v636 = vlaneseq
    %v637 = vshrl.u32 %v636, 7
    %v638 = vsub.s32 %v635, %v637
    %v639 = vrot.slane %v623, %v638
    %v641 = vunpack.c.l.s4 1966171168
    %v642 = vunpack.c.0.s8 %v641
    %v643 = vlaneseq
    %v644 = vshrl.u32 %v643, 7
    %v645 = vsub.s32 %v642, %v644
    %v646 = vrot.slane %v624, %v645
    %v648 = vunpack.c.l.s4 1966171168
    %v649 = vunpack.c.0.s8 %v648
    %v650 = vlaneseq
    %v651 = vshrl.u32 %v650, 7
    %v652 = vsub.s32 %v649, %v651
    %v653 = vrot.slane %v625, %v652
    %v654 = vcombine.high %v632, %v632
    %v655 = vcombine.high %v639, %v639
    %v656 = vcombine.high %v646, %v646
    %v657 = vcombine.high %v653, %v653
    %v658 = vcombine.high %v34, %v34
    %v660 = vunpack.c.l.s4 1966171168
    %v661 = vunpack.c.0.s8 %v660
    %v662 = vlaneseq
    %v663 = vshrl.u32 %v662, 7
    %v664 = vsub.s32 %v661, %v663
    %v665 = vrot.slane %v34, %v664
    %v667 = vunpack.c.l.s4 1966171168
    %v668 = vunpack.c.0.s8 %v667
    %v669 = vlaneseq
    %v670 = vshrl.u32 %v669, 7
    %v671 = vsub.s32 %v668, %v670
    %v672 = vrot.slane %v658, %v671
    %v673 = vcombine.high %v665, %v665
    %v674 = vcombine.high %v672, %v672
    %v676 = vunpack.c.l.s4 1966171168
    %v677 = vunpack.c.0.s8 %v676
    %v678 = vlaneseq
    %v679 = vshrl.u32 %v678, 7
    %v680 = vsub.s32 %v677, %v679
    %v681 = vrot.slane %v665, %v680
    %v683 = vunpack.c.l.s4 1966171168
    %v684 = vunpack.c.0.s8 %v683
    %v685 = vlaneseq
    %v686 = vshrl.u32 %v685, 7
    %v687 = vsub.s32 %v684, %v686
    %v688 = vrot.slane %v672, %v687
    %v690 = vunpack.c.l.s4 1966171168
    %v691 = vunpack.c.0.s8 %v690
    %v692 = vlaneseq
    %v693 = vshrl.u32 %v692, 7
    %v694 = vsub.s32 %v691, %v693
    %v695 = vrot.slane %v673, %v694
    %v697 = vunpack.c.l.s4 1966171168
    %v698 = vunpack.c.0.s8 %v697
    %v699 = vlaneseq
    %v700 = vshrl.u32 %v699, 7
    %v701 = vsub.s32 %v698, %v700
    %v702 = vrot.slane %v674, %v701
    %v703 = vcombine.high %v681, %v681
    %v704 = vcombine.high %v688, %v688
    %v705 = vcombine.high %v695, %v695
    %v706 = vcombine.high %v702, %v702
    %v707 = vcombine.high %v35, %v35
    %v709 = vunpack.c.l.s4 1966171168
    %v710 = vunpack.c.0.s8 %v709
    %v711 = vlaneseq
    %v712 = vshrl.u32 %v711, 7
    %v713 = vsub.s32 %v710, %v712
    %v714 = vrot.slane %v35, %v713
    %v716 = vunpack.c.l.s4 1966171168
    %v717 = vunpack.c.0.s8 %v716
    %v718 = vlaneseq
    %v719 = vshrl.u32 %v718, 7
    %v720 = vsub.s32 %v717, %v719
    %v721 = vrot.slane %v707, %v720
    %v722 = vcombine.high %v714, %v714
    %v723 = vcombine.high %v721, %v721
    %v725 = vunpack.c.l.s4 1966171168
    %v726 = vunpack.c.0.s8 %v725
    %v727 = vlaneseq
    %v728 = vshrl.u32 %v727, 7
    %v729 = vsub.s32 %v726, %v728
    %v730 = vrot.slane %v714, %v729
    %v732 = vunpack.c.l.s4 1966171168
    %v733 = vunpack.c.0.s8 %v732
    %v734 = vlaneseq
    %v735 = vshrl.u32 %v734, 7
    %v736 = vsub.s32 %v733, %v735
    %v737 = vrot.slane %v721, %v736
    %v739 = vunpack.c.l.s4 1966171168
    %v740 = vunpack.c.0.s8 %v739
    %v741 = vlaneseq
    %v742 = vshrl.u32 %v741, 7
    %v743 = vsub.s32 %v740, %v742
    %v744 = vrot.slane %v722, %v743
    %v746 = vunpack.c.l.s4 1966171168
    %v747 = vunpack.c.0.s8 %v746
    %v748 = vlaneseq
    %v749 = vshrl.u32 %v748, 7
    %v750 = vsub.s32 %v747, %v749
    %v751 = vrot.slane %v723, %v750
    %v752 = vcombine.high %v730, %v730
    %v753 = vcombine.high %v737, %v737
    %v754 = vcombine.high %v744, %v744
    %v755 = vcombine.high %v751, %v751
    %v756 = vcombine.high %v36, %v36
    %v758 = vunpack.c.l.s4 1966171168
    %v759 = vunpack.c.0.s8 %v758
    %v760 = vlaneseq
    %v761 = vshrl.u32 %v760, 7
    %v762 = vsub.s32 %v759, %v761
    %v763 = vrot.slane %v36, %v762
    %v765 = vunpack.c.l.s4 1966171168
    %v766 = vunpack.c.0.s8 %v765
    %v767 = vlaneseq
    %v768 = vshrl.u32 %v767, 7
    %v769 = vsub.s32 %v766, %v768
    %v770 = vrot.slane %v756, %v769
    %v771 = vcombine.high %v763, %v763
    %v772 = vcombine.high %v770, %v770
    %v774 = vunpack.c.l.s4 1966171168
    %v775 = vunpack.c.0.s8 %v774
    %v776 = vlaneseq
    %v777 = vshrl.u32 %v776, 7
    %v778 = vsub.s32 %v775, %v777
    %v779 = vrot.slane %v763, %v778
    %v781 = vunpack.c.l.s4 1966171168
    %v782 = vunpack.c.0.s8 %v781
    %v783 = vlaneseq
    %v784 = vshrl.u32 %v783, 7
    %v785 = vsub.s32 %v782, %v784
    %v786 = vrot.slane %v770, %v785
    %v788 = vunpack.c.l.s4 1966171168
    %v789 = vunpack.c.0.s8 %v788
    %v790 = vlaneseq
    %v791 = vshrl.u32 %v790, 7
    %v792 = vsub.s32 %v789, %v791
    %v793 = vrot.slane %v771, %v792
    %v795 = vunpack.c.l.s4 1966171168
    %v796 = vunpack.c.0.s8 %v795
    %v797 = vlaneseq
    %v798 = vshrl.u32 %v797, 7
    %v799 = vsub.s32 %v796, %v798
    %v800 = vrot.slane %v772, %v799
    %v801 = vcombine.high %v779, %v779
    %v802 = vcombine.high %v786, %v786
    %v803 = vcombine.high %v793, %v793
    %v804 = vcombine.high %v800, %v800
    %v805 = vcombine.high %v37, %v37
    %v807 = vunpack.c.l.s4 1966171168
    %v808 = vunpack.c.0.s8 %v807
    %v809 = vlaneseq
    %v810 = vshrl.u32 %v809, 7
    %v811 = vsub.s32 %v808, %v810
    %v812 = vrot.slane %v37, %v811
    %v814 = vunpack.c.l.s4 1966171168
    %v815 = vunpack.c.0.s8 %v814
    %v816 = vlaneseq
    %v817 = vshrl.u32 %v816, 7
    %v818 = vsub.s32 %v815, %v817
    %v819 = vrot.slane %v805, %v818
    %v820 = vcombine.high %v812, %v812
    %v821 = vcombine.high %v819, %v819
    %v823 = vunpack.c.l.s4 1966171168
    %v824 = vunpack.c.0.s8 %v823
    %v825 = vlaneseq
    %v826 = vshrl.u32 %v825, 7
    %v827 = vsub.s32 %v824, %v826
    %v828 = vrot.slane %v812, %v827
    %v830 = vunpack.c.l.s4 1966171168
    %v831 = vunpack.c.0.s8 %v830
    %v832 = vlaneseq
    %v833 = vshrl.u32 %v832, 7
    %v834 = vsub.s32 %v831, %v833
    %v835 = vrot.slane %v819, %v834
    %v837 = vunpack.c.l.s4 1966171168
    %v838 = vunpack.c.0.s8 %v837
    %v839 = vlaneseq
    %v840 = vshrl.u32 %v839, 7
    %v841 = vsub.s32 %v838, %v840
    %v842 = vrot.slane %v820, %v841
    %v844 = vunpack.c.l.s4 1966171168
    %v845 = vunpack.c.0.s8 %v844
    %v846 = vlaneseq
    %v847 = vshrl.u32 %v846, 7
    %v848 = vsub.s32 %v845, %v847
    %v849 = vrot.slane %v821, %v848
    %v850 = vcombine.high %v828, %v828
    %v851 = vcombine.high %v835, %v835
    %v852 = vcombine.high %v842, %v842
    %v853 = vcombine.high %v849, %v849
    %v854 = vcombine.high %v38, %v38
    %v856 = vunpack.c.l.s4 1966171168
    %v857 = vunpack.c.0.s8 %v856
    %v858 = vlaneseq
    %v859 = vshrl.u32 %v858, 7
    %v860 = vsub.s32 %v857, %v859
    %v861 = vrot.slane %v38, %v860
    %v863 = vunpack.c.l.s4 1966171168
    %v864 = vunpack.c.0.s8 %v863
    %v865 = vlaneseq
    %v866 = vshrl.u32 %v865, 7
    %v867 = vsub.s32 %v864, %v866
    %v868 = vrot.slane %v854, %v867
    %v869 = vcombine.high %v861, %v861
    %v870 = vcombine.high %v868, %v868
    %v872 = vunpack.c.l.s4 1966171168
    %v873 = vunpack.c.0.s8 %v872
    %v874 = vlaneseq
    %v875 = vshrl.u32 %v874, 7
    %v876 = vsub.s32 %v873, %v875
    %v877 = vrot.slane %v861, %v876
    %v879 = vunpack.c.l.s4 1966171168
    %v880 = vunpack.c.0.s8 %v879
    %v881 = vlaneseq
    %v882 = vshrl.u32 %v881, 7
    %v883 = vsub.s32 %v880, %v882
    %v884 = vrot.slane %v868, %v883
    %v886 = vunpack.c.l.s4 1966171168
    %v887 = vunpack.c.0.s8 %v886
    %v888 = vlaneseq
    %v889 = vshrl.u32 %v888, 7
    %v890 = vsub.s32 %v887, %v889
    %v891 = vrot.slane %v869, %v890
    %v893 = vunpack.c.l.s4 1966171168
    %v894 = vunpack.c.0.s8 %v893
    %v895 = vlaneseq
    %v896 = vshrl.u32 %v895, 7
    %v897 = vsub.s32 %v894, %v896
    %v898 = vrot.slane %v870, %v897
    %v899 = vcombine.high %v877, %v877
    %v900 = vcombine.high %v884, %v884
    %v901 = vcombine.high %v891, %v891
    %v902 = vcombine.high %v898, %v898
    %v1095 = vunpack.c.l.b16 %v39
    %v1096 = vunpack.c.h.b16 %v39
    %v1097 = vunpack.c.l.b16 %v40
    %v1098 = vunpack.c.h.b16 %v40
    %v1099 = vunpack.c.l.b16 %v41
    %v1100 = vunpack.c.h.b16 %v41
    %v1101 = vunpack.c.l.b16 %v42
    %v1102 = vunpack.c.h.b16 %v42
    %v1103 = vunpack.c.l.b16 %v43
    %v1104 = vunpack.c.h.b16 %v43
    %v1105 = vunpack.c.l.b16 %v44
    %v1106 = vunpack.c.h.b16 %v44
    %v1107 = vunpack.c.l.b16 %v45
    %v1108 = vunpack.c.h.b16 %v45
    %v1109 = vunpack.c.l.b16 %v46
    %v1110 = vunpack.c.h.b16 %v46
    %v1111 = vunpack.c.l.b16 %v47
    %v1112 = vunpack.c.h.b16 %v47
    %v1113 = vunpack.c.l.b16 %v48
    %v1114 = vunpack.c.h.b16 %v48
    %v1115 = vunpack.c.l.b16 %v49
    %v1116 = vunpack.c.h.b16 %v49
    %v1117 = vunpack.c.l.b16 %v50
    %v1118 = vunpack.c.h.b16 %v50
    %v1119 = vunpack.c.l.b16 %v51
    %v1120 = vunpack.c.h.b16 %v51
    %v1121 = vunpack.c.l.b16 %v52
    %v1122 = vunpack.c.h.b16 %v52
    %v1123 = vunpack.c.l.b16 %v53
    %v1124 = vunpack.c.h.b16 %v53
    %v1125 = vunpack.c.l.b16 %v54
    %v1126 = vunpack.c.h.b16 %v54
    %v1127 = vunpack.c.l.b16 %v55
    %v1128 = vunpack.c.h.b16 %v55
    %v1129 = vunpack.c.l.b16 %v56
    %v1130 = vunpack.c.h.b16 %v56
    %v1131 = vunpack.c.l.b16 %v57
    %v1132 = vunpack.c.h.b16 %v57
    %v1133 = vunpack.c.l.b16 %v58
    %v1134 = vunpack.c.h.b16 %v58
    %v1135 = vunpack.c.l.b16 %v59
    %v1136 = vunpack.c.h.b16 %v59
    %v1137 = vunpack.c.l.b16 %v60
    %v1138 = vunpack.c.h.b16 %v60
    %v1139 = vunpack.c.l.b16 %v61
    %v1140 = vunpack.c.h.b16 %v61
    %v1141 = vunpack.c.l.b16 %v62
    %v1142 = vunpack.c.h.b16 %v62
    %v1143 = vunpack.c.l.b16 %v63
    %v1144 = vunpack.c.h.b16 %v63
    %v1145 = vunpack.c.l.b16 %v64
    %v1146 = vunpack.c.h.b16 %v64
    %v1147 = vunpack.c.l.b16 %v65
    %v1148 = vunpack.c.h.b16 %v65
    %v1149 = vunpack.c.l.b16 %v66
    %v1150 = vunpack.c.h.b16 %v66
    %v1151 = vunpack.c.l.b16 %v67
    %v1152 = vunpack.c.h.b16 %v67
    %v1153 = vunpack.c.l.b16 %v68
    %v1154 = vunpack.c.h.b16 %v68
    %v1155 = vunpack.c.l.b16 %v69
    %v1156 = vunpack.c.h.b16 %v69
    %v1157 = vunpack.c.l.b16 %v70
    %v1158 = vunpack.c.h.b16 %v70
    %v1159 = vunpack.c.l.b16 %v71
    %v1160 = vunpack.c.h.b16 %v71
    %v1161 = vunpack.c.l.b16 %v72
    %v1162 = vunpack.c.h.b16 %v72
    %v1163 = vunpack.c.l.b16 %v73
    %v1164 = vunpack.c.h.b16 %v73
    %v1165 = vunpack.c.l.b16 %v74
    %v1166 = vunpack.c.h.b16 %v74
    %v1167 = vunpack.c.l.b16 %v75
    %v1168 = vunpack.c.h.b16 %v75
    %v1169 = vunpack.c.l.b16 %v76
    %v1170 = vunpack.c.h.b16 %v76
    %v1171 = vunpack.c.l.b16 %v77
    %v1172 = vunpack.c.h.b16 %v77
    %v1173 = vunpack.c.l.b16 %v78
    %v1174 = vunpack.c.h.b16 %v78
    %v1175 = vunpack.c.l.b16 %v79
    %v1176 = vunpack.c.h.b16 %v79
    %v1177 = vunpack.c.l.b16 %v80
    %v1178 = vunpack.c.h.b16 %v80
    %v1179 = vunpack.c.l.b16 %v81
    %v1180 = vunpack.c.h.b16 %v81
    %v1181 = vunpack.c.l.b16 %v82
    %v1182 = vunpack.c.h.b16 %v82
    %v1183 = vunpack.c.l.b16 %v83
    %v1184 = vunpack.c.h.b16 %v83
    %v1185 = vunpack.c.l.b16 %v84
    %v1186 = vunpack.c.h.b16 %v84
    %v1187 = vunpack.c.l.b16 %v85
    %v1188 = vunpack.c.h.b16 %v85
    %v1189 = vunpack.c.l.b16 %v86
    %v1190 = vunpack.c.h.b16 %v86
    %v1191 = vunpack.c.l.b16 %v87
    %v1192 = vunpack.c.h.b16 %v87
    %v1193 = vunpack.c.l.b16 %v88
    %v1194 = vunpack.c.h.b16 %v88
    %v1195 = vunpack.c.l.b16 %v89
    %v1196 = vunpack.c.h.b16 %v89
    %v1197 = vunpack.c.l.b16 %v90
    %v1198 = vunpack.c.h.b16 %v90
    %v1199 = vunpack.c.l.b16 %v91
    %v1200 = vunpack.c.h.b16 %v91
    %v1201 = vunpack.c.l.b16 %v92
    %v1202 = vunpack.c.h.b16 %v92
    %v1203 = vunpack.c.l.b16 %v93
    %v1204 = vunpack.c.h.b16 %v93
    %v1205 = vunpack.c.l.b16 %v94
    %v1206 = vunpack.c.h.b16 %v94
    %v1207 = vunpack.c.l.b16 %v95
    %v1208 = vunpack.c.h.b16 %v95
    %v1209 = vunpack.c.l.b16 %v96
    %v1210 = vunpack.c.h.b16 %v96
    %v1211 = vunpack.c.l.b16 %v97
    %v1212 = vunpack.c.h.b16 %v97
    %v1213 = vunpack.c.l.b16 %v98
    %v1214 = vunpack.c.h.b16 %v98
    %v1215 = vunpack.c.l.b16 %v99
    %v1216 = vunpack.c.h.b16 %v99
    %v1217 = vunpack.c.l.b16 %v100
    %v1218 = vunpack.c.h.b16 %v100
    %v1219 = vunpack.c.l.b16 %v101
    %v1220 = vunpack.c.h.b16 %v101
    %v1221 = vunpack.c.l.b16 %v102
    %v1222 = vunpack.c.h.b16 %v102
    %v1223 = vpack.c.b16 %v1095, %v1095
    %v1224 = vpack.c.b16 %v1096, %v1096
    %v1225 = vpack.c.b16 %v1097, %v1097
    %v1226 = vpack.c.b16 %v1098, %v1098
    %v1227 = vpack.c.b16 %v1099, %v1099
    %v1228 = vpack.c.b16 %v1100, %v1100
    %v1229 = vpack.c.b16 %v1101, %v1101
    %v1230 = vpack.c.b16 %v1102, %v1102
    %v1231 = vpack.c.b16 %v1103, %v1103
    %v1232 = vpack.c.b16 %v1104, %v1104
    %v1233 = vpack.c.b16 %v1105, %v1105
    %v1234 = vpack.c.b16 %v1106, %v1106
    %v1235 = vpack.c.b16 %v1107, %v1107
    %v1236 = vpack.c.b16 %v1108, %v1108
    %v1237 = vpack.c.b16 %v1109, %v1109
    %v1238 = vpack.c.b16 %v1110, %v1110
    %v1239 = vpack.c.b16 %v1111, %v1111
    %v1240 = vpack.c.b16 %v1112, %v1112
    %v1241 = vpack.c.b16 %v1113, %v1113
    %v1242 = vpack.c.b16 %v1114, %v1114
    %v1243 = vpack.c.b16 %v1115, %v1115
    %v1244 = vpack.c.b16 %v1116, %v1116
    %v1245 = vpack.c.b16 %v1117, %v1117
    %v1246 = vpack.c.b16 %v1118, %v1118
    %v1247 = vpack.c.b16 %v1119, %v1119
    %v1248 = vpack.c.b16 %v1120, %v1120
    %v1249 = vpack.c.b16 %v1121, %v1121
    %v1250 = vpack.c.b16 %v1122, %v1122
    %v1251 = vpack.c.b16 %v1123, %v1123
    %v1252 = vpack.c.b16 %v1124, %v1124
    %v1253 = vpack.c.b16 %v1125, %v1125
    %v1254 = vpack.c.b16 %v1126, %v1126
    %v1255 = vpack.c.b16 %v1127, %v1127
    %v1256 = vpack.c.b16 %v1128, %v1128
    %v1257 = vpack.c.b16 %v1129, %v1129
    %v1258 = vpack.c.b16 %v1130, %v1130
    %v1259 = vpack.c.b16 %v1131, %v1131
    %v1260 = vpack.c.b16 %v1132, %v1132
    %v1261 = vpack.c.b16 %v1133, %v1133
    %v1262 = vpack.c.b16 %v1134, %v1134
    %v1263 = vpack.c.b16 %v1135, %v1135
    %v1264 = vpack.c.b16 %v1136, %v1136
    %v1265 = vpack.c.b16 %v1137, %v1137
    %v1266 = vpack.c.b16 %v1138, %v1138
    %v1267 = vpack.c.b16 %v1139, %v1139
    %v1268 = vpack.c.b16 %v1140, %v1140
    %v1269 = vpack.c.b16 %v1141, %v1141
    %v1270 = vpack.c.b16 %v1142, %v1142
    %v1271 = vpack.c.b16 %v1143, %v1143
    %v1272 = vpack.c.b16 %v1144, %v1144
    %v1273 = vpack.c.b16 %v1145, %v1145
    %v1274 = vpack.c.b16 %v1146, %v1146
    %v1275 = vpack.c.b16 %v1147, %v1147
    %v1276 = vpack.c.b16 %v1148, %v1148
    %v1277 = vpack.c.b16 %v1149, %v1149
    %v1278 = vpack.c.b16 %v1150, %v1150
    %v1279 = vpack.c.b16 %v1151, %v1151
    %v1280 = vpack.c.b16 %v1152, %v1152
    %v1281 = vpack.c.b16 %v1153, %v1153
    %v1282 = vpack.c.b16 %v1154, %v1154
    %v1283 = vpack.c.b16 %v1155, %v1155
    %v1284 = vpack.c.b16 %v1156, %v1156
    %v1285 = vpack.c.b16 %v1157, %v1157
    %v1286 = vpack.c.b16 %v1158, %v1158
    %v1287 = vpack.c.b16 %v1159, %v1159
    %v1288 = vpack.c.b16 %v1160, %v1160
    %v1289 = vpack.c.b16 %v1161, %v1161
    %v1290 = vpack.c.b16 %v1162, %v1162
    %v1291 = vpack.c.b16 %v1163, %v1163
    %v1292 = vpack.c.b16 %v1164, %v1164
    %v1293 = vpack.c.b16 %v1165, %v1165
    %v1294 = vpack.c.b16 %v1166, %v1166
    %v1295 = vpack.c.b16 %v1167, %v1167
    %v1296 = vpack.c.b16 %v1168, %v1168
    %v1297 = vpack.c.b16 %v1169, %v1169
    %v1298 = vpack.c.b16 %v1170, %v1170
    %v1299 = vpack.c.b16 %v1171, %v1171
    %v1300 = vpack.c.b16 %v1172, %v1172
    %v1301 = vpack.c.b16 %v1173, %v1173
    %v1302 = vpack.c.b16 %v1174, %v1174
    %v1303 = vpack.c.b16 %v1175, %v1175
    %v1304 = vpack.c.b16 %v1176, %v1176
    %v1305 = vpack.c.b16 %v1177, %v1177
    %v1306 = vpack.c.b16 %v1178, %v1178
    %v1307 = vpack.c.b16 %v1179, %v1179
    %v1308 = vpack.c.b16 %v1180, %v1180
    %v1309 = vpack.c.b16 %v1181, %v1181
    %v1310 = vpack.c.b16 %v1182, %v1182
    %v1311 = vpack.c.b16 %v1183, %v1183
    %v1312 = vpack.c.b16 %v1184, %v1184
    %v1313 = vpack.c.b16 %v1185, %v1185
    %v1314 = vpack.c.b16 %v1186, %v1186
    %v1315 = vpack.c.b16 %v1187, %v1187
    %v1316 = vpack.c.b16 %v1188, %v1188
    %v1317 = vpack.c.b16 %v1189, %v1189
    %v1318 = vpack.c.b16 %v1190, %v1190
    %v1319 = vpack.c.b16 %v1191, %v1191
    %v1320 = vpack.c.b16 %v1192, %v1192
    %v1321 = vpack.c.b16 %v1193, %v1193
    %v1322 = vpack.c.b16 %v1194, %v1194
    %v1323 = vpack.c.b16 %v1195, %v1195
    %v1324 = vpack.c.b16 %v1196, %v1196
    %v1325 = vpack.c.b16 %v1197, %v1197
    %v1326 = vpack.c.b16 %v1198, %v1198
    %v1327 = vpack.c.b16 %v1199, %v1199
    %v1328 = vpack.c.b16 %v1200, %v1200
    %v1329 = vpack.c.b16 %v1201, %v1201
    %v1330 = vpack.c.b16 %v1202, %v1202
    %v1331 = vpack.c.b16 %v1203, %v1203
    %v1332 = vpack.c.b16 %v1204, %v1204
    %v1333 = vpack.c.b16 %v1205, %v1205
    %v1334 = vpack.c.b16 %v1206, %v1206
    %v1335 = vpack.c.b16 %v1207, %v1207
    %v1336 = vpack.c.b16 %v1208, %v1208
    %v1337 = vpack.c.b16 %v1209, %v1209
    %v1338 = vpack.c.b16 %v1210, %v1210
    %v1339 = vpack.c.b16 %v1211, %v1211
    %v1340 = vpack.c.b16 %v1212, %v1212
    %v1341 = vpack.c.b16 %v1213, %v1213
    %v1342 = vpack.c.b16 %v1214, %v1214
    %v1343 = vpack.c.b16 %v1215, %v1215
    %v1344 = vpack.c.b16 %v1216, %v1216
    %v1345 = vpack.c.b16 %v1217, %v1217
    %v1346 = vpack.c.b16 %v1218, %v1218
    %v1347 = vpack.c.b16 %v1219, %v1219
    %v1348 = vpack.c.b16 %v1220, %v1220
    %v1349 = vpack.c.b16 %v1221, %v1221
    %v1350 = vpack.c.b16 %v1222, %v1222
    %1479 = vmatprep.subr.bf16.mxu0 0
    %1480 = vmatpush1.bf16.xpose.msra.mxu0 0
    %1481 = vmatprep.subr.bf16.mxu0 0
    %1482 = vmatpush1.bf16.xpose.msra.mxu0 0
    %1483 = vmatprep.subr.bf16.mxu0 0
    %1484 = vmatpush1.bf16.xpose.msra.mxu0 0
    %1485 = vmatprep.subr.bf16.mxu0 0
    %1486 = vmatpush1.bf16.xpose.msra.mxu0 0
    %1487 = vmatprep.subr.bf16.mxu0 0
    %1488 = vmatpush1.bf16.xpose.msra.mxu0 0
    %1489 = vmatprep.subr.bf16.mxu0 0
    %1490 = vmatpush1.bf16.xpose.msra.mxu0 0
    %1491 = vmatprep.subr.bf16.mxu0 0
    %1492 = vmatpush1.bf16.xpose.msra.mxu0 0
    %1493 = vmatprep.subr.bf16.mxu0 %v1224
    %1494 = vmatpush1.bf16.xpose.msra.mxu0 %v1223
    %1495 = vmatprep.subr.bf16.mxu0 0
    %1496 = vmatpush2.bf16.xpose.msra.mxu0 0
    %1497 = vmatprep.subr.bf16.mxu0 0
    %1498 = vmatpush2.bf16.xpose.msra.mxu0 0
    %1499 = vmatprep.subr.bf16.mxu0 0
    %1500 = vmatpush2.bf16.xpose.msra.mxu0 0
    %1501 = vmatprep.subr.bf16.mxu0 0
    %1502 = vmatpush2.bf16.xpose.msra.mxu0 0
    %1503 = vmatprep.subr.bf16.mxu0 0
    %1504 = vmatpush2.bf16.xpose.msra.mxu0 0
    %1505 = vmatprep.subr.bf16.mxu0 0
    %1506 = vmatpush2.bf16.xpose.msra.mxu0 0
    %1507 = vmatprep.subr.bf16.mxu0 0
    %1508 = vmatpush2.bf16.xpose.msra.mxu0 0
    %1509 = vmatprep.subr.bf16.mxu0 0
    %1510 = vmatpush2.bf16.xpose.msra.mxu0 0
    %1511 = vmatprep.mubr.bf16.mxu0 %v156
    %1512 = vmatmul.mubr.bf16.gmra.mxu0 %v142
    %v1513 = vpop.f32.mrf.mxu0
    %v1514 = vadd.f32 0.0, %v1513
    %v1515 = vpop.f32.mrf.mxu0
    %v1516 = vpop.f32.mrf.mxu0
    %v1517 = vpop.f32.mrf.mxu0
    %1518 = vdwg.mxu0
    %1519 = vmatprep.subr.bf16.mxu0 0
    %1520 = vmatpush1.bf16.xpose.msra.mxu0 0
    %1521 = vmatprep.subr.bf16.mxu0 0
    %1522 = vmatpush1.bf16.xpose.msra.mxu0 0
    %1523 = vmatprep.subr.bf16.mxu0 0
    %1524 = vmatpush1.bf16.xpose.msra.mxu0 0
    %1525 = vmatprep.subr.bf16.mxu0 0
    %1526 = vmatpush1.bf16.xpose.msra.mxu0 0
    %1527 = vmatprep.subr.bf16.mxu0 0
    %1528 = vmatpush1.bf16.xpose.msra.mxu0 0
    %1529 = vmatprep.subr.bf16.mxu0 0
    %1530 = vmatpush1.bf16.xpose.msra.mxu0 0
    %1531 = vmatprep.subr.bf16.mxu0 0
    %1532 = vmatpush1.bf16.xpose.msra.mxu0 0
    %1533 = vmatprep.subr.bf16.mxu0 %v1226
    %1534 = vmatpush1.bf16.xpose.msra.mxu0 %v1225
    %1535 = vmatprep.subr.bf16.mxu0 0
    %1536 = vmatpush2.bf16.xpose.msra.mxu0 0
    %1537 = vmatprep.subr.bf16.mxu0 0
    %1538 = vmatpush2.bf16.xpose.msra.mxu0 0
    %1539 = vmatprep.subr.bf16.mxu0 0
    %1540 = vmatpush2.bf16.xpose.msra.mxu0 0
    %1541 = vmatprep.subr.bf16.mxu0 0
    %1542 = vmatpush2.bf16.xpose.msra.mxu0 0
    %1543 = vmatprep.subr.bf16.mxu0 0
    %1544 = vmatpush2.bf16.xpose.msra.mxu0 0
    %1545 = vmatprep.subr.bf16.mxu0 0
    %1546 = vmatpush2.bf16.xpose.msra.mxu0 0
    %1547 = vmatprep.subr.bf16.mxu0 0
    %1548 = vmatpush2.bf16.xpose.msra.mxu0 0
    %1549 = vmatprep.subr.bf16.mxu0 0
    %1550 = vmatpush2.bf16.xpose.msra.mxu0 0
    %1551 = vmatprep.mubr.bf16.mxu0 %v166
    %1552 = vmatmul.mubr.bf16.gmra.mxu0 %v164
    %v1553 = vpop.f32.mrf.mxu0
    %v1554 = vadd.f32 %v1514, %v1553
    %v1555 = vpop.f32.mrf.mxu0
    %v1556 = vpop.f32.mrf.mxu0
    %v1557 = vpop.f32.mrf.mxu0
    %1558 = vdwg.mxu0
    %1559 = vmatprep.subr.bf16.mxu0 0
    %1560 = vmatpush1.bf16.xpose.msra.mxu0 0
    %1561 = vmatprep.subr.bf16.mxu0 0
    %1562 = vmatpush1.bf16.xpose.msra.mxu0 0
    %1563 = vmatprep.subr.bf16.mxu0 0
    %1564 = vmatpush1.bf16.xpose.msra.mxu0 0
    %1565 = vmatprep.subr.bf16.mxu0 0
    %1566 = vmatpush1.bf16.xpose.msra.mxu0 0
    %1567 = vmatprep.subr.bf16.mxu0 0
    %1568 = vmatpush1.bf16.xpose.msra.mxu0 0
    %1569 = vmatprep.subr.bf16.mxu0 0
    %1570 = vmatpush1.bf16.xpose.msra.mxu0 0
    %1571 = vmatprep.subr.bf16.mxu0 0
    %1572 = vmatpush1.bf16.xpose.msra.mxu0 0
    %1573 = vmatprep.subr.bf16.mxu0 %v1228
    %1574 = vmatpush1.bf16.xpose.msra.mxu0 %v1227
    %1575 = vmatprep.subr.bf16.mxu0 0
    %1576 = vmatpush2.bf16.xpose.msra.mxu0 0
    %1577 = vmatprep.subr.bf16.mxu0 0
    %1578 = vmatpush2.bf16.xpose.msra.mxu0 0
    %1579 = vmatprep.subr.bf16.mxu0 0
    %1580 = vmatpush2.bf16.xpose.msra.mxu0 0
    %1581 = vmatprep.subr.bf16.mxu0 0
    %1582 = vmatpush2.bf16.xpose.msra.mxu0 0
    %1583 = vmatprep.subr.bf16.mxu0 0
    %1584 = vmatpush2.bf16.xpose.msra.mxu0 0
    %1585 = vmatprep.subr.bf16.mxu0 0
    %1586 = vmatpush2.bf16.xpose.msra.mxu0 0
    %1587 = vmatprep.subr.bf16.mxu0 0
    %1588 = vmatpush2.bf16.xpose.msra.mxu0 0
    %1589 = vmatprep.subr.bf16.mxu0 0
    %1590 = vmatpush2.bf16.xpose.msra.mxu0 0
    %1591 = vmatprep.mubr.bf16.mxu0 %v163
    %1592 = vmatmul.mubr.bf16.gmra.mxu0 %v149
    %v1593 = vpop.f32.mrf.mxu0
    %v1594 = vadd.f32 %v1554, %v1593
    %v1595 = vpop.f32.mrf.mxu0
    %v1596 = vpop.f32.mrf.mxu0
    %v1597 = vpop.f32.mrf.mxu0
    %1598 = vdwg.mxu0
    %1599 = vmatprep.subr.bf16.mxu0 0
    %1600 = vmatpush1.bf16.xpose.msra.mxu0 0
    %1601 = vmatprep.subr.bf16.mxu0 0
    %1602 = vmatpush1.bf16.xpose.msra.mxu0 0
    %1603 = vmatprep.subr.bf16.mxu0 0
    %1604 = vmatpush1.bf16.xpose.msra.mxu0 0
    %1605 = vmatprep.subr.bf16.mxu0 0
    %1606 = vmatpush1.bf16.xpose.msra.mxu0 0
    %1607 = vmatprep.subr.bf16.mxu0 0
    %1608 = vmatpush1.bf16.xpose.msra.mxu0 0
    %1609 = vmatprep.subr.bf16.mxu0 0
    %1610 = vmatpush1.bf16.xpose.msra.mxu0 0
    %1611 = vmatprep.subr.bf16.mxu0 0
    %1612 = vmatpush1.bf16.xpose.msra.mxu0 0
    %1613 = vmatprep.subr.bf16.mxu0 %v1230
    %1614 = vmatpush1.bf16.xpose.msra.mxu0 %v1229
    %1615 = vmatprep.subr.bf16.mxu0 0
    %1616 = vmatpush2.bf16.xpose.msra.mxu0 0
    %1617 = vmatprep.subr.bf16.mxu0 0
    %1618 = vmatpush2.bf16.xpose.msra.mxu0 0
    %1619 = vmatprep.subr.bf16.mxu0 0
    %1620 = vmatpush2.bf16.xpose.msra.mxu0 0
    %1621 = vmatprep.subr.bf16.mxu0 0
    %1622 = vmatpush2.bf16.xpose.msra.mxu0 0
    %1623 = vmatprep.subr.bf16.mxu0 0
    %1624 = vmatpush2.bf16.xpose.msra.mxu0 0
    %1625 = vmatprep.subr.bf16.mxu0 0
    %1626 = vmatpush2.bf16.xpose.msra.mxu0 0
    %1627 = vmatprep.subr.bf16.mxu0 0
    %1628 = vmatpush2.bf16.xpose.msra.mxu0 0
    %1629 = vmatprep.subr.bf16.mxu0 0
    %1630 = vmatpush2.bf16.xpose.msra.mxu0 0
    %1631 = vmatprep.mubr.bf16.mxu0 %v167
    %1632 = vmatmul.mubr.bf16.gmra.mxu0 %v165
    %v1633 = vpop.f32.mrf.mxu0
    %v1634 = vadd.f32 %v1594, %v1633
    %v1635 = vpop.f32.mrf.mxu0
    %v1636 = vpop.f32.mrf.mxu0
    %v1637 = vpop.f32.mrf.mxu0
    %1638 = vdwg.mxu0
    %1639 = vmatprep.subr.bf16.mxu0 0
    %1640 = vmatpush1.bf16.xpose.msra.mxu0 0
    %1641 = vmatprep.subr.bf16.mxu0 0
    %1642 = vmatpush1.bf16.xpose.msra.mxu0 0
    %1643 = vmatprep.subr.bf16.mxu0 0
    %1644 = vmatpush1.bf16.xpose.msra.mxu0 0
    %1645 = vmatprep.subr.bf16.mxu0 0
    %1646 = vmatpush1.bf16.xpose.msra.mxu0 0
    %1647 = vmatprep.subr.bf16.mxu0 0
    %1648 = vmatpush1.bf16.xpose.msra.mxu0 0
    %1649 = vmatprep.subr.bf16.mxu0 0
    %1650 = vmatpush1.bf16.xpose.msra.mxu0 0
    %1651 = vmatprep.subr.bf16.mxu0 0
    %1652 = vmatpush1.bf16.xpose.msra.mxu0 0
    %1653 = vmatprep.subr.bf16.mxu0 %v1232
    %1654 = vmatpush1.bf16.xpose.msra.mxu0 %v1231
    %1655 = vmatprep.subr.bf16.mxu0 0
    %1656 = vmatpush2.bf16.xpose.msra.mxu0 0
    %1657 = vmatprep.subr.bf16.mxu0 0
    %1658 = vmatpush2.bf16.xpose.msra.mxu0 0
    %1659 = vmatprep.subr.bf16.mxu0 0
    %1660 = vmatpush2.bf16.xpose.msra.mxu0 0
    %1661 = vmatprep.subr.bf16.mxu0 0
    %1662 = vmatpush2.bf16.xpose.msra.mxu0 0
    %1663 = vmatprep.subr.bf16.mxu0 0
    %1664 = vmatpush2.bf16.xpose.msra.mxu0 0
    %1665 = vmatprep.subr.bf16.mxu0 0
    %1666 = vmatpush2.bf16.xpose.msra.mxu0 0
    %1667 = vmatprep.subr.bf16.mxu0 0
    %1668 = vmatpush2.bf16.xpose.msra.mxu0 0
    %1669 = vmatprep.subr.bf16.mxu0 0
    %1670 = vmatpush2.bf16.xpose.msra.mxu0 0
    %1671 = vmatprep.mubr.bf16.mxu0 %v205
    %1672 = vmatmul.mubr.bf16.gmra.mxu0 %v191
    %v1673 = vpop.f32.mrf.mxu0
    %v1674 = vadd.f32 %v1634, %v1673
    %v1675 = vpop.f32.mrf.mxu0
    %v1676 = vpop.f32.mrf.mxu0
    %v1677 = vpop.f32.mrf.mxu0
    %1678 = vdwg.mxu0
    %1679 = vmatprep.subr.bf16.mxu0 0
    %1680 = vmatpush1.bf16.xpose.msra.mxu0 0
    %1681 = vmatprep.subr.bf16.mxu0 0
    %1682 = vmatpush1.bf16.xpose.msra.mxu0 0
    %1683 = vmatprep.subr.bf16.mxu0 0
    %1684 = vmatpush1.bf16.xpose.msra.mxu0 0
    %1685 = vmatprep.subr.bf16.mxu0 0
    %1686 = vmatpush1.bf16.xpose.msra.mxu0 0
    %1687 = vmatprep.subr.bf16.mxu0 0
    %1688 = vmatpush1.bf16.xpose.msra.mxu0 0
    %1689 = vmatprep.subr.bf16.mxu0 0
    %1690 = vmatpush1.bf16.xpose.msra.mxu0 0
    %1691 = vmatprep.subr.bf16.mxu0 0
    %1692 = vmatpush1.bf16.xpose.msra.mxu0 0
    %1693 = vmatprep.subr.bf16.mxu0 %v1234
    %1694 = vmatpush1.bf16.xpose.msra.mxu0 %v1233
    %1695 = vmatprep.subr.bf16.mxu0 0
    %1696 = vmatpush2.bf16.xpose.msra.mxu0 0
    %1697 = vmatprep.subr.bf16.mxu0 0
    %1698 = vmatpush2.bf16.xpose.msra.mxu0 0
    %1699 = vmatprep.subr.bf16.mxu0 0
    %1700 = vmatpush2.bf16.xpose.msra.mxu0 0
    %1701 = vmatprep.subr.bf16.mxu0 0
    %1702 = vmatpush2.bf16.xpose.msra.mxu0 0
    %1703 = vmatprep.subr.bf16.mxu0 0
    %1704 = vmatpush2.bf16.xpose.msra.mxu0 0
    %1705 = vmatprep.subr.bf16.mxu0 0
    %1706 = vmatpush2.bf16.xpose.msra.mxu0 0
    %1707 = vmatprep.subr.bf16.mxu0 0
    %1708 = vmatpush2.bf16.xpose.msra.mxu0 0
    %1709 = vmatprep.subr.bf16.mxu0 0
    %1710 = vmatpush2.bf16.xpose.msra.mxu0 0
    %1711 = vmatprep.mubr.bf16.mxu0 %v215
    %1712 = vmatmul.mubr.bf16.gmra.mxu0 %v213
    %v1713 = vpop.f32.mrf.mxu0
    %v1714 = vadd.f32 %v1674, %v1713
    %v1715 = vpop.f32.mrf.mxu0
    %v1716 = vpop.f32.mrf.mxu0
    %v1717 = vpop.f32.mrf.mxu0
    %1718 = vdwg.mxu0
    %1719 = vmatprep.subr.bf16.mxu0 0
    %1720 = vmatpush1.bf16.xpose.msra.mxu0 0
    %1721 = vmatprep.subr.bf16.mxu0 0
    %1722 = vmatpush1.bf16.xpose.msra.mxu0 0
    %1723 = vmatprep.subr.bf16.mxu0 0
    %1724 = vmatpush1.bf16.xpose.msra.mxu0 0
    %1725 = vmatprep.subr.bf16.mxu0 0
    %1726 = vmatpush1.bf16.xpose.msra.mxu0 0
    %1727 = vmatprep.subr.bf16.mxu0 0
    %1728 = vmatpush1.bf16.xpose.msra.mxu0 0
    %1729 = vmatprep.subr.bf16.mxu0 0
    %1730 = vmatpush1.bf16.xpose.msra.mxu0 0
    %1731 = vmatprep.subr.bf16.mxu0 0
    %1732 = vmatpush1.bf16.xpose.msra.mxu0 0
    %1733 = vmatprep.subr.bf16.mxu0 %v1236
    %1734 = vmatpush1.bf16.xpose.msra.mxu0 %v1235
    %1735 = vmatprep.subr.bf16.mxu0 0
    %1736 = vmatpush2.bf16.xpose.msra.mxu0 0
    %1737 = vmatprep.subr.bf16.mxu0 0
    %1738 = vmatpush2.bf16.xpose.msra.mxu0 0
    %1739 = vmatprep.subr.bf16.mxu0 0
    %1740 = vmatpush2.bf16.xpose.msra.mxu0 0
    %1741 = vmatprep.subr.bf16.mxu0 0
    %1742 = vmatpush2.bf16.xpose.msra.mxu0 0
    %1743 = vmatprep.subr.bf16.mxu0 0
    %1744 = vmatpush2.bf16.xpose.msra.mxu0 0
    %1745 = vmatprep.subr.bf16.mxu0 0
    %1746 = vmatpush2.bf16.xpose.msra.mxu0 0
    %1747 = vmatprep.subr.bf16.mxu0 0
    %1748 = vmatpush2.bf16.xpose.msra.mxu0 0
    %1749 = vmatprep.subr.bf16.mxu0 0
    %1750 = vmatpush2.bf16.xpose.msra.mxu0 0
    %1751 = vmatprep.mubr.bf16.mxu0 %v212
    %1752 = vmatmul.mubr.bf16.gmra.mxu0 %v198
    %v1753 = vpop.f32.mrf.mxu0
    %v1754 = vadd.f32 %v1714, %v1753
    %v1755 = vpop.f32.mrf.mxu0
    %v1756 = vpop.f32.mrf.mxu0
    %v1757 = vpop.f32.mrf.mxu0
    %1758 = vdwg.mxu0
    %1759 = vmatprep.subr.bf16.mxu0 0
    %1760 = vmatpush1.bf16.xpose.msra.mxu0 0
    %1761 = vmatprep.subr.bf16.mxu0 0
    %1762 = vmatpush1.bf16.xpose.msra.mxu0 0
    %1763 = vmatprep.subr.bf16.mxu0 0
    %1764 = vmatpush1.bf16.xpose.msra.mxu0 0
    %1765 = vmatprep.subr.bf16.mxu0 0
    %1766 = vmatpush1.bf16.xpose.msra.mxu0 0
    %1767 = vmatprep.subr.bf16.mxu0 0
    %1768 = vmatpush1.bf16.xpose.msra.mxu0 0
    %1769 = vmatprep.subr.bf16.mxu0 0
    %1770 = vmatpush1.bf16.xpose.msra.mxu0 0
    %1771 = vmatprep.subr.bf16.mxu0 0
    %1772 = vmatpush1.bf16.xpose.msra.mxu0 0
    %1773 = vmatprep.subr.bf16.mxu0 %v1238
    %1774 = vmatpush1.bf16.xpose.msra.mxu0 %v1237
    %1775 = vmatprep.subr.bf16.mxu0 0
    %1776 = vmatpush2.bf16.xpose.msra.mxu0 0
    %1777 = vmatprep.subr.bf16.mxu0 0
    %1778 = vmatpush2.bf16.xpose.msra.mxu0 0
    %1779 = vmatprep.subr.bf16.mxu0 0
    %1780 = vmatpush2.bf16.xpose.msra.mxu0 0
    %1781 = vmatprep.subr.bf16.mxu0 0
    %1782 = vmatpush2.bf16.xpose.msra.mxu0 0
    %1783 = vmatprep.subr.bf16.mxu0 0
    %1784 = vmatpush2.bf16.xpose.msra.mxu0 0
    %1785 = vmatprep.subr.bf16.mxu0 0
    %1786 = vmatpush2.bf16.xpose.msra.mxu0 0
    %1787 = vmatprep.subr.bf16.mxu0 0
    %1788 = vmatpush2.bf16.xpose.msra.mxu0 0
    %1789 = vmatprep.subr.bf16.mxu0 0
    %1790 = vmatpush2.bf16.xpose.msra.mxu0 0
    %1791 = vmatprep.mubr.bf16.mxu0 %v216
    %1792 = vmatmul.mubr.bf16.gmra.mxu0 %v214
    %v1793 = vpop.f32.mrf.mxu0
    %v1794 = vadd.f32 %v1754, %v1793
    %v1795 = vpop.f32.mrf.mxu0
    %v1796 = vpop.f32.mrf.mxu0
    %v1797 = vpop.f32.mrf.mxu0
    %1798 = vdwg.mxu0
    %1799 = vmatprep.subr.bf16.mxu0 0
    %1800 = vmatpush1.bf16.xpose.msra.mxu0 0
    %1801 = vmatprep.subr.bf16.mxu0 0
    %1802 = vmatpush1.bf16.xpose.msra.mxu0 0
    %1803 = vmatprep.subr.bf16.mxu0 0
    %1804 = vmatpush1.bf16.xpose.msra.mxu0 0
    %1805 = vmatprep.subr.bf16.mxu0 0
    %1806 = vmatpush1.bf16.xpose.msra.mxu0 0
    %1807 = vmatprep.subr.bf16.mxu0 0
    %1808 = vmatpush1.bf16.xpose.msra.mxu0 0
    %1809 = vmatprep.subr.bf16.mxu0 0
    %1810 = vmatpush1.bf16.xpose.msra.mxu0 0
    %1811 = vmatprep.subr.bf16.mxu0 0
    %1812 = vmatpush1.bf16.xpose.msra.mxu0 0
    %1813 = vmatprep.subr.bf16.mxu0 %v1240
    %1814 = vmatpush1.bf16.xpose.msra.mxu0 %v1239
    %1815 = vmatprep.subr.bf16.mxu0 0
    %1816 = vmatpush2.bf16.xpose.msra.mxu0 0
    %1817 = vmatprep.subr.bf16.mxu0 0
    %1818 = vmatpush2.bf16.xpose.msra.mxu0 0
    %1819 = vmatprep.subr.bf16.mxu0 0
    %1820 = vmatpush2.bf16.xpose.msra.mxu0 0
    %1821 = vmatprep.subr.bf16.mxu0 0
    %1822 = vmatpush2.bf16.xpose.msra.mxu0 0
    %1823 = vmatprep.subr.bf16.mxu0 0
    %1824 = vmatpush2.bf16.xpose.msra.mxu0 0
    %1825 = vmatprep.subr.bf16.mxu0 0
    %1826 = vmatpush2.bf16.xpose.msra.mxu0 0
    %1827 = vmatprep.subr.bf16.mxu0 0
    %1828 = vmatpush2.bf16.xpose.msra.mxu0 0
    %1829 = vmatprep.subr.bf16.mxu0 0
    %1830 = vmatpush2.bf16.xpose.msra.mxu0 0
    %1831 = vmatprep.mubr.bf16.mxu0 %v254
    %1832 = vmatmul.mubr.bf16.gmra.mxu0 %v240
    %v1833 = vpop.f32.mrf.mxu0
    %v1834 = vadd.f32 %v1794, %v1833
    %v1835 = vpop.f32.mrf.mxu0
    %v1836 = vpop.f32.mrf.mxu0
    %v1837 = vpop.f32.mrf.mxu0
    %1838 = vdwg.mxu0
    %1839 = vmatprep.subr.bf16.mxu0 0
    %1840 = vmatpush1.bf16.xpose.msra.mxu0 0
    %1841 = vmatprep.subr.bf16.mxu0 0
    %1842 = vmatpush1.bf16.xpose.msra.mxu0 0
    %1843 = vmatprep.subr.bf16.mxu0 0
    %1844 = vmatpush1.bf16.xpose.msra.mxu0 0
    %1845 = vmatprep.subr.bf16.mxu0 0
    %1846 = vmatpush1.bf16.xpose.msra.mxu0 0
    %1847 = vmatprep.subr.bf16.mxu0 0
    %1848 = vmatpush1.bf16.xpose.msra.mxu0 0
    %1849 = vmatprep.subr.bf16.mxu0 0
    %1850 = vmatpush1.bf16.xpose.msra.mxu0 0
    %1851 = vmatprep.subr.bf16.mxu0 0
    %1852 = vmatpush1.bf16.xpose.msra.mxu0 0
    %1853 = vmatprep.subr.bf16.mxu0 %v1242
    %1854 = vmatpush1.bf16.xpose.msra.mxu0 %v1241
    %1855 = vmatprep.subr.bf16.mxu0 0
    %1856 = vmatpush2.bf16.xpose.msra.mxu0 0
    %1857 = vmatprep.subr.bf16.mxu0 0
    %1858 = vmatpush2.bf16.xpose.msra.mxu0 0
    %1859 = vmatprep.subr.bf16.mxu0 0
    %1860 = vmatpush2.bf16.xpose.msra.mxu0 0
    %1861 = vmatprep.subr.bf16.mxu0 0
    %1862 = vmatpush2.bf16.xpose.msra.mxu0 0
    %1863 = vmatprep.subr.bf16.mxu0 0
    %1864 = vmatpush2.bf16.xpose.msra.mxu0 0
    %1865 = vmatprep.subr.bf16.mxu0 0
    %1866 = vmatpush2.bf16.xpose.msra.mxu0 0
    %1867 = vmatprep.subr.bf16.mxu0 0
    %1868 = vmatpush2.bf16.xpose.msra.mxu0 0
    %1869 = vmatprep.subr.bf16.mxu0 0
    %1870 = vmatpush2.bf16.xpose.msra.mxu0 0
    %1871 = vmatprep.mubr.bf16.mxu0 %v264
    %1872 = vmatmul.mubr.bf16.gmra.mxu0 %v262
    %v1873 = vpop.f32.mrf.mxu0
    %v1874 = vadd.f32 %v1834, %v1873
    %v1875 = vpop.f32.mrf.mxu0
    %v1876 = vpop.f32.mrf.mxu0
    %v1877 = vpop.f32.mrf.mxu0
    %1878 = vdwg.mxu0
    %1879 = vmatprep.subr.bf16.mxu0 0
    %1880 = vmatpush1.bf16.xpose.msra.mxu0 0
    %1881 = vmatprep.subr.bf16.mxu0 0
    %1882 = vmatpush1.bf16.xpose.msra.mxu0 0
    %1883 = vmatprep.subr.bf16.mxu0 0
    %1884 = vmatpush1.bf16.xpose.msra.mxu0 0
    %1885 = vmatprep.subr.bf16.mxu0 0
    %1886 = vmatpush1.bf16.xpose.msra.mxu0 0
    %1887 = vmatprep.subr.bf16.mxu0 0
    %1888 = vmatpush1.bf16.xpose.msra.mxu0 0
    %1889 = vmatprep.subr.bf16.mxu0 0
    %1890 = vmatpush1.bf16.xpose.msra.mxu0 0
    %1891 = vmatprep.subr.bf16.mxu0 0
    %1892 = vmatpush1.bf16.xpose.msra.mxu0 0
    %1893 = vmatprep.subr.bf16.mxu0 %v1244
    %1894 = vmatpush1.bf16.xpose.msra.mxu0 %v1243
    %1895 = vmatprep.subr.bf16.mxu0 0
    %1896 = vmatpush2.bf16.xpose.msra.mxu0 0
    %1897 = vmatprep.subr.bf16.mxu0 0
    %1898 = vmatpush2.bf16.xpose.msra.mxu0 0
    %1899 = vmatprep.subr.bf16.mxu0 0
    %1900 = vmatpush2.bf16.xpose.msra.mxu0 0
    %1901 = vmatprep.subr.bf16.mxu0 0
    %1902 = vmatpush2.bf16.xpose.msra.mxu0 0
    %1903 = vmatprep.subr.bf16.mxu0 0
    %1904 = vmatpush2.bf16.xpose.msra.mxu0 0
    %1905 = vmatprep.subr.bf16.mxu0 0
    %1906 = vmatpush2.bf16.xpose.msra.mxu0 0
    %1907 = vmatprep.subr.bf16.mxu0 0
    %1908 = vmatpush2.bf16.xpose.msra.mxu0 0
    %1909 = vmatprep.subr.bf16.mxu0 0
    %1910 = vmatpush2.bf16.xpose.msra.mxu0 0
    %1911 = vmatprep.mubr.bf16.mxu0 %v261
    %1912 = vmatmul.mubr.bf16.gmra.mxu0 %v247
    %v1913 = vpop.f32.mrf.mxu0
    %v1914 = vadd.f32 %v1874, %v1913
    %v1915 = vpop.f32.mrf.mxu0
    %v1916 = vpop.f32.mrf.mxu0
    %v1917 = vpop.f32.mrf.mxu0
    %1918 = vdwg.mxu0
    %1919 = vmatprep.subr.bf16.mxu0 0
    %1920 = vmatpush1.bf16.xpose.msra.mxu0 0
    %1921 = vmatprep.subr.bf16.mxu0 0
    %1922 = vmatpush1.bf16.xpose.msra.mxu0 0
    %1923 = vmatprep.subr.bf16.mxu0 0
    %1924 = vmatpush1.bf16.xpose.msra.mxu0 0
    %1925 = vmatprep.subr.bf16.mxu0 0
    %1926 = vmatpush1.bf16.xpose.msra.mxu0 0
    %1927 = vmatprep.subr.bf16.mxu0 0
    %1928 = vmatpush1.bf16.xpose.msra.mxu0 0
    %1929 = vmatprep.subr.bf16.mxu0 0
    %1930 = vmatpush1.bf16.xpose.msra.mxu0 0
    %1931 = vmatprep.subr.bf16.mxu0 0
    %1932 = vmatpush1.bf16.xpose.msra.mxu0 0
    %1933 = vmatprep.subr.bf16.mxu0 %v1246
    %1934 = vmatpush1.bf16.xpose.msra.mxu0 %v1245
    %1935 = vmatprep.subr.bf16.mxu0 0
    %1936 = vmatpush2.bf16.xpose.msra.mxu0 0
    %1937 = vmatprep.subr.bf16.mxu0 0
    %1938 = vmatpush2.bf16.xpose.msra.mxu0 0
    %1939 = vmatprep.subr.bf16.mxu0 0
    %1940 = vmatpush2.bf16.xpose.msra.mxu0 0
    %1941 = vmatprep.subr.bf16.mxu0 0
    %1942 = vmatpush2.bf16.xpose.msra.mxu0 0
    %1943 = vmatprep.subr.bf16.mxu0 0
    %1944 = vmatpush2.bf16.xpose.msra.mxu0 0
    %1945 = vmatprep.subr.bf16.mxu0 0
    %1946 = vmatpush2.bf16.xpose.msra.mxu0 0
    %1947 = vmatprep.subr.bf16.mxu0 0
    %1948 = vmatpush2.bf16.xpose.msra.mxu0 0
    %1949 = vmatprep.subr.bf16.mxu0 0
    %1950 = vmatpush2.bf16.xpose.msra.mxu0 0
    %1951 = vmatprep.mubr.bf16.mxu0 %v265
    %1952 = vmatmul.mubr.bf16.gmra.mxu0 %v263
    %v1953 = vpop.f32.mrf.mxu0
    %v1954 = vadd.f32 %v1914, %v1953
    %v1955 = vpop.f32.mrf.mxu0
    %v1956 = vpop.f32.mrf.mxu0
    %v1957 = vpop.f32.mrf.mxu0
    %1958 = vdwg.mxu0
    %1959 = vmatprep.subr.bf16.mxu0 0
    %1960 = vmatpush1.bf16.xpose.msra.mxu0 0
    %1961 = vmatprep.subr.bf16.mxu0 0
    %1962 = vmatpush1.bf16.xpose.msra.mxu0 0
    %1963 = vmatprep.subr.bf16.mxu0 0
    %1964 = vmatpush1.bf16.xpose.msra.mxu0 0
    %1965 = vmatprep.subr.bf16.mxu0 0
    %1966 = vmatpush1.bf16.xpose.msra.mxu0 0
    %1967 = vmatprep.subr.bf16.mxu0 0
    %1968 = vmatpush1.bf16.xpose.msra.mxu0 0
    %1969 = vmatprep.subr.bf16.mxu0 0
    %1970 = vmatpush1.bf16.xpose.msra.mxu0 0
    %1971 = vmatprep.subr.bf16.mxu0 0
    %1972 = vmatpush1.bf16.xpose.msra.mxu0 0
    %1973 = vmatprep.subr.bf16.mxu0 %v1248
    %1974 = vmatpush1.bf16.xpose.msra.mxu0 %v1247
    %1975 = vmatprep.subr.bf16.mxu0 0
    %1976 = vmatpush2.bf16.xpose.msra.mxu0 0
    %1977 = vmatprep.subr.bf16.mxu0 0
    %1978 = vmatpush2.bf16.xpose.msra.mxu0 0
    %1979 = vmatprep.subr.bf16.mxu0 0
    %1980 = vmatpush2.bf16.xpose.msra.mxu0 0
    %1981 = vmatprep.subr.bf16.mxu0 0
    %1982 = vmatpush2.bf16.xpose.msra.mxu0 0
    %1983 = vmatprep.subr.bf16.mxu0 0
    %1984 = vmatpush2.bf16.xpose.msra.mxu0 0
    %1985 = vmatprep.subr.bf16.mxu0 0
    %1986 = vmatpush2.bf16.xpose.msra.mxu0 0
    %1987 = vmatprep.subr.bf16.mxu0 0
    %1988 = vmatpush2.bf16.xpose.msra.mxu0 0
    %1989 = vmatprep.subr.bf16.mxu0 0
    %1990 = vmatpush2.bf16.xpose.msra.mxu0 0
    %1991 = vmatprep.mubr.bf16.mxu0 %v303
    %1992 = vmatmul.mubr.bf16.gmra.mxu0 %v289
    %v1993 = vpop.f32.mrf.mxu0
    %v1994 = vadd.f32 %v1954, %v1993
    %v1995 = vpop.f32.mrf.mxu0
    %v1996 = vpop.f32.mrf.mxu0
    %v1997 = vpop.f32.mrf.mxu0
    %1998 = vdwg.mxu0
    %1999 = vmatprep.subr.bf16.mxu0 0
    %2000 = vmatpush1.bf16.xpose.msra.mxu0 0
    %2001 = vmatprep.subr.bf16.mxu0 0
    %2002 = vmatpush1.bf16.xpose.msra.mxu0 0
    %2003 = vmatprep.subr.bf16.mxu0 0
    %2004 = vmatpush1.bf16.xpose.msra.mxu0 0
    %2005 = vmatprep.subr.bf16.mxu0 0
    %2006 = vmatpush1.bf16.xpose.msra.mxu0 0
    %2007 = vmatprep.subr.bf16.mxu0 0
    %2008 = vmatpush1.bf16.xpose.msra.mxu0 0
    %2009 = vmatprep.subr.bf16.mxu0 0
    %2010 = vmatpush1.bf16.xpose.msra.mxu0 0
    %2011 = vmatprep.subr.bf16.mxu0 0
    %2012 = vmatpush1.bf16.xpose.msra.mxu0 0
    %2013 = vmatprep.subr.bf16.mxu0 %v1250
    %2014 = vmatpush1.bf16.xpose.msra.mxu0 %v1249
    %2015 = vmatprep.subr.bf16.mxu0 0
    %2016 = vmatpush2.bf16.xpose.msra.mxu0 0
    %2017 = vmatprep.subr.bf16.mxu0 0
    %2018 = vmatpush2.bf16.xpose.msra.mxu0 0
    %2019 = vmatprep.subr.bf16.mxu0 0
    %2020 = vmatpush2.bf16.xpose.msra.mxu0 0
    %2021 = vmatprep.subr.bf16.mxu0 0
    %2022 = vmatpush2.bf16.xpose.msra.mxu0 0
    %2023 = vmatprep.subr.bf16.mxu0 0
    %2024 = vmatpush2.bf16.xpose.msra.mxu0 0
    %2025 = vmatprep.subr.bf16.mxu0 0
    %2026 = vmatpush2.bf16.xpose.msra.mxu0 0
    %2027 = vmatprep.subr.bf16.mxu0 0
    %2028 = vmatpush2.bf16.xpose.msra.mxu0 0
    %2029 = vmatprep.subr.bf16.mxu0 0
    %2030 = vmatpush2.bf16.xpose.msra.mxu0 0
    %2031 = vmatprep.mubr.bf16.mxu0 %v313
    %2032 = vmatmul.mubr.bf16.gmra.mxu0 %v311
    %v2033 = vpop.f32.mrf.mxu0
    %v2034 = vadd.f32 %v1994, %v2033
    %v2035 = vpop.f32.mrf.mxu0
    %v2036 = vpop.f32.mrf.mxu0
    %v2037 = vpop.f32.mrf.mxu0
    %2038 = vdwg.mxu0
    %2039 = vmatprep.subr.bf16.mxu0 0
    %2040 = vmatpush1.bf16.xpose.msra.mxu0 0
    %2041 = vmatprep.subr.bf16.mxu0 0
    %2042 = vmatpush1.bf16.xpose.msra.mxu0 0
    %2043 = vmatprep.subr.bf16.mxu0 0
    %2044 = vmatpush1.bf16.xpose.msra.mxu0 0
    %2045 = vmatprep.subr.bf16.mxu0 0
    %2046 = vmatpush1.bf16.xpose.msra.mxu0 0
    %2047 = vmatprep.subr.bf16.mxu0 0
    %2048 = vmatpush1.bf16.xpose.msra.mxu0 0
    %2049 = vmatprep.subr.bf16.mxu0 0
    %2050 = vmatpush1.bf16.xpose.msra.mxu0 0
    %2051 = vmatprep.subr.bf16.mxu0 0
    %2052 = vmatpush1.bf16.xpose.msra.mxu0 0
    %2053 = vmatprep.subr.bf16.mxu0 %v1252
    %2054 = vmatpush1.bf16.xpose.msra.mxu0 %v1251
    %2055 = vmatprep.subr.bf16.mxu0 0
    %2056 = vmatpush2.bf16.xpose.msra.mxu0 0
    %2057 = vmatprep.subr.bf16.mxu0 0
    %2058 = vmatpush2.bf16.xpose.msra.mxu0 0
    %2059 = vmatprep.subr.bf16.mxu0 0
    %2060 = vmatpush2.bf16.xpose.msra.mxu0 0
    %2061 = vmatprep.subr.bf16.mxu0 0
    %2062 = vmatpush2.bf16.xpose.msra.mxu0 0
    %2063 = vmatprep.subr.bf16.mxu0 0
    %2064 = vmatpush2.bf16.xpose.msra.mxu0 0
    %2065 = vmatprep.subr.bf16.mxu0 0
    %2066 = vmatpush2.bf16.xpose.msra.mxu0 0
    %2067 = vmatprep.subr.bf16.mxu0 0
    %2068 = vmatpush2.bf16.xpose.msra.mxu0 0
    %2069 = vmatprep.subr.bf16.mxu0 0
    %2070 = vmatpush2.bf16.xpose.msra.mxu0 0
    %2071 = vmatprep.mubr.bf16.mxu0 %v310
    %2072 = vmatmul.mubr.bf16.gmra.mxu0 %v296
    %v2073 = vpop.f32.mrf.mxu0
    %v2074 = vadd.f32 %v2034, %v2073
    %v2075 = vpop.f32.mrf.mxu0
    %v2076 = vpop.f32.mrf.mxu0
    %v2077 = vpop.f32.mrf.mxu0
    %2078 = vdwg.mxu0
    %2079 = vmatprep.subr.bf16.mxu0 0
    %2080 = vmatpush1.bf16.xpose.msra.mxu0 0
    %2081 = vmatprep.subr.bf16.mxu0 0
    %2082 = vmatpush1.bf16.xpose.msra.mxu0 0
    %2083 = vmatprep.subr.bf16.mxu0 0
    %2084 = vmatpush1.bf16.xpose.msra.mxu0 0
    %2085 = vmatprep.subr.bf16.mxu0 0
    %2086 = vmatpush1.bf16.xpose.msra.mxu0 0
    %2087 = vmatprep.subr.bf16.mxu0 0
    %2088 = vmatpush1.bf16.xpose.msra.mxu0 0
    %2089 = vmatprep.subr.bf16.mxu0 0
    %2090 = vmatpush1.bf16.xpose.msra.mxu0 0
    %2091 = vmatprep.subr.bf16.mxu0 0
    %2092 = vmatpush1.bf16.xpose.msra.mxu0 0
    %2093 = vmatprep.subr.bf16.mxu0 %v1254
    %2094 = vmatpush1.bf16.xpose.msra.mxu0 %v1253
    %2095 = vmatprep.subr.bf16.mxu0 0
    %2096 = vmatpush2.bf16.xpose.msra.mxu0 0
    %2097 = vmatprep.subr.bf16.mxu0 0
    %2098 = vmatpush2.bf16.xpose.msra.mxu0 0
    %2099 = vmatprep.subr.bf16.mxu0 0
    %2100 = vmatpush2.bf16.xpose.msra.mxu0 0
    %2101 = vmatprep.subr.bf16.mxu0 0
    %2102 = vmatpush2.bf16.xpose.msra.mxu0 0
    %2103 = vmatprep.subr.bf16.mxu0 0
    %2104 = vmatpush2.bf16.xpose.msra.mxu0 0
    %2105 = vmatprep.subr.bf16.mxu0 0
    %2106 = vmatpush2.bf16.xpose.msra.mxu0 0
    %2107 = vmatprep.subr.bf16.mxu0 0
    %2108 = vmatpush2.bf16.xpose.msra.mxu0 0
    %2109 = vmatprep.subr.bf16.mxu0 0
    %2110 = vmatpush2.bf16.xpose.msra.mxu0 0
    %2111 = vmatprep.mubr.bf16.mxu0 %v314
    %2112 = vmatmul.mubr.bf16.gmra.mxu0 %v312
    %v2113 = vpop.f32.mrf.mxu0
    %v2114 = vadd.f32 %v2074, %v2113
    %v2115 = vpop.f32.mrf.mxu0
    %v2116 = vpop.f32.mrf.mxu0
    %v2117 = vpop.f32.mrf.mxu0
    %2118 = vdwg.mxu0
    %2119 = vmatprep.subr.bf16.mxu0 0
    %2120 = vmatpush1.bf16.xpose.msra.mxu0 0
    %2121 = vmatprep.subr.bf16.mxu0 0
    %2122 = vmatpush1.bf16.xpose.msra.mxu0 0
    %2123 = vmatprep.subr.bf16.mxu0 0
    %2124 = vmatpush1.bf16.xpose.msra.mxu0 0
    %2125 = vmatprep.subr.bf16.mxu0 0
    %2126 = vmatpush1.bf16.xpose.msra.mxu0 0
    %2127 = vmatprep.subr.bf16.mxu0 0
    %2128 = vmatpush1.bf16.xpose.msra.mxu0 0
    %2129 = vmatprep.subr.bf16.mxu0 0
    %2130 = vmatpush1.bf16.xpose.msra.mxu0 0
    %2131 = vmatprep.subr.bf16.mxu0 0
    %2132 = vmatpush1.bf16.xpose.msra.mxu0 0
    %2133 = vmatprep.subr.bf16.mxu0 %v1256
    %2134 = vmatpush1.bf16.xpose.msra.mxu0 %v1255
    %2135 = vmatprep.subr.bf16.mxu0 0
    %2136 = vmatpush2.bf16.xpose.msra.mxu0 0
    %2137 = vmatprep.subr.bf16.mxu0 0
    %2138 = vmatpush2.bf16.xpose.msra.mxu0 0
    %2139 = vmatprep.subr.bf16.mxu0 0
    %2140 = vmatpush2.bf16.xpose.msra.mxu0 0
    %2141 = vmatprep.subr.bf16.mxu0 0
    %2142 = vmatpush2.bf16.xpose.msra.mxu0 0
    %2143 = vmatprep.subr.bf16.mxu0 0
    %2144 = vmatpush2.bf16.xpose.msra.mxu0 0
    %2145 = vmatprep.subr.bf16.mxu0 0
    %2146 = vmatpush2.bf16.xpose.msra.mxu0 0
    %2147 = vmatprep.subr.bf16.mxu0 0
    %2148 = vmatpush2.bf16.xpose.msra.mxu0 0
    %2149 = vmatprep.subr.bf16.mxu0 0
    %2150 = vmatpush2.bf16.xpose.msra.mxu0 0
    %2151 = vmatprep.mubr.bf16.mxu0 %v352
    %2152 = vmatmul.mubr.bf16.gmra.mxu0 %v338
    %v2153 = vpop.f32.mrf.mxu0
    %v2154 = vadd.f32 %v2114, %v2153
    %v2155 = vpop.f32.mrf.mxu0
    %v2156 = vpop.f32.mrf.mxu0
    %v2157 = vpop.f32.mrf.mxu0
    %2158 = vdwg.mxu0
    %2159 = vmatprep.subr.bf16.mxu0 0
    %2160 = vmatpush1.bf16.xpose.msra.mxu0 0
    %2161 = vmatprep.subr.bf16.mxu0 0
    %2162 = vmatpush1.bf16.xpose.msra.mxu0 0
    %2163 = vmatprep.subr.bf16.mxu0 0
    %2164 = vmatpush1.bf16.xpose.msra.mxu0 0
    %2165 = vmatprep.subr.bf16.mxu0 0
    %2166 = vmatpush1.bf16.xpose.msra.mxu0 0
    %2167 = vmatprep.subr.bf16.mxu0 0
    %2168 = vmatpush1.bf16.xpose.msra.mxu0 0
    %2169 = vmatprep.subr.bf16.mxu0 0
    %2170 = vmatpush1.bf16.xpose.msra.mxu0 0
    %2171 = vmatprep.subr.bf16.mxu0 0
    %2172 = vmatpush1.bf16.xpose.msra.mxu0 0
    %2173 = vmatprep.subr.bf16.mxu0 %v1258
    %2174 = vmatpush1.bf16.xpose.msra.mxu0 %v1257
    %2175 = vmatprep.subr.bf16.mxu0 0
    %2176 = vmatpush2.bf16.xpose.msra.mxu0 0
    %2177 = vmatprep.subr.bf16.mxu0 0
    %2178 = vmatpush2.bf16.xpose.msra.mxu0 0
    %2179 = vmatprep.subr.bf16.mxu0 0
    %2180 = vmatpush2.bf16.xpose.msra.mxu0 0
    %2181 = vmatprep.subr.bf16.mxu0 0
    %2182 = vmatpush2.bf16.xpose.msra.mxu0 0
    %2183 = vmatprep.subr.bf16.mxu0 0
    %2184 = vmatpush2.bf16.xpose.msra.mxu0 0
    %2185 = vmatprep.subr.bf16.mxu0 0
    %2186 = vmatpush2.bf16.xpose.msra.mxu0 0
    %2187 = vmatprep.subr.bf16.mxu0 0
    %2188 = vmatpush2.bf16.xpose.msra.mxu0 0
    %2189 = vmatprep.subr.bf16.mxu0 0
    %2190 = vmatpush2.bf16.xpose.msra.mxu0 0
    %2191 = vmatprep.mubr.bf16.mxu0 %v362
    %2192 = vmatmul.mubr.bf16.gmra.mxu0 %v360
    %v2193 = vpop.f32.mrf.mxu0
    %v2194 = vadd.f32 %v2154, %v2193
    %v2195 = vpop.f32.mrf.mxu0
    %v2196 = vpop.f32.mrf.mxu0
    %v2197 = vpop.f32.mrf.mxu0
    %2198 = vdwg.mxu0
    %2199 = vmatprep.subr.bf16.mxu0 0
    %2200 = vmatpush1.bf16.xpose.msra.mxu0 0
    %2201 = vmatprep.subr.bf16.mxu0 0
    %2202 = vmatpush1.bf16.xpose.msra.mxu0 0
    %2203 = vmatprep.subr.bf16.mxu0 0
    %2204 = vmatpush1.bf16.xpose.msra.mxu0 0
    %2205 = vmatprep.subr.bf16.mxu0 0
    %2206 = vmatpush1.bf16.xpose.msra.mxu0 0
    %2207 = vmatprep.subr.bf16.mxu0 0
    %2208 = vmatpush1.bf16.xpose.msra.mxu0 0
    %2209 = vmatprep.subr.bf16.mxu0 0
    %2210 = vmatpush1.bf16.xpose.msra.mxu0 0
    %2211 = vmatprep.subr.bf16.mxu0 0
    %2212 = vmatpush1.bf16.xpose.msra.mxu0 0
    %2213 = vmatprep.subr.bf16.mxu0 %v1260
    %2214 = vmatpush1.bf16.xpose.msra.mxu0 %v1259
    %2215 = vmatprep.subr.bf16.mxu0 0
    %2216 = vmatpush2.bf16.xpose.msra.mxu0 0
    %2217 = vmatprep.subr.bf16.mxu0 0
    %2218 = vmatpush2.bf16.xpose.msra.mxu0 0
    %2219 = vmatprep.subr.bf16.mxu0 0
    %2220 = vmatpush2.bf16.xpose.msra.mxu0 0
    %2221 = vmatprep.subr.bf16.mxu0 0
    %2222 = vmatpush2.bf16.xpose.msra.mxu0 0
    %2223 = vmatprep.subr.bf16.mxu0 0
    %2224 = vmatpush2.bf16.xpose.msra.mxu0 0
    %2225 = vmatprep.subr.bf16.mxu0 0
    %2226 = vmatpush2.bf16.xpose.msra.mxu0 0
    %2227 = vmatprep.subr.bf16.mxu0 0
    %2228 = vmatpush2.bf16.xpose.msra.mxu0 0
    %2229 = vmatprep.subr.bf16.mxu0 0
    %2230 = vmatpush2.bf16.xpose.msra.mxu0 0
    %2231 = vmatprep.mubr.bf16.mxu0 %v359
    %2232 = vmatmul.mubr.bf16.gmra.mxu0 %v345
    %v2233 = vpop.f32.mrf.mxu0
    %v2234 = vadd.f32 %v2194, %v2233
    %v2235 = vpop.f32.mrf.mxu0
    %v2236 = vpop.f32.mrf.mxu0
    %v2237 = vpop.f32.mrf.mxu0
    %2238 = vdwg.mxu0
    %2239 = vmatprep.subr.bf16.mxu0 0
    %2240 = vmatpush1.bf16.xpose.msra.mxu0 0
    %2241 = vmatprep.subr.bf16.mxu0 0
    %2242 = vmatpush1.bf16.xpose.msra.mxu0 0
    %2243 = vmatprep.subr.bf16.mxu0 0
    %2244 = vmatpush1.bf16.xpose.msra.mxu0 0
    %2245 = vmatprep.subr.bf16.mxu0 0
    %2246 = vmatpush1.bf16.xpose.msra.mxu0 0
    %2247 = vmatprep.subr.bf16.mxu0 0
    %2248 = vmatpush1.bf16.xpose.msra.mxu0 0
    %2249 = vmatprep.subr.bf16.mxu0 0
    %2250 = vmatpush1.bf16.xpose.msra.mxu0 0
    %2251 = vmatprep.subr.bf16.mxu0 0
    %2252 = vmatpush1.bf16.xpose.msra.mxu0 0
    %2253 = vmatprep.subr.bf16.mxu0 %v1262
    %2254 = vmatpush1.bf16.xpose.msra.mxu0 %v1261
    %2255 = vmatprep.subr.bf16.mxu0 0
    %2256 = vmatpush2.bf16.xpose.msra.mxu0 0
    %2257 = vmatprep.subr.bf16.mxu0 0
    %2258 = vmatpush2.bf16.xpose.msra.mxu0 0
    %2259 = vmatprep.subr.bf16.mxu0 0
    %2260 = vmatpush2.bf16.xpose.msra.mxu0 0
    %2261 = vmatprep.subr.bf16.mxu0 0
    %2262 = vmatpush2.bf16.xpose.msra.mxu0 0
    %2263 = vmatprep.subr.bf16.mxu0 0
    %2264 = vmatpush2.bf16.xpose.msra.mxu0 0
    %2265 = vmatprep.subr.bf16.mxu0 0
    %2266 = vmatpush2.bf16.xpose.msra.mxu0 0
    %2267 = vmatprep.subr.bf16.mxu0 0
    %2268 = vmatpush2.bf16.xpose.msra.mxu0 0
    %2269 = vmatprep.subr.bf16.mxu0 0
    %2270 = vmatpush2.bf16.xpose.msra.mxu0 0
    %2271 = vmatprep.mubr.bf16.mxu0 %v363
    %2272 = vmatmul.mubr.bf16.gmra.mxu0 %v361
    %v2273 = vpop.f32.mrf.mxu0
    %v2274 = vadd.f32 %v2234, %v2273
    %v2275 = vpop.f32.mrf.mxu0
    %v2276 = vpop.f32.mrf.mxu0
    %v2277 = vpop.f32.mrf.mxu0
    %2278 = vdwg.mxu0
    %2279 = vmatprep.subr.bf16.mxu0 0
    %2280 = vmatpush1.bf16.xpose.msra.mxu0 0
    %2281 = vmatprep.subr.bf16.mxu0 0
    %2282 = vmatpush1.bf16.xpose.msra.mxu0 0
    %2283 = vmatprep.subr.bf16.mxu0 0
    %2284 = vmatpush1.bf16.xpose.msra.mxu0 0
    %2285 = vmatprep.subr.bf16.mxu0 0
    %2286 = vmatpush1.bf16.xpose.msra.mxu0 0
    %2287 = vmatprep.subr.bf16.mxu0 0
    %2288 = vmatpush1.bf16.xpose.msra.mxu0 0
    %2289 = vmatprep.subr.bf16.mxu0 0
    %2290 = vmatpush1.bf16.xpose.msra.mxu0 0
    %2291 = vmatprep.subr.bf16.mxu0 0
    %2292 = vmatpush1.bf16.xpose.msra.mxu0 0
    %2293 = vmatprep.subr.bf16.mxu0 %v1264
    %2294 = vmatpush1.bf16.xpose.msra.mxu0 %v1263
    %2295 = vmatprep.subr.bf16.mxu0 0
    %2296 = vmatpush2.bf16.xpose.msra.mxu0 0
    %2297 = vmatprep.subr.bf16.mxu0 0
    %2298 = vmatpush2.bf16.xpose.msra.mxu0 0
    %2299 = vmatprep.subr.bf16.mxu0 0
    %2300 = vmatpush2.bf16.xpose.msra.mxu0 0
    %2301 = vmatprep.subr.bf16.mxu0 0
    %2302 = vmatpush2.bf16.xpose.msra.mxu0 0
    %2303 = vmatprep.subr.bf16.mxu0 0
    %2304 = vmatpush2.bf16.xpose.msra.mxu0 0
    %2305 = vmatprep.subr.bf16.mxu0 0
    %2306 = vmatpush2.bf16.xpose.msra.mxu0 0
    %2307 = vmatprep.subr.bf16.mxu0 0
    %2308 = vmatpush2.bf16.xpose.msra.mxu0 0
    %2309 = vmatprep.subr.bf16.mxu0 0
    %2310 = vmatpush2.bf16.xpose.msra.mxu0 0
    %2311 = vmatprep.mubr.bf16.mxu0 %v401
    %2312 = vmatmul.mubr.bf16.gmra.mxu0 %v387
    %v2313 = vpop.f32.mrf.mxu0
    %v2314 = vadd.f32 %v2274, %v2313
    %v2315 = vpop.f32.mrf.mxu0
    %v2316 = vpop.f32.mrf.mxu0
    %v2317 = vpop.f32.mrf.mxu0
    %2318 = vdwg.mxu0
    %2319 = vmatprep.subr.bf16.mxu0 0
    %2320 = vmatpush1.bf16.xpose.msra.mxu0 0
    %2321 = vmatprep.subr.bf16.mxu0 0
    %2322 = vmatpush1.bf16.xpose.msra.mxu0 0
    %2323 = vmatprep.subr.bf16.mxu0 0
    %2324 = vmatpush1.bf16.xpose.msra.mxu0 0
    %2325 = vmatprep.subr.bf16.mxu0 0
    %2326 = vmatpush1.bf16.xpose.msra.mxu0 0
    %2327 = vmatprep.subr.bf16.mxu0 0
    %2328 = vmatpush1.bf16.xpose.msra.mxu0 0
    %2329 = vmatprep.subr.bf16.mxu0 0
    %2330 = vmatpush1.bf16.xpose.msra.mxu0 0
    %2331 = vmatprep.subr.bf16.mxu0 0
    %2332 = vmatpush1.bf16.xpose.msra.mxu0 0
    %2333 = vmatprep.subr.bf16.mxu0 %v1266
    %2334 = vmatpush1.bf16.xpose.msra.mxu0 %v1265
    %2335 = vmatprep.subr.bf16.mxu0 0
    %2336 = vmatpush2.bf16.xpose.msra.mxu0 0
    %2337 = vmatprep.subr.bf16.mxu0 0
    %2338 = vmatpush2.bf16.xpose.msra.mxu0 0
    %2339 = vmatprep.subr.bf16.mxu0 0
    %2340 = vmatpush2.bf16.xpose.msra.mxu0 0
    %2341 = vmatprep.subr.bf16.mxu0 0
    %2342 = vmatpush2.bf16.xpose.msra.mxu0 0
    %2343 = vmatprep.subr.bf16.mxu0 0
    %2344 = vmatpush2.bf16.xpose.msra.mxu0 0
    %2345 = vmatprep.subr.bf16.mxu0 0
    %2346 = vmatpush2.bf16.xpose.msra.mxu0 0
    %2347 = vmatprep.subr.bf16.mxu0 0
    %2348 = vmatpush2.bf16.xpose.msra.mxu0 0
    %2349 = vmatprep.subr.bf16.mxu0 0
    %2350 = vmatpush2.bf16.xpose.msra.mxu0 0
    %2351 = vmatprep.mubr.bf16.mxu0 %v411
    %2352 = vmatmul.mubr.bf16.gmra.mxu0 %v409
    %v2353 = vpop.f32.mrf.mxu0
    %v2354 = vadd.f32 %v2314, %v2353
    %v2355 = vpop.f32.mrf.mxu0
    %v2356 = vpop.f32.mrf.mxu0
    %v2357 = vpop.f32.mrf.mxu0
    %2358 = vdwg.mxu0
    %2359 = vmatprep.subr.bf16.mxu0 0
    %2360 = vmatpush1.bf16.xpose.msra.mxu0 0
    %2361 = vmatprep.subr.bf16.mxu0 0
    %2362 = vmatpush1.bf16.xpose.msra.mxu0 0
    %2363 = vmatprep.subr.bf16.mxu0 0
    %2364 = vmatpush1.bf16.xpose.msra.mxu0 0
    %2365 = vmatprep.subr.bf16.mxu0 0
    %2366 = vmatpush1.bf16.xpose.msra.mxu0 0
    %2367 = vmatprep.subr.bf16.mxu0 0
    %2368 = vmatpush1.bf16.xpose.msra.mxu0 0
    %2369 = vmatprep.subr.bf16.mxu0 0
    %2370 = vmatpush1.bf16.xpose.msra.mxu0 0
    %2371 = vmatprep.subr.bf16.mxu0 0
    %2372 = vmatpush1.bf16.xpose.msra.mxu0 0
    %2373 = vmatprep.subr.bf16.mxu0 %v1268
    %2374 = vmatpush1.bf16.xpose.msra.mxu0 %v1267
    %2375 = vmatprep.subr.bf16.mxu0 0
    %2376 = vmatpush2.bf16.xpose.msra.mxu0 0
    %2377 = vmatprep.subr.bf16.mxu0 0
    %2378 = vmatpush2.bf16.xpose.msra.mxu0 0
    %2379 = vmatprep.subr.bf16.mxu0 0
    %2380 = vmatpush2.bf16.xpose.msra.mxu0 0
    %2381 = vmatprep.subr.bf16.mxu0 0
    %2382 = vmatpush2.bf16.xpose.msra.mxu0 0
    %2383 = vmatprep.subr.bf16.mxu0 0
    %2384 = vmatpush2.bf16.xpose.msra.mxu0 0
    %2385 = vmatprep.subr.bf16.mxu0 0
    %2386 = vmatpush2.bf16.xpose.msra.mxu0 0
    %2387 = vmatprep.subr.bf16.mxu0 0
    %2388 = vmatpush2.bf16.xpose.msra.mxu0 0
    %2389 = vmatprep.subr.bf16.mxu0 0
    %2390 = vmatpush2.bf16.xpose.msra.mxu0 0
    %2391 = vmatprep.mubr.bf16.mxu0 %v408
    %2392 = vmatmul.mubr.bf16.gmra.mxu0 %v394
    %v2393 = vpop.f32.mrf.mxu0
    %v2394 = vadd.f32 %v2354, %v2393
    %v2395 = vpop.f32.mrf.mxu0
    %v2396 = vpop.f32.mrf.mxu0
    %v2397 = vpop.f32.mrf.mxu0
    %2398 = vdwg.mxu0
    %2399 = vmatprep.subr.bf16.mxu0 0
    %2400 = vmatpush1.bf16.xpose.msra.mxu0 0
    %2401 = vmatprep.subr.bf16.mxu0 0
    %2402 = vmatpush1.bf16.xpose.msra.mxu0 0
    %2403 = vmatprep.subr.bf16.mxu0 0
    %2404 = vmatpush1.bf16.xpose.msra.mxu0 0
    %2405 = vmatprep.subr.bf16.mxu0 0
    %2406 = vmatpush1.bf16.xpose.msra.mxu0 0
    %2407 = vmatprep.subr.bf16.mxu0 0
    %2408 = vmatpush1.bf16.xpose.msra.mxu0 0
    %2409 = vmatprep.subr.bf16.mxu0 0
    %2410 = vmatpush1.bf16.xpose.msra.mxu0 0
    %2411 = vmatprep.subr.bf16.mxu0 0
    %2412 = vmatpush1.bf16.xpose.msra.mxu0 0
    %2413 = vmatprep.subr.bf16.mxu0 %v1270
    %2414 = vmatpush1.bf16.xpose.msra.mxu0 %v1269
    %2415 = vmatprep.subr.bf16.mxu0 0
    %2416 = vmatpush2.bf16.xpose.msra.mxu0 0
    %2417 = vmatprep.subr.bf16.mxu0 0
    %2418 = vmatpush2.bf16.xpose.msra.mxu0 0
    %2419 = vmatprep.subr.bf16.mxu0 0
    %2420 = vmatpush2.bf16.xpose.msra.mxu0 0
    %2421 = vmatprep.subr.bf16.mxu0 0
    %2422 = vmatpush2.bf16.xpose.msra.mxu0 0
    %2423 = vmatprep.subr.bf16.mxu0 0
    %2424 = vmatpush2.bf16.xpose.msra.mxu0 0
    %2425 = vmatprep.subr.bf16.mxu0 0
    %2426 = vmatpush2.bf16.xpose.msra.mxu0 0
    %2427 = vmatprep.subr.bf16.mxu0 0
    %2428 = vmatpush2.bf16.xpose.msra.mxu0 0
    %2429 = vmatprep.subr.bf16.mxu0 0
    %2430 = vmatpush2.bf16.xpose.msra.mxu0 0
    %2431 = vmatprep.mubr.bf16.mxu0 %v412
    %2432 = vmatmul.mubr.bf16.gmra.mxu0 %v410
    %v2433 = vpop.f32.mrf.mxu0
    %v2434 = vadd.f32 %v2394, %v2433
    %v2435 = vpop.f32.mrf.mxu0
    %v2436 = vpop.f32.mrf.mxu0
    %v2437 = vpop.f32.mrf.mxu0
    %2438 = vdwg.mxu0
    %2439 = vmatprep.subr.bf16.mxu0 0
    %2440 = vmatpush1.bf16.xpose.msra.mxu0 0
    %2441 = vmatprep.subr.bf16.mxu0 0
    %2442 = vmatpush1.bf16.xpose.msra.mxu0 0
    %2443 = vmatprep.subr.bf16.mxu0 0
    %2444 = vmatpush1.bf16.xpose.msra.mxu0 0
    %2445 = vmatprep.subr.bf16.mxu0 0
    %2446 = vmatpush1.bf16.xpose.msra.mxu0 0
    %2447 = vmatprep.subr.bf16.mxu0 0
    %2448 = vmatpush1.bf16.xpose.msra.mxu0 0
    %2449 = vmatprep.subr.bf16.mxu0 0
    %2450 = vmatpush1.bf16.xpose.msra.mxu0 0
    %2451 = vmatprep.subr.bf16.mxu0 0
    %2452 = vmatpush1.bf16.xpose.msra.mxu0 0
    %2453 = vmatprep.subr.bf16.mxu0 %v1272
    %2454 = vmatpush1.bf16.xpose.msra.mxu0 %v1271
    %2455 = vmatprep.subr.bf16.mxu0 0
    %2456 = vmatpush2.bf16.xpose.msra.mxu0 0
    %2457 = vmatprep.subr.bf16.mxu0 0
    %2458 = vmatpush2.bf16.xpose.msra.mxu0 0
    %2459 = vmatprep.subr.bf16.mxu0 0
    %2460 = vmatpush2.bf16.xpose.msra.mxu0 0
    %2461 = vmatprep.subr.bf16.mxu0 0
    %2462 = vmatpush2.bf16.xpose.msra.mxu0 0
    %2463 = vmatprep.subr.bf16.mxu0 0
    %2464 = vmatpush2.bf16.xpose.msra.mxu0 0
    %2465 = vmatprep.subr.bf16.mxu0 0
    %2466 = vmatpush2.bf16.xpose.msra.mxu0 0
    %2467 = vmatprep.subr.bf16.mxu0 0
    %2468 = vmatpush2.bf16.xpose.msra.mxu0 0
    %2469 = vmatprep.subr.bf16.mxu0 0
    %2470 = vmatpush2.bf16.xpose.msra.mxu0 0
    %2471 = vmatprep.mubr.bf16.mxu0 %v450
    %2472 = vmatmul.mubr.bf16.gmra.mxu0 %v436
    %v2473 = vpop.f32.mrf.mxu0
    %v2474 = vadd.f32 %v2434, %v2473
    %v2475 = vpop.f32.mrf.mxu0
    %v2476 = vpop.f32.mrf.mxu0
    %v2477 = vpop.f32.mrf.mxu0
    %2478 = vdwg.mxu0
    %2479 = vmatprep.subr.bf16.mxu0 0
    %2480 = vmatpush1.bf16.xpose.msra.mxu0 0
    %2481 = vmatprep.subr.bf16.mxu0 0
    %2482 = vmatpush1.bf16.xpose.msra.mxu0 0
    %2483 = vmatprep.subr.bf16.mxu0 0
    %2484 = vmatpush1.bf16.xpose.msra.mxu0 0
    %2485 = vmatprep.subr.bf16.mxu0 0
    %2486 = vmatpush1.bf16.xpose.msra.mxu0 0
    %2487 = vmatprep.subr.bf16.mxu0 0
    %2488 = vmatpush1.bf16.xpose.msra.mxu0 0
    %2489 = vmatprep.subr.bf16.mxu0 0
    %2490 = vmatpush1.bf16.xpose.msra.mxu0 0
    %2491 = vmatprep.subr.bf16.mxu0 0
    %2492 = vmatpush1.bf16.xpose.msra.mxu0 0
    %2493 = vmatprep.subr.bf16.mxu0 %v1274
    %2494 = vmatpush1.bf16.xpose.msra.mxu0 %v1273
    %2495 = vmatprep.subr.bf16.mxu0 0
    %2496 = vmatpush2.bf16.xpose.msra.mxu0 0
    %2497 = vmatprep.subr.bf16.mxu0 0
    %2498 = vmatpush2.bf16.xpose.msra.mxu0 0
    %2499 = vmatprep.subr.bf16.mxu0 0
    %2500 = vmatpush2.bf16.xpose.msra.mxu0 0
    %2501 = vmatprep.subr.bf16.mxu0 0
    %2502 = vmatpush2.bf16.xpose.msra.mxu0 0
    %2503 = vmatprep.subr.bf16.mxu0 0
    %2504 = vmatpush2.bf16.xpose.msra.mxu0 0
    %2505 = vmatprep.subr.bf16.mxu0 0
    %2506 = vmatpush2.bf16.xpose.msra.mxu0 0
    %2507 = vmatprep.subr.bf16.mxu0 0
    %2508 = vmatpush2.bf16.xpose.msra.mxu0 0
    %2509 = vmatprep.subr.bf16.mxu0 0
    %2510 = vmatpush2.bf16.xpose.msra.mxu0 0
    %2511 = vmatprep.mubr.bf16.mxu0 %v460
    %2512 = vmatmul.mubr.bf16.gmra.mxu0 %v458
    %v2513 = vpop.f32.mrf.mxu0
    %v2514 = vadd.f32 %v2474, %v2513
    %v2515 = vpop.f32.mrf.mxu0
    %v2516 = vpop.f32.mrf.mxu0
    %v2517 = vpop.f32.mrf.mxu0
    %2518 = vdwg.mxu0
    %2519 = vmatprep.subr.bf16.mxu0 0
    %2520 = vmatpush1.bf16.xpose.msra.mxu0 0
    %2521 = vmatprep.subr.bf16.mxu0 0
    %2522 = vmatpush1.bf16.xpose.msra.mxu0 0
    %2523 = vmatprep.subr.bf16.mxu0 0
    %2524 = vmatpush1.bf16.xpose.msra.mxu0 0
    %2525 = vmatprep.subr.bf16.mxu0 0
    %2526 = vmatpush1.bf16.xpose.msra.mxu0 0
    %2527 = vmatprep.subr.bf16.mxu0 0
    %2528 = vmatpush1.bf16.xpose.msra.mxu0 0
    %2529 = vmatprep.subr.bf16.mxu0 0
    %2530 = vmatpush1.bf16.xpose.msra.mxu0 0
    %2531 = vmatprep.subr.bf16.mxu0 0
    %2532 = vmatpush1.bf16.xpose.msra.mxu0 0
    %2533 = vmatprep.subr.bf16.mxu0 %v1276
    %2534 = vmatpush1.bf16.xpose.msra.mxu0 %v1275
    %2535 = vmatprep.subr.bf16.mxu0 0
    %2536 = vmatpush2.bf16.xpose.msra.mxu0 0
    %2537 = vmatprep.subr.bf16.mxu0 0
    %2538 = vmatpush2.bf16.xpose.msra.mxu0 0
    %2539 = vmatprep.subr.bf16.mxu0 0
    %2540 = vmatpush2.bf16.xpose.msra.mxu0 0
    %2541 = vmatprep.subr.bf16.mxu0 0
    %2542 = vmatpush2.bf16.xpose.msra.mxu0 0
    %2543 = vmatprep.subr.bf16.mxu0 0
    %2544 = vmatpush2.bf16.xpose.msra.mxu0 0
    %2545 = vmatprep.subr.bf16.mxu0 0
    %2546 = vmatpush2.bf16.xpose.msra.mxu0 0
    %2547 = vmatprep.subr.bf16.mxu0 0
    %2548 = vmatpush2.bf16.xpose.msra.mxu0 0
    %2549 = vmatprep.subr.bf16.mxu0 0
    %2550 = vmatpush2.bf16.xpose.msra.mxu0 0
    %2551 = vmatprep.mubr.bf16.mxu0 %v457
    %2552 = vmatmul.mubr.bf16.gmra.mxu0 %v443
    %v2553 = vpop.f32.mrf.mxu0
    %v2554 = vadd.f32 %v2514, %v2553
    %v2555 = vpop.f32.mrf.mxu0
    %v2556 = vpop.f32.mrf.mxu0
    %v2557 = vpop.f32.mrf.mxu0
    %2558 = vdwg.mxu0
    %2559 = vmatprep.subr.bf16.mxu0 0
    %2560 = vmatpush1.bf16.xpose.msra.mxu0 0
    %2561 = vmatprep.subr.bf16.mxu0 0
    %2562 = vmatpush1.bf16.xpose.msra.mxu0 0
    %2563 = vmatprep.subr.bf16.mxu0 0
    %2564 = vmatpush1.bf16.xpose.msra.mxu0 0
    %2565 = vmatprep.subr.bf16.mxu0 0
    %2566 = vmatpush1.bf16.xpose.msra.mxu0 0
    %2567 = vmatprep.subr.bf16.mxu0 0
    %2568 = vmatpush1.bf16.xpose.msra.mxu0 0
    %2569 = vmatprep.subr.bf16.mxu0 0
    %2570 = vmatpush1.bf16.xpose.msra.mxu0 0
    %2571 = vmatprep.subr.bf16.mxu0 0
    %2572 = vmatpush1.bf16.xpose.msra.mxu0 0
    %2573 = vmatprep.subr.bf16.mxu0 %v1278
    %2574 = vmatpush1.bf16.xpose.msra.mxu0 %v1277
    %2575 = vmatprep.subr.bf16.mxu0 0
    %2576 = vmatpush2.bf16.xpose.msra.mxu0 0
    %2577 = vmatprep.subr.bf16.mxu0 0
    %2578 = vmatpush2.bf16.xpose.msra.mxu0 0
    %2579 = vmatprep.subr.bf16.mxu0 0
    %2580 = vmatpush2.bf16.xpose.msra.mxu0 0
    %2581 = vmatprep.subr.bf16.mxu0 0
    %2582 = vmatpush2.bf16.xpose.msra.mxu0 0
    %2583 = vmatprep.subr.bf16.mxu0 0
    %2584 = vmatpush2.bf16.xpose.msra.mxu0 0
    %2585 = vmatprep.subr.bf16.mxu0 0
    %2586 = vmatpush2.bf16.xpose.msra.mxu0 0
    %2587 = vmatprep.subr.bf16.mxu0 0
    %2588 = vmatpush2.bf16.xpose.msra.mxu0 0
    %2589 = vmatprep.subr.bf16.mxu0 0
    %2590 = vmatpush2.bf16.xpose.msra.mxu0 0
    %2591 = vmatprep.mubr.bf16.mxu0 %v461
    %2592 = vmatmul.mubr.bf16.gmra.mxu0 %v459
    %v2593 = vpop.f32.mrf.mxu0
    %v2594 = vadd.f32 %v2554, %v2593
    %v2595 = vpop.f32.mrf.mxu0
    %v2596 = vpop.f32.mrf.mxu0
    %v2597 = vpop.f32.mrf.mxu0
    %2598 = vdwg.mxu0
    %2599 = vmatprep.subr.bf16.mxu0 0
    %2600 = vmatpush1.bf16.xpose.msra.mxu0 0
    %2601 = vmatprep.subr.bf16.mxu0 0
    %2602 = vmatpush1.bf16.xpose.msra.mxu0 0
    %2603 = vmatprep.subr.bf16.mxu0 0
    %2604 = vmatpush1.bf16.xpose.msra.mxu0 0
    %2605 = vmatprep.subr.bf16.mxu0 0
    %2606 = vmatpush1.bf16.xpose.msra.mxu0 0
    %2607 = vmatprep.subr.bf16.mxu0 0
    %2608 = vmatpush1.bf16.xpose.msra.mxu0 0
    %2609 = vmatprep.subr.bf16.mxu0 0
    %2610 = vmatpush1.bf16.xpose.msra.mxu0 0
    %2611 = vmatprep.subr.bf16.mxu0 0
    %2612 = vmatpush1.bf16.xpose.msra.mxu0 0
    %2613 = vmatprep.subr.bf16.mxu0 %v1280
    %2614 = vmatpush1.bf16.xpose.msra.mxu0 %v1279
    %2615 = vmatprep.subr.bf16.mxu0 0
    %2616 = vmatpush2.bf16.xpose.msra.mxu0 0
    %2617 = vmatprep.subr.bf16.mxu0 0
    %2618 = vmatpush2.bf16.xpose.msra.mxu0 0
    %2619 = vmatprep.subr.bf16.mxu0 0
    %2620 = vmatpush2.bf16.xpose.msra.mxu0 0
    %2621 = vmatprep.subr.bf16.mxu0 0
    %2622 = vmatpush2.bf16.xpose.msra.mxu0 0
    %2623 = vmatprep.subr.bf16.mxu0 0
    %2624 = vmatpush2.bf16.xpose.msra.mxu0 0
    %2625 = vmatprep.subr.bf16.mxu0 0
    %2626 = vmatpush2.bf16.xpose.msra.mxu0 0
    %2627 = vmatprep.subr.bf16.mxu0 0
    %2628 = vmatpush2.bf16.xpose.msra.mxu0 0
    %2629 = vmatprep.subr.bf16.mxu0 0
    %2630 = vmatpush2.bf16.xpose.msra.mxu0 0
    %2631 = vmatprep.mubr.bf16.mxu0 %v499
    %2632 = vmatmul.mubr.bf16.gmra.mxu0 %v485
    %v2633 = vpop.f32.mrf.mxu0
    %v2634 = vadd.f32 %v2594, %v2633
    %v2635 = vpop.f32.mrf.mxu0
    %v2636 = vpop.f32.mrf.mxu0
    %v2637 = vpop.f32.mrf.mxu0
    %2638 = vdwg.mxu0
    %2639 = vmatprep.subr.bf16.mxu0 0
    %2640 = vmatpush1.bf16.xpose.msra.mxu0 0
    %2641 = vmatprep.subr.bf16.mxu0 0
    %2642 = vmatpush1.bf16.xpose.msra.mxu0 0
    %2643 = vmatprep.subr.bf16.mxu0 0
    %2644 = vmatpush1.bf16.xpose.msra.mxu0 0
    %2645 = vmatprep.subr.bf16.mxu0 0
    %2646 = vmatpush1.bf16.xpose.msra.mxu0 0
    %2647 = vmatprep.subr.bf16.mxu0 0
    %2648 = vmatpush1.bf16.xpose.msra.mxu0 0
    %2649 = vmatprep.subr.bf16.mxu0 0
    %2650 = vmatpush1.bf16.xpose.msra.mxu0 0
    %2651 = vmatprep.subr.bf16.mxu0 0
    %2652 = vmatpush1.bf16.xpose.msra.mxu0 0
    %2653 = vmatprep.subr.bf16.mxu0 %v1282
    %2654 = vmatpush1.bf16.xpose.msra.mxu0 %v1281
    %2655 = vmatprep.subr.bf16.mxu0 0
    %2656 = vmatpush2.bf16.xpose.msra.mxu0 0
    %2657 = vmatprep.subr.bf16.mxu0 0
    %2658 = vmatpush2.bf16.xpose.msra.mxu0 0
    %2659 = vmatprep.subr.bf16.mxu0 0
    %2660 = vmatpush2.bf16.xpose.msra.mxu0 0
    %2661 = vmatprep.subr.bf16.mxu0 0
    %2662 = vmatpush2.bf16.xpose.msra.mxu0 0
    %2663 = vmatprep.subr.bf16.mxu0 0
    %2664 = vmatpush2.bf16.xpose.msra.mxu0 0
    %2665 = vmatprep.subr.bf16.mxu0 0
    %2666 = vmatpush2.bf16.xpose.msra.mxu0 0
    %2667 = vmatprep.subr.bf16.mxu0 0
    %2668 = vmatpush2.bf16.xpose.msra.mxu0 0
    %2669 = vmatprep.subr.bf16.mxu0 0
    %2670 = vmatpush2.bf16.xpose.msra.mxu0 0
    %2671 = vmatprep.mubr.bf16.mxu0 %v509
    %2672 = vmatmul.mubr.bf16.gmra.mxu0 %v507
    %v2673 = vpop.f32.mrf.mxu0
    %v2674 = vadd.f32 %v2634, %v2673
    %v2675 = vpop.f32.mrf.mxu0
    %v2676 = vpop.f32.mrf.mxu0
    %v2677 = vpop.f32.mrf.mxu0
    %2678 = vdwg.mxu0
    %2679 = vmatprep.subr.bf16.mxu0 0
    %2680 = vmatpush1.bf16.xpose.msra.mxu0 0
    %2681 = vmatprep.subr.bf16.mxu0 0
    %2682 = vmatpush1.bf16.xpose.msra.mxu0 0
    %2683 = vmatprep.subr.bf16.mxu0 0
    %2684 = vmatpush1.bf16.xpose.msra.mxu0 0
    %2685 = vmatprep.subr.bf16.mxu0 0
    %2686 = vmatpush1.bf16.xpose.msra.mxu0 0
    %2687 = vmatprep.subr.bf16.mxu0 0
    %2688 = vmatpush1.bf16.xpose.msra.mxu0 0
    %2689 = vmatprep.subr.bf16.mxu0 0
    %2690 = vmatpush1.bf16.xpose.msra.mxu0 0
    %2691 = vmatprep.subr.bf16.mxu0 0
    %2692 = vmatpush1.bf16.xpose.msra.mxu0 0
    %2693 = vmatprep.subr.bf16.mxu0 %v1284
    %2694 = vmatpush1.bf16.xpose.msra.mxu0 %v1283
    %2695 = vmatprep.subr.bf16.mxu0 0
    %2696 = vmatpush2.bf16.xpose.msra.mxu0 0
    %2697 = vmatprep.subr.bf16.mxu0 0
    %2698 = vmatpush2.bf16.xpose.msra.mxu0 0
    %2699 = vmatprep.subr.bf16.mxu0 0
    %2700 = vmatpush2.bf16.xpose.msra.mxu0 0
    %2701 = vmatprep.subr.bf16.mxu0 0
    %2702 = vmatpush2.bf16.xpose.msra.mxu0 0
    %2703 = vmatprep.subr.bf16.mxu0 0
    %2704 = vmatpush2.bf16.xpose.msra.mxu0 0
    %2705 = vmatprep.subr.bf16.mxu0 0
    %2706 = vmatpush2.bf16.xpose.msra.mxu0 0
    %2707 = vmatprep.subr.bf16.mxu0 0
    %2708 = vmatpush2.bf16.xpose.msra.mxu0 0
    %2709 = vmatprep.subr.bf16.mxu0 0
    %2710 = vmatpush2.bf16.xpose.msra.mxu0 0
    %2711 = vmatprep.mubr.bf16.mxu0 %v506
    %2712 = vmatmul.mubr.bf16.gmra.mxu0 %v492
    %v2713 = vpop.f32.mrf.mxu0
    %v2714 = vadd.f32 %v2674, %v2713
    %v2715 = vpop.f32.mrf.mxu0
    %v2716 = vpop.f32.mrf.mxu0
    %v2717 = vpop.f32.mrf.mxu0
    %2718 = vdwg.mxu0
    %2719 = vmatprep.subr.bf16.mxu0 0
    %2720 = vmatpush1.bf16.xpose.msra.mxu0 0
    %2721 = vmatprep.subr.bf16.mxu0 0
    %2722 = vmatpush1.bf16.xpose.msra.mxu0 0
    %2723 = vmatprep.subr.bf16.mxu0 0
    %2724 = vmatpush1.bf16.xpose.msra.mxu0 0
    %2725 = vmatprep.subr.bf16.mxu0 0
    %2726 = vmatpush1.bf16.xpose.msra.mxu0 0
    %2727 = vmatprep.subr.bf16.mxu0 0
    %2728 = vmatpush1.bf16.xpose.msra.mxu0 0
    %2729 = vmatprep.subr.bf16.mxu0 0
    %2730 = vmatpush1.bf16.xpose.msra.mxu0 0
    %2731 = vmatprep.subr.bf16.mxu0 0
    %2732 = vmatpush1.bf16.xpose.msra.mxu0 0
    %2733 = vmatprep.subr.bf16.mxu0 %v1286
    %2734 = vmatpush1.bf16.xpose.msra.mxu0 %v1285
    %2735 = vmatprep.subr.bf16.mxu0 0
    %2736 = vmatpush2.bf16.xpose.msra.mxu0 0
    %2737 = vmatprep.subr.bf16.mxu0 0
    %2738 = vmatpush2.bf16.xpose.msra.mxu0 0
    %2739 = vmatprep.subr.bf16.mxu0 0
    %2740 = vmatpush2.bf16.xpose.msra.mxu0 0
    %2741 = vmatprep.subr.bf16.mxu0 0
    %2742 = vmatpush2.bf16.xpose.msra.mxu0 0
    %2743 = vmatprep.subr.bf16.mxu0 0
    %2744 = vmatpush2.bf16.xpose.msra.mxu0 0
    %2745 = vmatprep.subr.bf16.mxu0 0
    %2746 = vmatpush2.bf16.xpose.msra.mxu0 0
    %2747 = vmatprep.subr.bf16.mxu0 0
    %2748 = vmatpush2.bf16.xpose.msra.mxu0 0
    %2749 = vmatprep.subr.bf16.mxu0 0
    %2750 = vmatpush2.bf16.xpose.msra.mxu0 0
    %2751 = vmatprep.mubr.bf16.mxu0 %v510
    %2752 = vmatmul.mubr.bf16.gmra.mxu0 %v508
    %v2753 = vpop.f32.mrf.mxu0
    %v2754 = vadd.f32 %v2714, %v2753
    %v2755 = vpop.f32.mrf.mxu0
    %v2756 = vpop.f32.mrf.mxu0
    %v2757 = vpop.f32.mrf.mxu0
    %2758 = vdwg.mxu0
    %2759 = vmatprep.subr.bf16.mxu0 0
    %2760 = vmatpush1.bf16.xpose.msra.mxu0 0
    %2761 = vmatprep.subr.bf16.mxu0 0
    %2762 = vmatpush1.bf16.xpose.msra.mxu0 0
    %2763 = vmatprep.subr.bf16.mxu0 0
    %2764 = vmatpush1.bf16.xpose.msra.mxu0 0
    %2765 = vmatprep.subr.bf16.mxu0 0
    %2766 = vmatpush1.bf16.xpose.msra.mxu0 0
    %2767 = vmatprep.subr.bf16.mxu0 0
    %2768 = vmatpush1.bf16.xpose.msra.mxu0 0
    %2769 = vmatprep.subr.bf16.mxu0 0
    %2770 = vmatpush1.bf16.xpose.msra.mxu0 0
    %2771 = vmatprep.subr.bf16.mxu0 0
    %2772 = vmatpush1.bf16.xpose.msra.mxu0 0
    %2773 = vmatprep.subr.bf16.mxu0 %v1288
    %2774 = vmatpush1.bf16.xpose.msra.mxu0 %v1287
    %2775 = vmatprep.subr.bf16.mxu0 0
    %2776 = vmatpush2.bf16.xpose.msra.mxu0 0
    %2777 = vmatprep.subr.bf16.mxu0 0
    %2778 = vmatpush2.bf16.xpose.msra.mxu0 0
    %2779 = vmatprep.subr.bf16.mxu0 0
    %2780 = vmatpush2.bf16.xpose.msra.mxu0 0
    %2781 = vmatprep.subr.bf16.mxu0 0
    %2782 = vmatpush2.bf16.xpose.msra.mxu0 0
    %2783 = vmatprep.subr.bf16.mxu0 0
    %2784 = vmatpush2.bf16.xpose.msra.mxu0 0
    %2785 = vmatprep.subr.bf16.mxu0 0
    %2786 = vmatpush2.bf16.xpose.msra.mxu0 0
    %2787 = vmatprep.subr.bf16.mxu0 0
    %2788 = vmatpush2.bf16.xpose.msra.mxu0 0
    %2789 = vmatprep.subr.bf16.mxu0 0
    %2790 = vmatpush2.bf16.xpose.msra.mxu0 0
    %2791 = vmatprep.mubr.bf16.mxu0 %v548
    %2792 = vmatmul.mubr.bf16.gmra.mxu0 %v534
    %v2793 = vpop.f32.mrf.mxu0
    %v2794 = vadd.f32 %v2754, %v2793
    %v2795 = vpop.f32.mrf.mxu0
    %v2796 = vpop.f32.mrf.mxu0
    %v2797 = vpop.f32.mrf.mxu0
    %2798 = vdwg.mxu0
    %2799 = vmatprep.subr.bf16.mxu0 0
    %2800 = vmatpush1.bf16.xpose.msra.mxu0 0
    %2801 = vmatprep.subr.bf16.mxu0 0
    %2802 = vmatpush1.bf16.xpose.msra.mxu0 0
    %2803 = vmatprep.subr.bf16.mxu0 0
    %2804 = vmatpush1.bf16.xpose.msra.mxu0 0
    %2805 = vmatprep.subr.bf16.mxu0 0
    %2806 = vmatpush1.bf16.xpose.msra.mxu0 0
    %2807 = vmatprep.subr.bf16.mxu0 0
    %2808 = vmatpush1.bf16.xpose.msra.mxu0 0
    %2809 = vmatprep.subr.bf16.mxu0 0
    %2810 = vmatpush1.bf16.xpose.msra.mxu0 0
    %2811 = vmatprep.subr.bf16.mxu0 0
    %2812 = vmatpush1.bf16.xpose.msra.mxu0 0
    %2813 = vmatprep.subr.bf16.mxu0 %v1290
    %2814 = vmatpush1.bf16.xpose.msra.mxu0 %v1289
    %2815 = vmatprep.subr.bf16.mxu0 0
    %2816 = vmatpush2.bf16.xpose.msra.mxu0 0
    %2817 = vmatprep.subr.bf16.mxu0 0
    %2818 = vmatpush2.bf16.xpose.msra.mxu0 0
    %2819 = vmatprep.subr.bf16.mxu0 0
    %2820 = vmatpush2.bf16.xpose.msra.mxu0 0
    %2821 = vmatprep.subr.bf16.mxu0 0
    %2822 = vmatpush2.bf16.xpose.msra.mxu0 0
    %2823 = vmatprep.subr.bf16.mxu0 0
    %2824 = vmatpush2.bf16.xpose.msra.mxu0 0
    %2825 = vmatprep.subr.bf16.mxu0 0
    %2826 = vmatpush2.bf16.xpose.msra.mxu0 0
    %2827 = vmatprep.subr.bf16.mxu0 0
    %2828 = vmatpush2.bf16.xpose.msra.mxu0 0
    %2829 = vmatprep.subr.bf16.mxu0 0
    %2830 = vmatpush2.bf16.xpose.msra.mxu0 0
    %2831 = vmatprep.mubr.bf16.mxu0 %v558
    %2832 = vmatmul.mubr.bf16.gmra.mxu0 %v556
    %v2833 = vpop.f32.mrf.mxu0
    %v2834 = vadd.f32 %v2794, %v2833
    %v2835 = vpop.f32.mrf.mxu0
    %v2836 = vpop.f32.mrf.mxu0
    %v2837 = vpop.f32.mrf.mxu0
    %2838 = vdwg.mxu0
    %2839 = vmatprep.subr.bf16.mxu0 0
    %2840 = vmatpush1.bf16.xpose.msra.mxu0 0
    %2841 = vmatprep.subr.bf16.mxu0 0
    %2842 = vmatpush1.bf16.xpose.msra.mxu0 0
    %2843 = vmatprep.subr.bf16.mxu0 0
    %2844 = vmatpush1.bf16.xpose.msra.mxu0 0
    %2845 = vmatprep.subr.bf16.mxu0 0
    %2846 = vmatpush1.bf16.xpose.msra.mxu0 0
    %2847 = vmatprep.subr.bf16.mxu0 0
    %2848 = vmatpush1.bf16.xpose.msra.mxu0 0
    %2849 = vmatprep.subr.bf16.mxu0 0
    %2850 = vmatpush1.bf16.xpose.msra.mxu0 0
    %2851 = vmatprep.subr.bf16.mxu0 0
    %2852 = vmatpush1.bf16.xpose.msra.mxu0 0
    %2853 = vmatprep.subr.bf16.mxu0 %v1292
    %2854 = vmatpush1.bf16.xpose.msra.mxu0 %v1291
    %2855 = vmatprep.subr.bf16.mxu0 0
    %2856 = vmatpush2.bf16.xpose.msra.mxu0 0
    %2857 = vmatprep.subr.bf16.mxu0 0
    %2858 = vmatpush2.bf16.xpose.msra.mxu0 0
    %2859 = vmatprep.subr.bf16.mxu0 0
    %2860 = vmatpush2.bf16.xpose.msra.mxu0 0
    %2861 = vmatprep.subr.bf16.mxu0 0
    %2862 = vmatpush2.bf16.xpose.msra.mxu0 0
    %2863 = vmatprep.subr.bf16.mxu0 0
    %2864 = vmatpush2.bf16.xpose.msra.mxu0 0
    %2865 = vmatprep.subr.bf16.mxu0 0
    %2866 = vmatpush2.bf16.xpose.msra.mxu0 0
    %2867 = vmatprep.subr.bf16.mxu0 0
    %2868 = vmatpush2.bf16.xpose.msra.mxu0 0
    %2869 = vmatprep.subr.bf16.mxu0 0
    %2870 = vmatpush2.bf16.xpose.msra.mxu0 0
    %2871 = vmatprep.mubr.bf16.mxu0 %v555
    %2872 = vmatmul.mubr.bf16.gmra.mxu0 %v541
    %v2873 = vpop.f32.mrf.mxu0
    %v2874 = vadd.f32 %v2834, %v2873
    %v2875 = vpop.f32.mrf.mxu0
    %v2876 = vpop.f32.mrf.mxu0
    %v2877 = vpop.f32.mrf.mxu0
    %2878 = vdwg.mxu0
    %2879 = vmatprep.subr.bf16.mxu0 0
    %2880 = vmatpush1.bf16.xpose.msra.mxu0 0
    %2881 = vmatprep.subr.bf16.mxu0 0
    %2882 = vmatpush1.bf16.xpose.msra.mxu0 0
    %2883 = vmatprep.subr.bf16.mxu0 0
    %2884 = vmatpush1.bf16.xpose.msra.mxu0 0
    %2885 = vmatprep.subr.bf16.mxu0 0
    %2886 = vmatpush1.bf16.xpose.msra.mxu0 0
    %2887 = vmatprep.subr.bf16.mxu0 0
    %2888 = vmatpush1.bf16.xpose.msra.mxu0 0
    %2889 = vmatprep.subr.bf16.mxu0 0
    %2890 = vmatpush1.bf16.xpose.msra.mxu0 0
    %2891 = vmatprep.subr.bf16.mxu0 0
    %2892 = vmatpush1.bf16.xpose.msra.mxu0 0
    %2893 = vmatprep.subr.bf16.mxu0 %v1294
    %2894 = vmatpush1.bf16.xpose.msra.mxu0 %v1293
    %2895 = vmatprep.subr.bf16.mxu0 0
    %2896 = vmatpush2.bf16.xpose.msra.mxu0 0
    %2897 = vmatprep.subr.bf16.mxu0 0
    %2898 = vmatpush2.bf16.xpose.msra.mxu0 0
    %2899 = vmatprep.subr.bf16.mxu0 0
    %2900 = vmatpush2.bf16.xpose.msra.mxu0 0
    %2901 = vmatprep.subr.bf16.mxu0 0
    %2902 = vmatpush2.bf16.xpose.msra.mxu0 0
    %2903 = vmatprep.subr.bf16.mxu0 0
    %2904 = vmatpush2.bf16.xpose.msra.mxu0 0
    %2905 = vmatprep.subr.bf16.mxu0 0
    %2906 = vmatpush2.bf16.xpose.msra.mxu0 0
    %2907 = vmatprep.subr.bf16.mxu0 0
    %2908 = vmatpush2.bf16.xpose.msra.mxu0 0
    %2909 = vmatprep.subr.bf16.mxu0 0
    %2910 = vmatpush2.bf16.xpose.msra.mxu0 0
    %2911 = vmatprep.mubr.bf16.mxu0 %v559
    %2912 = vmatmul.mubr.bf16.gmra.mxu0 %v557
    %v2913 = vpop.f32.mrf.mxu0
    %v2914 = vadd.f32 %v2874, %v2913
    %v2915 = vpop.f32.mrf.mxu0
    %v2916 = vpop.f32.mrf.mxu0
    %v2917 = vpop.f32.mrf.mxu0
    %2918 = vdwg.mxu0
    %2919 = vmatprep.subr.bf16.mxu0 0
    %2920 = vmatpush1.bf16.xpose.msra.mxu0 0
    %2921 = vmatprep.subr.bf16.mxu0 0
    %2922 = vmatpush1.bf16.xpose.msra.mxu0 0
    %2923 = vmatprep.subr.bf16.mxu0 0
    %2924 = vmatpush1.bf16.xpose.msra.mxu0 0
    %2925 = vmatprep.subr.bf16.mxu0 0
    %2926 = vmatpush1.bf16.xpose.msra.mxu0 0
    %2927 = vmatprep.subr.bf16.mxu0 0
    %2928 = vmatpush1.bf16.xpose.msra.mxu0 0
    %2929 = vmatprep.subr.bf16.mxu0 0
    %2930 = vmatpush1.bf16.xpose.msra.mxu0 0
    %2931 = vmatprep.subr.bf16.mxu0 0
    %2932 = vmatpush1.bf16.xpose.msra.mxu0 0
    %2933 = vmatprep.subr.bf16.mxu0 %v1296
    %2934 = vmatpush1.bf16.xpose.msra.mxu0 %v1295
    %2935 = vmatprep.subr.bf16.mxu0 0
    %2936 = vmatpush2.bf16.xpose.msra.mxu0 0
    %2937 = vmatprep.subr.bf16.mxu0 0
    %2938 = vmatpush2.bf16.xpose.msra.mxu0 0
    %2939 = vmatprep.subr.bf16.mxu0 0
    %2940 = vmatpush2.bf16.xpose.msra.mxu0 0
    %2941 = vmatprep.subr.bf16.mxu0 0
    %2942 = vmatpush2.bf16.xpose.msra.mxu0 0
    %2943 = vmatprep.subr.bf16.mxu0 0
    %2944 = vmatpush2.bf16.xpose.msra.mxu0 0
    %2945 = vmatprep.subr.bf16.mxu0 0
    %2946 = vmatpush2.bf16.xpose.msra.mxu0 0
    %2947 = vmatprep.subr.bf16.mxu0 0
    %2948 = vmatpush2.bf16.xpose.msra.mxu0 0
    %2949 = vmatprep.subr.bf16.mxu0 0
    %2950 = vmatpush2.bf16.xpose.msra.mxu0 0
    %2951 = vmatprep.mubr.bf16.mxu0 %v597
    %2952 = vmatmul.mubr.bf16.gmra.mxu0 %v583
    %v2953 = vpop.f32.mrf.mxu0
    %v2954 = vadd.f32 %v2914, %v2953
    %v2955 = vpop.f32.mrf.mxu0
    %v2956 = vpop.f32.mrf.mxu0
    %v2957 = vpop.f32.mrf.mxu0
    %2958 = vdwg.mxu0
    %2959 = vmatprep.subr.bf16.mxu0 0
    %2960 = vmatpush1.bf16.xpose.msra.mxu0 0
    %2961 = vmatprep.subr.bf16.mxu0 0
    %2962 = vmatpush1.bf16.xpose.msra.mxu0 0
    %2963 = vmatprep.subr.bf16.mxu0 0
    %2964 = vmatpush1.bf16.xpose.msra.mxu0 0
    %2965 = vmatprep.subr.bf16.mxu0 0
    %2966 = vmatpush1.bf16.xpose.msra.mxu0 0
    %2967 = vmatprep.subr.bf16.mxu0 0
    %2968 = vmatpush1.bf16.xpose.msra.mxu0 0
    %2969 = vmatprep.subr.bf16.mxu0 0
    %2970 = vmatpush1.bf16.xpose.msra.mxu0 0
    %2971 = vmatprep.subr.bf16.mxu0 0
    %2972 = vmatpush1.bf16.xpose.msra.mxu0 0
    %2973 = vmatprep.subr.bf16.mxu0 %v1298
    %2974 = vmatpush1.bf16.xpose.msra.mxu0 %v1297
    %2975 = vmatprep.subr.bf16.mxu0 0
    %2976 = vmatpush2.bf16.xpose.msra.mxu0 0
    %2977 = vmatprep.subr.bf16.mxu0 0
    %2978 = vmatpush2.bf16.xpose.msra.mxu0 0
    %2979 = vmatprep.subr.bf16.mxu0 0
    %2980 = vmatpush2.bf16.xpose.msra.mxu0 0
    %2981 = vmatprep.subr.bf16.mxu0 0
    %2982 = vmatpush2.bf16.xpose.msra.mxu0 0
    %2983 = vmatprep.subr.bf16.mxu0 0
    %2984 = vmatpush2.bf16.xpose.msra.mxu0 0
    %2985 = vmatprep.subr.bf16.mxu0 0
    %2986 = vmatpush2.bf16.xpose.msra.mxu0 0
    %2987 = vmatprep.subr.bf16.mxu0 0
    %2988 = vmatpush2.bf16.xpose.msra.mxu0 0
    %2989 = vmatprep.subr.bf16.mxu0 0
    %2990 = vmatpush2.bf16.xpose.msra.mxu0 0
    %2991 = vmatprep.mubr.bf16.mxu0 %v607
    %2992 = vmatmul.mubr.bf16.gmra.mxu0 %v605
    %v2993 = vpop.f32.mrf.mxu0
    %v2994 = vadd.f32 %v2954, %v2993
    %v2995 = vpop.f32.mrf.mxu0
    %v2996 = vpop.f32.mrf.mxu0
    %v2997 = vpop.f32.mrf.mxu0
    %2998 = vdwg.mxu0
    %2999 = vmatprep.subr.bf16.mxu0 0
    %3000 = vmatpush1.bf16.xpose.msra.mxu0 0
    %3001 = vmatprep.subr.bf16.mxu0 0
    %3002 = vmatpush1.bf16.xpose.msra.mxu0 0
    %3003 = vmatprep.subr.bf16.mxu0 0
    %3004 = vmatpush1.bf16.xpose.msra.mxu0 0
    %3005 = vmatprep.subr.bf16.mxu0 0
    %3006 = vmatpush1.bf16.xpose.msra.mxu0 0
    %3007 = vmatprep.subr.bf16.mxu0 0
    %3008 = vmatpush1.bf16.xpose.msra.mxu0 0
    %3009 = vmatprep.subr.bf16.mxu0 0
    %3010 = vmatpush1.bf16.xpose.msra.mxu0 0
    %3011 = vmatprep.subr.bf16.mxu0 0
    %3012 = vmatpush1.bf16.xpose.msra.mxu0 0
    %3013 = vmatprep.subr.bf16.mxu0 %v1300
    %3014 = vmatpush1.bf16.xpose.msra.mxu0 %v1299
    %3015 = vmatprep.subr.bf16.mxu0 0
    %3016 = vmatpush2.bf16.xpose.msra.mxu0 0
    %3017 = vmatprep.subr.bf16.mxu0 0
    %3018 = vmatpush2.bf16.xpose.msra.mxu0 0
    %3019 = vmatprep.subr.bf16.mxu0 0
    %3020 = vmatpush2.bf16.xpose.msra.mxu0 0
    %3021 = vmatprep.subr.bf16.mxu0 0
    %3022 = vmatpush2.bf16.xpose.msra.mxu0 0
    %3023 = vmatprep.subr.bf16.mxu0 0
    %3024 = vmatpush2.bf16.xpose.msra.mxu0 0
    %3025 = vmatprep.subr.bf16.mxu0 0
    %3026 = vmatpush2.bf16.xpose.msra.mxu0 0
    %3027 = vmatprep.subr.bf16.mxu0 0
    %3028 = vmatpush2.bf16.xpose.msra.mxu0 0
    %3029 = vmatprep.subr.bf16.mxu0 0
    %3030 = vmatpush2.bf16.xpose.msra.mxu0 0
    %3031 = vmatprep.mubr.bf16.mxu0 %v604
    %3032 = vmatmul.mubr.bf16.gmra.mxu0 %v590
    %v3033 = vpop.f32.mrf.mxu0
    %v3034 = vadd.f32 %v2994, %v3033
    %v3035 = vpop.f32.mrf.mxu0
    %v3036 = vpop.f32.mrf.mxu0
    %v3037 = vpop.f32.mrf.mxu0
    %3038 = vdwg.mxu0
    %3039 = vmatprep.subr.bf16.mxu0 0
    %3040 = vmatpush1.bf16.xpose.msra.mxu0 0
    %3041 = vmatprep.subr.bf16.mxu0 0
    %3042 = vmatpush1.bf16.xpose.msra.mxu0 0
    %3043 = vmatprep.subr.bf16.mxu0 0
    %3044 = vmatpush1.bf16.xpose.msra.mxu0 0
    %3045 = vmatprep.subr.bf16.mxu0 0
    %3046 = vmatpush1.bf16.xpose.msra.mxu0 0
    %3047 = vmatprep.subr.bf16.mxu0 0
    %3048 = vmatpush1.bf16.xpose.msra.mxu0 0
    %3049 = vmatprep.subr.bf16.mxu0 0
    %3050 = vmatpush1.bf16.xpose.msra.mxu0 0
    %3051 = vmatprep.subr.bf16.mxu0 0
    %3052 = vmatpush1.bf16.xpose.msra.mxu0 0
    %3053 = vmatprep.subr.bf16.mxu0 %v1302
    %3054 = vmatpush1.bf16.xpose.msra.mxu0 %v1301
    %3055 = vmatprep.subr.bf16.mxu0 0
    %3056 = vmatpush2.bf16.xpose.msra.mxu0 0
    %3057 = vmatprep.subr.bf16.mxu0 0
    %3058 = vmatpush2.bf16.xpose.msra.mxu0 0
    %3059 = vmatprep.subr.bf16.mxu0 0
    %3060 = vmatpush2.bf16.xpose.msra.mxu0 0
    %3061 = vmatprep.subr.bf16.mxu0 0
    %3062 = vmatpush2.bf16.xpose.msra.mxu0 0
    %3063 = vmatprep.subr.bf16.mxu0 0
    %3064 = vmatpush2.bf16.xpose.msra.mxu0 0
    %3065 = vmatprep.subr.bf16.mxu0 0
    %3066 = vmatpush2.bf16.xpose.msra.mxu0 0
    %3067 = vmatprep.subr.bf16.mxu0 0
    %3068 = vmatpush2.bf16.xpose.msra.mxu0 0
    %3069 = vmatprep.subr.bf16.mxu0 0
    %3070 = vmatpush2.bf16.xpose.msra.mxu0 0
    %3071 = vmatprep.mubr.bf16.mxu0 %v608
    %3072 = vmatmul.mubr.bf16.gmra.mxu0 %v606
    %v3073 = vpop.f32.mrf.mxu0
    %v3074 = vadd.f32 %v3034, %v3073
    %v3075 = vpop.f32.mrf.mxu0
    %v3076 = vpop.f32.mrf.mxu0
    %v3077 = vpop.f32.mrf.mxu0
    %3078 = vdwg.mxu0
    %3079 = vmatprep.subr.bf16.mxu0 0
    %3080 = vmatpush1.bf16.xpose.msra.mxu0 0
    %3081 = vmatprep.subr.bf16.mxu0 0
    %3082 = vmatpush1.bf16.xpose.msra.mxu0 0
    %3083 = vmatprep.subr.bf16.mxu0 0
    %3084 = vmatpush1.bf16.xpose.msra.mxu0 0
    %3085 = vmatprep.subr.bf16.mxu0 0
    %3086 = vmatpush1.bf16.xpose.msra.mxu0 0
    %3087 = vmatprep.subr.bf16.mxu0 0
    %3088 = vmatpush1.bf16.xpose.msra.mxu0 0
    %3089 = vmatprep.subr.bf16.mxu0 0
    %3090 = vmatpush1.bf16.xpose.msra.mxu0 0
    %3091 = vmatprep.subr.bf16.mxu0 0
    %3092 = vmatpush1.bf16.xpose.msra.mxu0 0
    %3093 = vmatprep.subr.bf16.mxu0 %v1304
    %3094 = vmatpush1.bf16.xpose.msra.mxu0 %v1303
    %3095 = vmatprep.subr.bf16.mxu0 0
    %3096 = vmatpush2.bf16.xpose.msra.mxu0 0
    %3097 = vmatprep.subr.bf16.mxu0 0
    %3098 = vmatpush2.bf16.xpose.msra.mxu0 0
    %3099 = vmatprep.subr.bf16.mxu0 0
    %3100 = vmatpush2.bf16.xpose.msra.mxu0 0
    %3101 = vmatprep.subr.bf16.mxu0 0
    %3102 = vmatpush2.bf16.xpose.msra.mxu0 0
    %3103 = vmatprep.subr.bf16.mxu0 0
    %3104 = vmatpush2.bf16.xpose.msra.mxu0 0
    %3105 = vmatprep.subr.bf16.mxu0 0
    %3106 = vmatpush2.bf16.xpose.msra.mxu0 0
    %3107 = vmatprep.subr.bf16.mxu0 0
    %3108 = vmatpush2.bf16.xpose.msra.mxu0 0
    %3109 = vmatprep.subr.bf16.mxu0 0
    %3110 = vmatpush2.bf16.xpose.msra.mxu0 0
    %3111 = vmatprep.mubr.bf16.mxu0 %v646
    %3112 = vmatmul.mubr.bf16.gmra.mxu0 %v632
    %v3113 = vpop.f32.mrf.mxu0
    %v3114 = vadd.f32 %v3074, %v3113
    %v3115 = vpop.f32.mrf.mxu0
    %v3116 = vpop.f32.mrf.mxu0
    %v3117 = vpop.f32.mrf.mxu0
    %3118 = vdwg.mxu0
    %3119 = vmatprep.subr.bf16.mxu0 0
    %3120 = vmatpush1.bf16.xpose.msra.mxu0 0
    %3121 = vmatprep.subr.bf16.mxu0 0
    %3122 = vmatpush1.bf16.xpose.msra.mxu0 0
    %3123 = vmatprep.subr.bf16.mxu0 0
    %3124 = vmatpush1.bf16.xpose.msra.mxu0 0
    %3125 = vmatprep.subr.bf16.mxu0 0
    %3126 = vmatpush1.bf16.xpose.msra.mxu0 0
    %3127 = vmatprep.subr.bf16.mxu0 0
    %3128 = vmatpush1.bf16.xpose.msra.mxu0 0
    %3129 = vmatprep.subr.bf16.mxu0 0
    %3130 = vmatpush1.bf16.xpose.msra.mxu0 0
    %3131 = vmatprep.subr.bf16.mxu0 0
    %3132 = vmatpush1.bf16.xpose.msra.mxu0 0
    %3133 = vmatprep.subr.bf16.mxu0 %v1306
    %3134 = vmatpush1.bf16.xpose.msra.mxu0 %v1305
    %3135 = vmatprep.subr.bf16.mxu0 0
    %3136 = vmatpush2.bf16.xpose.msra.mxu0 0
    %3137 = vmatprep.subr.bf16.mxu0 0
    %3138 = vmatpush2.bf16.xpose.msra.mxu0 0
    %3139 = vmatprep.subr.bf16.mxu0 0
    %3140 = vmatpush2.bf16.xpose.msra.mxu0 0
    %3141 = vmatprep.subr.bf16.mxu0 0
    %3142 = vmatpush2.bf16.xpose.msra.mxu0 0
    %3143 = vmatprep.subr.bf16.mxu0 0
    %3144 = vmatpush2.bf16.xpose.msra.mxu0 0
    %3145 = vmatprep.subr.bf16.mxu0 0
    %3146 = vmatpush2.bf16.xpose.msra.mxu0 0
    %3147 = vmatprep.subr.bf16.mxu0 0
    %3148 = vmatpush2.bf16.xpose.msra.mxu0 0
    %3149 = vmatprep.subr.bf16.mxu0 0
    %3150 = vmatpush2.bf16.xpose.msra.mxu0 0
    %3151 = vmatprep.mubr.bf16.mxu0 %v656
    %3152 = vmatmul.mubr.bf16.gmra.mxu0 %v654
    %v3153 = vpop.f32.mrf.mxu0
    %v3154 = vadd.f32 %v3114, %v3153
    %v3155 = vpop.f32.mrf.mxu0
    %v3156 = vpop.f32.mrf.mxu0
    %v3157 = vpop.f32.mrf.mxu0
    %3158 = vdwg.mxu0
    %3159 = vmatprep.subr.bf16.mxu0 0
    %3160 = vmatpush1.bf16.xpose.msra.mxu0 0
    %3161 = vmatprep.subr.bf16.mxu0 0
    %3162 = vmatpush1.bf16.xpose.msra.mxu0 0
    %3163 = vmatprep.subr.bf16.mxu0 0
    %3164 = vmatpush1.bf16.xpose.msra.mxu0 0
    %3165 = vmatprep.subr.bf16.mxu0 0
    %3166 = vmatpush1.bf16.xpose.msra.mxu0 0
    %3167 = vmatprep.subr.bf16.mxu0 0
    %3168 = vmatpush1.bf16.xpose.msra.mxu0 0
    %3169 = vmatprep.subr.bf16.mxu0 0
    %3170 = vmatpush1.bf16.xpose.msra.mxu0 0
    %3171 = vmatprep.subr.bf16.mxu0 0
    %3172 = vmatpush1.bf16.xpose.msra.mxu0 0
    %3173 = vmatprep.subr.bf16.mxu0 %v1308
    %3174 = vmatpush1.bf16.xpose.msra.mxu0 %v1307
    %3175 = vmatprep.subr.bf16.mxu0 0
    %3176 = vmatpush2.bf16.xpose.msra.mxu0 0
    %3177 = vmatprep.subr.bf16.mxu0 0
    %3178 = vmatpush2.bf16.xpose.msra.mxu0 0
    %3179 = vmatprep.subr.bf16.mxu0 0
    %3180 = vmatpush2.bf16.xpose.msra.mxu0 0
    %3181 = vmatprep.subr.bf16.mxu0 0
    %3182 = vmatpush2.bf16.xpose.msra.mxu0 0
    %3183 = vmatprep.subr.bf16.mxu0 0
    %3184 = vmatpush2.bf16.xpose.msra.mxu0 0
    %3185 = vmatprep.subr.bf16.mxu0 0
    %3186 = vmatpush2.bf16.xpose.msra.mxu0 0
    %3187 = vmatprep.subr.bf16.mxu0 0
    %3188 = vmatpush2.bf16.xpose.msra.mxu0 0
    %3189 = vmatprep.subr.bf16.mxu0 0
    %3190 = vmatpush2.bf16.xpose.msra.mxu0 0
    %3191 = vmatprep.mubr.bf16.mxu0 %v653
    %3192 = vmatmul.mubr.bf16.gmra.mxu0 %v639
    %v3193 = vpop.f32.mrf.mxu0
    %v3194 = vadd.f32 %v3154, %v3193
    %v3195 = vpop.f32.mrf.mxu0
    %v3196 = vpop.f32.mrf.mxu0
    %v3197 = vpop.f32.mrf.mxu0
    %3198 = vdwg.mxu0
    %3199 = vmatprep.subr.bf16.mxu0 0
    %3200 = vmatpush1.bf16.xpose.msra.mxu0 0
    %3201 = vmatprep.subr.bf16.mxu0 0
    %3202 = vmatpush1.bf16.xpose.msra.mxu0 0
    %3203 = vmatprep.subr.bf16.mxu0 0
    %3204 = vmatpush1.bf16.xpose.msra.mxu0 0
    %3205 = vmatprep.subr.bf16.mxu0 0
    %3206 = vmatpush1.bf16.xpose.msra.mxu0 0
    %3207 = vmatprep.subr.bf16.mxu0 0
    %3208 = vmatpush1.bf16.xpose.msra.mxu0 0
    %3209 = vmatprep.subr.bf16.mxu0 0
    %3210 = vmatpush1.bf16.xpose.msra.mxu0 0
    %3211 = vmatprep.subr.bf16.mxu0 0
    %3212 = vmatpush1.bf16.xpose.msra.mxu0 0
    %3213 = vmatprep.subr.bf16.mxu0 %v1310
    %3214 = vmatpush1.bf16.xpose.msra.mxu0 %v1309
    %3215 = vmatprep.subr.bf16.mxu0 0
    %3216 = vmatpush2.bf16.xpose.msra.mxu0 0
    %3217 = vmatprep.subr.bf16.mxu0 0
    %3218 = vmatpush2.bf16.xpose.msra.mxu0 0
    %3219 = vmatprep.subr.bf16.mxu0 0
    %3220 = vmatpush2.bf16.xpose.msra.mxu0 0
    %3221 = vmatprep.subr.bf16.mxu0 0
    %3222 = vmatpush2.bf16.xpose.msra.mxu0 0
    %3223 = vmatprep.subr.bf16.mxu0 0
    %3224 = vmatpush2.bf16.xpose.msra.mxu0 0
    %3225 = vmatprep.subr.bf16.mxu0 0
    %3226 = vmatpush2.bf16.xpose.msra.mxu0 0
    %3227 = vmatprep.subr.bf16.mxu0 0
    %3228 = vmatpush2.bf16.xpose.msra.mxu0 0
    %3229 = vmatprep.subr.bf16.mxu0 0
    %3230 = vmatpush2.bf16.xpose.msra.mxu0 0
    %3231 = vmatprep.mubr.bf16.mxu0 %v657
    %3232 = vmatmul.mubr.bf16.gmra.mxu0 %v655
    %v3233 = vpop.f32.mrf.mxu0
    %v3234 = vadd.f32 %v3194, %v3233
    %v3235 = vpop.f32.mrf.mxu0
    %v3236 = vpop.f32.mrf.mxu0
    %v3237 = vpop.f32.mrf.mxu0
    %3238 = vdwg.mxu0
    %3239 = vmatprep.subr.bf16.mxu0 0
    %3240 = vmatpush1.bf16.xpose.msra.mxu0 0
    %3241 = vmatprep.subr.bf16.mxu0 0
    %3242 = vmatpush1.bf16.xpose.msra.mxu0 0
    %3243 = vmatprep.subr.bf16.mxu0 0
    %3244 = vmatpush1.bf16.xpose.msra.mxu0 0
    %3245 = vmatprep.subr.bf16.mxu0 0
    %3246 = vmatpush1.bf16.xpose.msra.mxu0 0
    %3247 = vmatprep.subr.bf16.mxu0 0
    %3248 = vmatpush1.bf16.xpose.msra.mxu0 0
    %3249 = vmatprep.subr.bf16.mxu0 0
    %3250 = vmatpush1.bf16.xpose.msra.mxu0 0
    %3251 = vmatprep.subr.bf16.mxu0 0
    %3252 = vmatpush1.bf16.xpose.msra.mxu0 0
    %3253 = vmatprep.subr.bf16.mxu0 %v1312
    %3254 = vmatpush1.bf16.xpose.msra.mxu0 %v1311
    %3255 = vmatprep.subr.bf16.mxu0 0
    %3256 = vmatpush2.bf16.xpose.msra.mxu0 0
    %3257 = vmatprep.subr.bf16.mxu0 0
    %3258 = vmatpush2.bf16.xpose.msra.mxu0 0
    %3259 = vmatprep.subr.bf16.mxu0 0
    %3260 = vmatpush2.bf16.xpose.msra.mxu0 0
    %3261 = vmatprep.subr.bf16.mxu0 0
    %3262 = vmatpush2.bf16.xpose.msra.mxu0 0
    %3263 = vmatprep.subr.bf16.mxu0 0
    %3264 = vmatpush2.bf16.xpose.msra.mxu0 0
    %3265 = vmatprep.subr.bf16.mxu0 0
    %3266 = vmatpush2.bf16.xpose.msra.mxu0 0
    %3267 = vmatprep.subr.bf16.mxu0 0
    %3268 = vmatpush2.bf16.xpose.msra.mxu0 0
    %3269 = vmatprep.subr.bf16.mxu0 0
    %3270 = vmatpush2.bf16.xpose.msra.mxu0 0
    %3271 = vmatprep.mubr.bf16.mxu0 %v695
    %3272 = vmatmul.mubr.bf16.gmra.mxu0 %v681
    %v3273 = vpop.f32.mrf.mxu0
    %v3274 = vadd.f32 %v3234, %v3273
    %v3275 = vpop.f32.mrf.mxu0
    %v3276 = vpop.f32.mrf.mxu0
    %v3277 = vpop.f32.mrf.mxu0
    %3278 = vdwg.mxu0
    %3279 = vmatprep.subr.bf16.mxu0 0
    %3280 = vmatpush1.bf16.xpose.msra.mxu0 0
    %3281 = vmatprep.subr.bf16.mxu0 0
    %3282 = vmatpush1.bf16.xpose.msra.mxu0 0
    %3283 = vmatprep.subr.bf16.mxu0 0
    %3284 = vmatpush1.bf16.xpose.msra.mxu0 0
    %3285 = vmatprep.subr.bf16.mxu0 0
    %3286 = vmatpush1.bf16.xpose.msra.mxu0 0
    %3287 = vmatprep.subr.bf16.mxu0 0
    %3288 = vmatpush1.bf16.xpose.msra.mxu0 0
    %3289 = vmatprep.subr.bf16.mxu0 0
    %3290 = vmatpush1.bf16.xpose.msra.mxu0 0
    %3291 = vmatprep.subr.bf16.mxu0 0
    %3292 = vmatpush1.bf16.xpose.msra.mxu0 0
    %3293 = vmatprep.subr.bf16.mxu0 %v1314
    %3294 = vmatpush1.bf16.xpose.msra.mxu0 %v1313
    %3295 = vmatprep.subr.bf16.mxu0 0
    %3296 = vmatpush2.bf16.xpose.msra.mxu0 0
    %3297 = vmatprep.subr.bf16.mxu0 0
    %3298 = vmatpush2.bf16.xpose.msra.mxu0 0
    %3299 = vmatprep.subr.bf16.mxu0 0
    %3300 = vmatpush2.bf16.xpose.msra.mxu0 0
    %3301 = vmatprep.subr.bf16.mxu0 0
    %3302 = vmatpush2.bf16.xpose.msra.mxu0 0
    %3303 = vmatprep.subr.bf16.mxu0 0
    %3304 = vmatpush2.bf16.xpose.msra.mxu0 0
    %3305 = vmatprep.subr.bf16.mxu0 0
    %3306 = vmatpush2.bf16.xpose.msra.mxu0 0
    %3307 = vmatprep.subr.bf16.mxu0 0
    %3308 = vmatpush2.bf16.xpose.msra.mxu0 0
    %3309 = vmatprep.subr.bf16.mxu0 0
    %3310 = vmatpush2.bf16.xpose.msra.mxu0 0
    %3311 = vmatprep.mubr.bf16.mxu0 %v705
    %3312 = vmatmul.mubr.bf16.gmra.mxu0 %v703
    %v3313 = vpop.f32.mrf.mxu0
    %v3314 = vadd.f32 %v3274, %v3313
    %v3315 = vpop.f32.mrf.mxu0
    %v3316 = vpop.f32.mrf.mxu0
    %v3317 = vpop.f32.mrf.mxu0
    %3318 = vdwg.mxu0
    %3319 = vmatprep.subr.bf16.mxu0 0
    %3320 = vmatpush1.bf16.xpose.msra.mxu0 0
    %3321 = vmatprep.subr.bf16.mxu0 0
    %3322 = vmatpush1.bf16.xpose.msra.mxu0 0
    %3323 = vmatprep.subr.bf16.mxu0 0
    %3324 = vmatpush1.bf16.xpose.msra.mxu0 0
    %3325 = vmatprep.subr.bf16.mxu0 0
    %3326 = vmatpush1.bf16.xpose.msra.mxu0 0
    %3327 = vmatprep.subr.bf16.mxu0 0
    %3328 = vmatpush1.bf16.xpose.msra.mxu0 0
    %3329 = vmatprep.subr.bf16.mxu0 0
    %3330 = vmatpush1.bf16.xpose.msra.mxu0 0
    %3331 = vmatprep.subr.bf16.mxu0 0
    %3332 = vmatpush1.bf16.xpose.msra.mxu0 0
    %3333 = vmatprep.subr.bf16.mxu0 %v1316
    %3334 = vmatpush1.bf16.xpose.msra.mxu0 %v1315
    %3335 = vmatprep.subr.bf16.mxu0 0
    %3336 = vmatpush2.bf16.xpose.msra.mxu0 0
    %3337 = vmatprep.subr.bf16.mxu0 0
    %3338 = vmatpush2.bf16.xpose.msra.mxu0 0
    %3339 = vmatprep.subr.bf16.mxu0 0
    %3340 = vmatpush2.bf16.xpose.msra.mxu0 0
    %3341 = vmatprep.subr.bf16.mxu0 0
    %3342 = vmatpush2.bf16.xpose.msra.mxu0 0
    %3343 = vmatprep.subr.bf16.mxu0 0
    %3344 = vmatpush2.bf16.xpose.msra.mxu0 0
    %3345 = vmatprep.subr.bf16.mxu0 0
    %3346 = vmatpush2.bf16.xpose.msra.mxu0 0
    %3347 = vmatprep.subr.bf16.mxu0 0
    %3348 = vmatpush2.bf16.xpose.msra.mxu0 0
    %3349 = vmatprep.subr.bf16.mxu0 0
    %3350 = vmatpush2.bf16.xpose.msra.mxu0 0
    %3351 = vmatprep.mubr.bf16.mxu0 %v702
    %3352 = vmatmul.mubr.bf16.gmra.mxu0 %v688
    %v3353 = vpop.f32.mrf.mxu0
    %v3354 = vadd.f32 %v3314, %v3353
    %v3355 = vpop.f32.mrf.mxu0
    %v3356 = vpop.f32.mrf.mxu0
    %v3357 = vpop.f32.mrf.mxu0
    %3358 = vdwg.mxu0
    %3359 = vmatprep.subr.bf16.mxu0 0
    %3360 = vmatpush1.bf16.xpose.msra.mxu0 0
    %3361 = vmatprep.subr.bf16.mxu0 0
    %3362 = vmatpush1.bf16.xpose.msra.mxu0 0
    %3363 = vmatprep.subr.bf16.mxu0 0
    %3364 = vmatpush1.bf16.xpose.msra.mxu0 0
    %3365 = vmatprep.subr.bf16.mxu0 0
    %3366 = vmatpush1.bf16.xpose.msra.mxu0 0
    %3367 = vmatprep.subr.bf16.mxu0 0
    %3368 = vmatpush1.bf16.xpose.msra.mxu0 0
    %3369 = vmatprep.subr.bf16.mxu0 0
    %3370 = vmatpush1.bf16.xpose.msra.mxu0 0
    %3371 = vmatprep.subr.bf16.mxu0 0
    %3372 = vmatpush1.bf16.xpose.msra.mxu0 0
    %3373 = vmatprep.subr.bf16.mxu0 %v1318
    %3374 = vmatpush1.bf16.xpose.msra.mxu0 %v1317
    %3375 = vmatprep.subr.bf16.mxu0 0
    %3376 = vmatpush2.bf16.xpose.msra.mxu0 0
    %3377 = vmatprep.subr.bf16.mxu0 0
    %3378 = vmatpush2.bf16.xpose.msra.mxu0 0
    %3379 = vmatprep.subr.bf16.mxu0 0
    %3380 = vmatpush2.bf16.xpose.msra.mxu0 0
    %3381 = vmatprep.subr.bf16.mxu0 0
    %3382 = vmatpush2.bf16.xpose.msra.mxu0 0
    %3383 = vmatprep.subr.bf16.mxu0 0
    %3384 = vmatpush2.bf16.xpose.msra.mxu0 0
    %3385 = vmatprep.subr.bf16.mxu0 0
    %3386 = vmatpush2.bf16.xpose.msra.mxu0 0
    %3387 = vmatprep.subr.bf16.mxu0 0
    %3388 = vmatpush2.bf16.xpose.msra.mxu0 0
    %3389 = vmatprep.subr.bf16.mxu0 0
    %3390 = vmatpush2.bf16.xpose.msra.mxu0 0
    %3391 = vmatprep.mubr.bf16.mxu0 %v706
    %3392 = vmatmul.mubr.bf16.gmra.mxu0 %v704
    %v3393 = vpop.f32.mrf.mxu0
    %v3394 = vadd.f32 %v3354, %v3393
    %v3395 = vpop.f32.mrf.mxu0
    %v3396 = vpop.f32.mrf.mxu0
    %v3397 = vpop.f32.mrf.mxu0
    %3398 = vdwg.mxu0
    %3399 = vmatprep.subr.bf16.mxu0 0
    %3400 = vmatpush1.bf16.xpose.msra.mxu0 0
    %3401 = vmatprep.subr.bf16.mxu0 0
    %3402 = vmatpush1.bf16.xpose.msra.mxu0 0
    %3403 = vmatprep.subr.bf16.mxu0 0
    %3404 = vmatpush1.bf16.xpose.msra.mxu0 0
    %3405 = vmatprep.subr.bf16.mxu0 0
    %3406 = vmatpush1.bf16.xpose.msra.mxu0 0
    %3407 = vmatprep.subr.bf16.mxu0 0
    %3408 = vmatpush1.bf16.xpose.msra.mxu0 0
    %3409 = vmatprep.subr.bf16.mxu0 0
    %3410 = vmatpush1.bf16.xpose.msra.mxu0 0
    %3411 = vmatprep.subr.bf16.mxu0 0
    %3412 = vmatpush1.bf16.xpose.msra.mxu0 0
    %3413 = vmatprep.subr.bf16.mxu0 %v1320
    %3414 = vmatpush1.bf16.xpose.msra.mxu0 %v1319
    %3415 = vmatprep.subr.bf16.mxu0 0
    %3416 = vmatpush2.bf16.xpose.msra.mxu0 0
    %3417 = vmatprep.subr.bf16.mxu0 0
    %3418 = vmatpush2.bf16.xpose.msra.mxu0 0
    %3419 = vmatprep.subr.bf16.mxu0 0
    %3420 = vmatpush2.bf16.xpose.msra.mxu0 0
    %3421 = vmatprep.subr.bf16.mxu0 0
    %3422 = vmatpush2.bf16.xpose.msra.mxu0 0
    %3423 = vmatprep.subr.bf16.mxu0 0
    %3424 = vmatpush2.bf16.xpose.msra.mxu0 0
    %3425 = vmatprep.subr.bf16.mxu0 0
    %3426 = vmatpush2.bf16.xpose.msra.mxu0 0
    %3427 = vmatprep.subr.bf16.mxu0 0
    %3428 = vmatpush2.bf16.xpose.msra.mxu0 0
    %3429 = vmatprep.subr.bf16.mxu0 0
    %3430 = vmatpush2.bf16.xpose.msra.mxu0 0
    %3431 = vmatprep.mubr.bf16.mxu0 %v744
    %3432 = vmatmul.mubr.bf16.gmra.mxu0 %v730
    %v3433 = vpop.f32.mrf.mxu0
    %v3434 = vadd.f32 %v3394, %v3433
    %v3435 = vpop.f32.mrf.mxu0
    %v3436 = vpop.f32.mrf.mxu0
    %v3437 = vpop.f32.mrf.mxu0
    %3438 = vdwg.mxu0
    %3439 = vmatprep.subr.bf16.mxu0 0
    %3440 = vmatpush1.bf16.xpose.msra.mxu0 0
    %3441 = vmatprep.subr.bf16.mxu0 0
    %3442 = vmatpush1.bf16.xpose.msra.mxu0 0
    %3443 = vmatprep.subr.bf16.mxu0 0
    %3444 = vmatpush1.bf16.xpose.msra.mxu0 0
    %3445 = vmatprep.subr.bf16.mxu0 0
    %3446 = vmatpush1.bf16.xpose.msra.mxu0 0
    %3447 = vmatprep.subr.bf16.mxu0 0
    %3448 = vmatpush1.bf16.xpose.msra.mxu0 0
    %3449 = vmatprep.subr.bf16.mxu0 0
    %3450 = vmatpush1.bf16.xpose.msra.mxu0 0
    %3451 = vmatprep.subr.bf16.mxu0 0
    %3452 = vmatpush1.bf16.xpose.msra.mxu0 0
    %3453 = vmatprep.subr.bf16.mxu0 %v1322
    %3454 = vmatpush1.bf16.xpose.msra.mxu0 %v1321
    %3455 = vmatprep.subr.bf16.mxu0 0
    %3456 = vmatpush2.bf16.xpose.msra.mxu0 0
    %3457 = vmatprep.subr.bf16.mxu0 0
    %3458 = vmatpush2.bf16.xpose.msra.mxu0 0
    %3459 = vmatprep.subr.bf16.mxu0 0
    %3460 = vmatpush2.bf16.xpose.msra.mxu0 0
    %3461 = vmatprep.subr.bf16.mxu0 0
    %3462 = vmatpush2.bf16.xpose.msra.mxu0 0
    %3463 = vmatprep.subr.bf16.mxu0 0
    %3464 = vmatpush2.bf16.xpose.msra.mxu0 0
    %3465 = vmatprep.subr.bf16.mxu0 0
    %3466 = vmatpush2.bf16.xpose.msra.mxu0 0
    %3467 = vmatprep.subr.bf16.mxu0 0
    %3468 = vmatpush2.bf16.xpose.msra.mxu0 0
    %3469 = vmatprep.subr.bf16.mxu0 0
    %3470 = vmatpush2.bf16.xpose.msra.mxu0 0
    %3471 = vmatprep.mubr.bf16.mxu0 %v754
    %3472 = vmatmul.mubr.bf16.gmra.mxu0 %v752
    %v3473 = vpop.f32.mrf.mxu0
    %v3474 = vadd.f32 %v3434, %v3473
    %v3475 = vpop.f32.mrf.mxu0
    %v3476 = vpop.f32.mrf.mxu0
    %v3477 = vpop.f32.mrf.mxu0
    %3478 = vdwg.mxu0
    %3479 = vmatprep.subr.bf16.mxu0 0
    %3480 = vmatpush1.bf16.xpose.msra.mxu0 0
    %3481 = vmatprep.subr.bf16.mxu0 0
    %3482 = vmatpush1.bf16.xpose.msra.mxu0 0
    %3483 = vmatprep.subr.bf16.mxu0 0
    %3484 = vmatpush1.bf16.xpose.msra.mxu0 0
    %3485 = vmatprep.subr.bf16.mxu0 0
    %3486 = vmatpush1.bf16.xpose.msra.mxu0 0
    %3487 = vmatprep.subr.bf16.mxu0 0
    %3488 = vmatpush1.bf16.xpose.msra.mxu0 0
    %3489 = vmatprep.subr.bf16.mxu0 0
    %3490 = vmatpush1.bf16.xpose.msra.mxu0 0
    %3491 = vmatprep.subr.bf16.mxu0 0
    %3492 = vmatpush1.bf16.xpose.msra.mxu0 0
    %3493 = vmatprep.subr.bf16.mxu0 %v1324
    %3494 = vmatpush1.bf16.xpose.msra.mxu0 %v1323
    %3495 = vmatprep.subr.bf16.mxu0 0
    %3496 = vmatpush2.bf16.xpose.msra.mxu0 0
    %3497 = vmatprep.subr.bf16.mxu0 0
    %3498 = vmatpush2.bf16.xpose.msra.mxu0 0
    %3499 = vmatprep.subr.bf16.mxu0 0
    %3500 = vmatpush2.bf16.xpose.msra.mxu0 0
    %3501 = vmatprep.subr.bf16.mxu0 0
    %3502 = vmatpush2.bf16.xpose.msra.mxu0 0
    %3503 = vmatprep.subr.bf16.mxu0 0
    %3504 = vmatpush2.bf16.xpose.msra.mxu0 0
    %3505 = vmatprep.subr.bf16.mxu0 0
    %3506 = vmatpush2.bf16.xpose.msra.mxu0 0
    %3507 = vmatprep.subr.bf16.mxu0 0
    %3508 = vmatpush2.bf16.xpose.msra.mxu0 0
    %3509 = vmatprep.subr.bf16.mxu0 0
    %3510 = vmatpush2.bf16.xpose.msra.mxu0 0
    %3511 = vmatprep.mubr.bf16.mxu0 %v751
    %3512 = vmatmul.mubr.bf16.gmra.mxu0 %v737
    %v3513 = vpop.f32.mrf.mxu0
    %v3514 = vadd.f32 %v3474, %v3513
    %v3515 = vpop.f32.mrf.mxu0
    %v3516 = vpop.f32.mrf.mxu0
    %v3517 = vpop.f32.mrf.mxu0
    %3518 = vdwg.mxu0
    %3519 = vmatprep.subr.bf16.mxu0 0
    %3520 = vmatpush1.bf16.xpose.msra.mxu0 0
    %3521 = vmatprep.subr.bf16.mxu0 0
    %3522 = vmatpush1.bf16.xpose.msra.mxu0 0
    %3523 = vmatprep.subr.bf16.mxu0 0
    %3524 = vmatpush1.bf16.xpose.msra.mxu0 0
    %3525 = vmatprep.subr.bf16.mxu0 0
    %3526 = vmatpush1.bf16.xpose.msra.mxu0 0
    %3527 = vmatprep.subr.bf16.mxu0 0
    %3528 = vmatpush1.bf16.xpose.msra.mxu0 0
    %3529 = vmatprep.subr.bf16.mxu0 0
    %3530 = vmatpush1.bf16.xpose.msra.mxu0 0
    %3531 = vmatprep.subr.bf16.mxu0 0
    %3532 = vmatpush1.bf16.xpose.msra.mxu0 0
    %3533 = vmatprep.subr.bf16.mxu0 %v1326
    %3534 = vmatpush1.bf16.xpose.msra.mxu0 %v1325
    %3535 = vmatprep.subr.bf16.mxu0 0
    %3536 = vmatpush2.bf16.xpose.msra.mxu0 0
    %3537 = vmatprep.subr.bf16.mxu0 0
    %3538 = vmatpush2.bf16.xpose.msra.mxu0 0
    %3539 = vmatprep.subr.bf16.mxu0 0
    %3540 = vmatpush2.bf16.xpose.msra.mxu0 0
    %3541 = vmatprep.subr.bf16.mxu0 0
    %3542 = vmatpush2.bf16.xpose.msra.mxu0 0
    %3543 = vmatprep.subr.bf16.mxu0 0
    %3544 = vmatpush2.bf16.xpose.msra.mxu0 0
    %3545 = vmatprep.subr.bf16.mxu0 0
    %3546 = vmatpush2.bf16.xpose.msra.mxu0 0
    %3547 = vmatprep.subr.bf16.mxu0 0
    %3548 = vmatpush2.bf16.xpose.msra.mxu0 0
    %3549 = vmatprep.subr.bf16.mxu0 0
    %3550 = vmatpush2.bf16.xpose.msra.mxu0 0
    %3551 = vmatprep.mubr.bf16.mxu0 %v755
    %3552 = vmatmul.mubr.bf16.gmra.mxu0 %v753
    %v3553 = vpop.f32.mrf.mxu0
    %v3554 = vadd.f32 %v3514, %v3553
    %v3555 = vpop.f32.mrf.mxu0
    %v3556 = vpop.f32.mrf.mxu0
    %v3557 = vpop.f32.mrf.mxu0
    %3558 = vdwg.mxu0
    %3559 = vmatprep.subr.bf16.mxu0 0
    %3560 = vmatpush1.bf16.xpose.msra.mxu0 0
    %3561 = vmatprep.subr.bf16.mxu0 0
    %3562 = vmatpush1.bf16.xpose.msra.mxu0 0
    %3563 = vmatprep.subr.bf16.mxu0 0
    %3564 = vmatpush1.bf16.xpose.msra.mxu0 0
    %3565 = vmatprep.subr.bf16.mxu0 0
    %3566 = vmatpush1.bf16.xpose.msra.mxu0 0
    %3567 = vmatprep.subr.bf16.mxu0 0
    %3568 = vmatpush1.bf16.xpose.msra.mxu0 0
    %3569 = vmatprep.subr.bf16.mxu0 0
    %3570 = vmatpush1.bf16.xpose.msra.mxu0 0
    %3571 = vmatprep.subr.bf16.mxu0 0
    %3572 = vmatpush1.bf16.xpose.msra.mxu0 0
    %3573 = vmatprep.subr.bf16.mxu0 %v1328
    %3574 = vmatpush1.bf16.xpose.msra.mxu0 %v1327
    %3575 = vmatprep.subr.bf16.mxu0 0
    %3576 = vmatpush2.bf16.xpose.msra.mxu0 0
    %3577 = vmatprep.subr.bf16.mxu0 0
    %3578 = vmatpush2.bf16.xpose.msra.mxu0 0
    %3579 = vmatprep.subr.bf16.mxu0 0
    %3580 = vmatpush2.bf16.xpose.msra.mxu0 0
    %3581 = vmatprep.subr.bf16.mxu0 0
    %3582 = vmatpush2.bf16.xpose.msra.mxu0 0
    %3583 = vmatprep.subr.bf16.mxu0 0
    %3584 = vmatpush2.bf16.xpose.msra.mxu0 0
    %3585 = vmatprep.subr.bf16.mxu0 0
    %3586 = vmatpush2.bf16.xpose.msra.mxu0 0
    %3587 = vmatprep.subr.bf16.mxu0 0
    %3588 = vmatpush2.bf16.xpose.msra.mxu0 0
    %3589 = vmatprep.subr.bf16.mxu0 0
    %3590 = vmatpush2.bf16.xpose.msra.mxu0 0
    %3591 = vmatprep.mubr.bf16.mxu0 %v793
    %3592 = vmatmul.mubr.bf16.gmra.mxu0 %v779
    %v3593 = vpop.f32.mrf.mxu0
    %v3594 = vadd.f32 %v3554, %v3593
    %v3595 = vpop.f32.mrf.mxu0
    %v3596 = vpop.f32.mrf.mxu0
    %v3597 = vpop.f32.mrf.mxu0
    %3598 = vdwg.mxu0
    %3599 = vmatprep.subr.bf16.mxu0 0
    %3600 = vmatpush1.bf16.xpose.msra.mxu0 0
    %3601 = vmatprep.subr.bf16.mxu0 0
    %3602 = vmatpush1.bf16.xpose.msra.mxu0 0
    %3603 = vmatprep.subr.bf16.mxu0 0
    %3604 = vmatpush1.bf16.xpose.msra.mxu0 0
    %3605 = vmatprep.subr.bf16.mxu0 0
    %3606 = vmatpush1.bf16.xpose.msra.mxu0 0
    %3607 = vmatprep.subr.bf16.mxu0 0
    %3608 = vmatpush1.bf16.xpose.msra.mxu0 0
    %3609 = vmatprep.subr.bf16.mxu0 0
    %3610 = vmatpush1.bf16.xpose.msra.mxu0 0
    %3611 = vmatprep.subr.bf16.mxu0 0
    %3612 = vmatpush1.bf16.xpose.msra.mxu0 0
    %3613 = vmatprep.subr.bf16.mxu0 %v1330
    %3614 = vmatpush1.bf16.xpose.msra.mxu0 %v1329
    %3615 = vmatprep.subr.bf16.mxu0 0
    %3616 = vmatpush2.bf16.xpose.msra.mxu0 0
    %3617 = vmatprep.subr.bf16.mxu0 0
    %3618 = vmatpush2.bf16.xpose.msra.mxu0 0
    %3619 = vmatprep.subr.bf16.mxu0 0
    %3620 = vmatpush2.bf16.xpose.msra.mxu0 0
    %3621 = vmatprep.subr.bf16.mxu0 0
    %3622 = vmatpush2.bf16.xpose.msra.mxu0 0
    %3623 = vmatprep.subr.bf16.mxu0 0
    %3624 = vmatpush2.bf16.xpose.msra.mxu0 0
    %3625 = vmatprep.subr.bf16.mxu0 0
    %3626 = vmatpush2.bf16.xpose.msra.mxu0 0
    %3627 = vmatprep.subr.bf16.mxu0 0
    %3628 = vmatpush2.bf16.xpose.msra.mxu0 0
    %3629 = vmatprep.subr.bf16.mxu0 0
    %3630 = vmatpush2.bf16.xpose.msra.mxu0 0
    %3631 = vmatprep.mubr.bf16.mxu0 %v803
    %3632 = vmatmul.mubr.bf16.gmra.mxu0 %v801
    %v3633 = vpop.f32.mrf.mxu0
    %v3634 = vadd.f32 %v3594, %v3633
    %v3635 = vpop.f32.mrf.mxu0
    %v3636 = vpop.f32.mrf.mxu0
    %v3637 = vpop.f32.mrf.mxu0
    %3638 = vdwg.mxu0
    %3639 = vmatprep.subr.bf16.mxu0 0
    %3640 = vmatpush1.bf16.xpose.msra.mxu0 0
    %3641 = vmatprep.subr.bf16.mxu0 0
    %3642 = vmatpush1.bf16.xpose.msra.mxu0 0
    %3643 = vmatprep.subr.bf16.mxu0 0
    %3644 = vmatpush1.bf16.xpose.msra.mxu0 0
    %3645 = vmatprep.subr.bf16.mxu0 0
    %3646 = vmatpush1.bf16.xpose.msra.mxu0 0
    %3647 = vmatprep.subr.bf16.mxu0 0
    %3648 = vmatpush1.bf16.xpose.msra.mxu0 0
    %3649 = vmatprep.subr.bf16.mxu0 0
    %3650 = vmatpush1.bf16.xpose.msra.mxu0 0
    %3651 = vmatprep.subr.bf16.mxu0 0
    %3652 = vmatpush1.bf16.xpose.msra.mxu0 0
    %3653 = vmatprep.subr.bf16.mxu0 %v1332
    %3654 = vmatpush1.bf16.xpose.msra.mxu0 %v1331
    %3655 = vmatprep.subr.bf16.mxu0 0
    %3656 = vmatpush2.bf16.xpose.msra.mxu0 0
    %3657 = vmatprep.subr.bf16.mxu0 0
    %3658 = vmatpush2.bf16.xpose.msra.mxu0 0
    %3659 = vmatprep.subr.bf16.mxu0 0
    %3660 = vmatpush2.bf16.xpose.msra.mxu0 0
    %3661 = vmatprep.subr.bf16.mxu0 0
    %3662 = vmatpush2.bf16.xpose.msra.mxu0 0
    %3663 = vmatprep.subr.bf16.mxu0 0
    %3664 = vmatpush2.bf16.xpose.msra.mxu0 0
    %3665 = vmatprep.subr.bf16.mxu0 0
    %3666 = vmatpush2.bf16.xpose.msra.mxu0 0
    %3667 = vmatprep.subr.bf16.mxu0 0
    %3668 = vmatpush2.bf16.xpose.msra.mxu0 0
    %3669 = vmatprep.subr.bf16.mxu0 0
    %3670 = vmatpush2.bf16.xpose.msra.mxu0 0
    %3671 = vmatprep.mubr.bf16.mxu0 %v800
    %3672 = vmatmul.mubr.bf16.gmra.mxu0 %v786
    %v3673 = vpop.f32.mrf.mxu0
    %v3674 = vadd.f32 %v3634, %v3673
    %v3675 = vpop.f32.mrf.mxu0
    %v3676 = vpop.f32.mrf.mxu0
    %v3677 = vpop.f32.mrf.mxu0
    %3678 = vdwg.mxu0
    %3679 = vmatprep.subr.bf16.mxu0 0
    %3680 = vmatpush1.bf16.xpose.msra.mxu0 0
    %3681 = vmatprep.subr.bf16.mxu0 0
    %3682 = vmatpush1.bf16.xpose.msra.mxu0 0
    %3683 = vmatprep.subr.bf16.mxu0 0
    %3684 = vmatpush1.bf16.xpose.msra.mxu0 0
    %3685 = vmatprep.subr.bf16.mxu0 0
    %3686 = vmatpush1.bf16.xpose.msra.mxu0 0
    %3687 = vmatprep.subr.bf16.mxu0 0
    %3688 = vmatpush1.bf16.xpose.msra.mxu0 0
    %3689 = vmatprep.subr.bf16.mxu0 0
    %3690 = vmatpush1.bf16.xpose.msra.mxu0 0
    %3691 = vmatprep.subr.bf16.mxu0 0
    %3692 = vmatpush1.bf16.xpose.msra.mxu0 0
    %3693 = vmatprep.subr.bf16.mxu0 %v1334
    %3694 = vmatpush1.bf16.xpose.msra.mxu0 %v1333
    %3695 = vmatprep.subr.bf16.mxu0 0
    %3696 = vmatpush2.bf16.xpose.msra.mxu0 0
    %3697 = vmatprep.subr.bf16.mxu0 0
    %3698 = vmatpush2.bf16.xpose.msra.mxu0 0
    %3699 = vmatprep.subr.bf16.mxu0 0
    %3700 = vmatpush2.bf16.xpose.msra.mxu0 0
    %3701 = vmatprep.subr.bf16.mxu0 0
    %3702 = vmatpush2.bf16.xpose.msra.mxu0 0
    %3703 = vmatprep.subr.bf16.mxu0 0
    %3704 = vmatpush2.bf16.xpose.msra.mxu0 0
    %3705 = vmatprep.subr.bf16.mxu0 0
    %3706 = vmatpush2.bf16.xpose.msra.mxu0 0
    %3707 = vmatprep.subr.bf16.mxu0 0
    %3708 = vmatpush2.bf16.xpose.msra.mxu0 0
    %3709 = vmatprep.subr.bf16.mxu0 0
    %3710 = vmatpush2.bf16.xpose.msra.mxu0 0
    %3711 = vmatprep.mubr.bf16.mxu0 %v804
    %3712 = vmatmul.mubr.bf16.gmra.mxu0 %v802
    %v3713 = vpop.f32.mrf.mxu0
    %v3714 = vadd.f32 %v3674, %v3713
    %v3715 = vpop.f32.mrf.mxu0
    %v3716 = vpop.f32.mrf.mxu0
    %v3717 = vpop.f32.mrf.mxu0
    %3718 = vdwg.mxu0
    %3719 = vmatprep.subr.bf16.mxu0 0
    %3720 = vmatpush1.bf16.xpose.msra.mxu0 0
    %3721 = vmatprep.subr.bf16.mxu0 0
    %3722 = vmatpush1.bf16.xpose.msra.mxu0 0
    %3723 = vmatprep.subr.bf16.mxu0 0
    %3724 = vmatpush1.bf16.xpose.msra.mxu0 0
    %3725 = vmatprep.subr.bf16.mxu0 0
    %3726 = vmatpush1.bf16.xpose.msra.mxu0 0
    %3727 = vmatprep.subr.bf16.mxu0 0
    %3728 = vmatpush1.bf16.xpose.msra.mxu0 0
    %3729 = vmatprep.subr.bf16.mxu0 0
    %3730 = vmatpush1.bf16.xpose.msra.mxu0 0
    %3731 = vmatprep.subr.bf16.mxu0 0
    %3732 = vmatpush1.bf16.xpose.msra.mxu0 0
    %3733 = vmatprep.subr.bf16.mxu0 %v1336
    %3734 = vmatpush1.bf16.xpose.msra.mxu0 %v1335
    %3735 = vmatprep.subr.bf16.mxu0 0
    %3736 = vmatpush2.bf16.xpose.msra.mxu0 0
    %3737 = vmatprep.subr.bf16.mxu0 0
    %3738 = vmatpush2.bf16.xpose.msra.mxu0 0
    %3739 = vmatprep.subr.bf16.mxu0 0
    %3740 = vmatpush2.bf16.xpose.msra.mxu0 0
    %3741 = vmatprep.subr.bf16.mxu0 0
    %3742 = vmatpush2.bf16.xpose.msra.mxu0 0
    %3743 = vmatprep.subr.bf16.mxu0 0
    %3744 = vmatpush2.bf16.xpose.msra.mxu0 0
    %3745 = vmatprep.subr.bf16.mxu0 0
    %3746 = vmatpush2.bf16.xpose.msra.mxu0 0
    %3747 = vmatprep.subr.bf16.mxu0 0
    %3748 = vmatpush2.bf16.xpose.msra.mxu0 0
    %3749 = vmatprep.subr.bf16.mxu0 0
    %3750 = vmatpush2.bf16.xpose.msra.mxu0 0
    %3751 = vmatprep.mubr.bf16.mxu0 %v842
    %3752 = vmatmul.mubr.bf16.gmra.mxu0 %v828
    %v3753 = vpop.f32.mrf.mxu0
    %v3754 = vadd.f32 %v3714, %v3753
    %v3755 = vpop.f32.mrf.mxu0
    %v3756 = vpop.f32.mrf.mxu0
    %v3757 = vpop.f32.mrf.mxu0
    %3758 = vdwg.mxu0
    %3759 = vmatprep.subr.bf16.mxu0 0
    %3760 = vmatpush1.bf16.xpose.msra.mxu0 0
    %3761 = vmatprep.subr.bf16.mxu0 0
    %3762 = vmatpush1.bf16.xpose.msra.mxu0 0
    %3763 = vmatprep.subr.bf16.mxu0 0
    %3764 = vmatpush1.bf16.xpose.msra.mxu0 0
    %3765 = vmatprep.subr.bf16.mxu0 0
    %3766 = vmatpush1.bf16.xpose.msra.mxu0 0
    %3767 = vmatprep.subr.bf16.mxu0 0
    %3768 = vmatpush1.bf16.xpose.msra.mxu0 0
    %3769 = vmatprep.subr.bf16.mxu0 0
    %3770 = vmatpush1.bf16.xpose.msra.mxu0 0
    %3771 = vmatprep.subr.bf16.mxu0 0
    %3772 = vmatpush1.bf16.xpose.msra.mxu0 0
    %3773 = vmatprep.subr.bf16.mxu0 %v1338
    %3774 = vmatpush1.bf16.xpose.msra.mxu0 %v1337
    %3775 = vmatprep.subr.bf16.mxu0 0
    %3776 = vmatpush2.bf16.xpose.msra.mxu0 0
    %3777 = vmatprep.subr.bf16.mxu0 0
    %3778 = vmatpush2.bf16.xpose.msra.mxu0 0
    %3779 = vmatprep.subr.bf16.mxu0 0
    %3780 = vmatpush2.bf16.xpose.msra.mxu0 0
    %3781 = vmatprep.subr.bf16.mxu0 0
    %3782 = vmatpush2.bf16.xpose.msra.mxu0 0
    %3783 = vmatprep.subr.bf16.mxu0 0
    %3784 = vmatpush2.bf16.xpose.msra.mxu0 0
    %3785 = vmatprep.subr.bf16.mxu0 0
    %3786 = vmatpush2.bf16.xpose.msra.mxu0 0
    %3787 = vmatprep.subr.bf16.mxu0 0
    %3788 = vmatpush2.bf16.xpose.msra.mxu0 0
    %3789 = vmatprep.subr.bf16.mxu0 0
    %3790 = vmatpush2.bf16.xpose.msra.mxu0 0
    %3791 = vmatprep.mubr.bf16.mxu0 %v852
    %3792 = vmatmul.mubr.bf16.gmra.mxu0 %v850
    %v3793 = vpop.f32.mrf.mxu0
    %v3794 = vadd.f32 %v3754, %v3793
    %v3795 = vpop.f32.mrf.mxu0
    %v3796 = vpop.f32.mrf.mxu0
    %v3797 = vpop.f32.mrf.mxu0
    %3798 = vdwg.mxu0
    %3799 = vmatprep.subr.bf16.mxu0 0
    %3800 = vmatpush1.bf16.xpose.msra.mxu0 0
    %3801 = vmatprep.subr.bf16.mxu0 0
    %3802 = vmatpush1.bf16.xpose.msra.mxu0 0
    %3803 = vmatprep.subr.bf16.mxu0 0
    %3804 = vmatpush1.bf16.xpose.msra.mxu0 0
    %3805 = vmatprep.subr.bf16.mxu0 0
    %3806 = vmatpush1.bf16.xpose.msra.mxu0 0
    %3807 = vmatprep.subr.bf16.mxu0 0
    %3808 = vmatpush1.bf16.xpose.msra.mxu0 0
    %3809 = vmatprep.subr.bf16.mxu0 0
    %3810 = vmatpush1.bf16.xpose.msra.mxu0 0
    %3811 = vmatprep.subr.bf16.mxu0 0
    %3812 = vmatpush1.bf16.xpose.msra.mxu0 0
    %3813 = vmatprep.subr.bf16.mxu0 %v1340
    %3814 = vmatpush1.bf16.xpose.msra.mxu0 %v1339
    %3815 = vmatprep.subr.bf16.mxu0 0
    %3816 = vmatpush2.bf16.xpose.msra.mxu0 0
    %3817 = vmatprep.subr.bf16.mxu0 0
    %3818 = vmatpush2.bf16.xpose.msra.mxu0 0
    %3819 = vmatprep.subr.bf16.mxu0 0
    %3820 = vmatpush2.bf16.xpose.msra.mxu0 0
    %3821 = vmatprep.subr.bf16.mxu0 0
    %3822 = vmatpush2.bf16.xpose.msra.mxu0 0
    %3823 = vmatprep.subr.bf16.mxu0 0
    %3824 = vmatpush2.bf16.xpose.msra.mxu0 0
    %3825 = vmatprep.subr.bf16.mxu0 0
    %3826 = vmatpush2.bf16.xpose.msra.mxu0 0
    %3827 = vmatprep.subr.bf16.mxu0 0
    %3828 = vmatpush2.bf16.xpose.msra.mxu0 0
    %3829 = vmatprep.subr.bf16.mxu0 0
    %3830 = vmatpush2.bf16.xpose.msra.mxu0 0
    %3831 = vmatprep.mubr.bf16.mxu0 %v849
    %3832 = vmatmul.mubr.bf16.gmra.mxu0 %v835
    %v3833 = vpop.f32.mrf.mxu0
    %v3834 = vadd.f32 %v3794, %v3833
    %v3835 = vpop.f32.mrf.mxu0
    %v3836 = vpop.f32.mrf.mxu0
    %v3837 = vpop.f32.mrf.mxu0
    %3838 = vdwg.mxu0
    %3839 = vmatprep.subr.bf16.mxu0 0
    %3840 = vmatpush1.bf16.xpose.msra.mxu0 0
    %3841 = vmatprep.subr.bf16.mxu0 0
    %3842 = vmatpush1.bf16.xpose.msra.mxu0 0
    %3843 = vmatprep.subr.bf16.mxu0 0
    %3844 = vmatpush1.bf16.xpose.msra.mxu0 0
    %3845 = vmatprep.subr.bf16.mxu0 0
    %3846 = vmatpush1.bf16.xpose.msra.mxu0 0
    %3847 = vmatprep.subr.bf16.mxu0 0
    %3848 = vmatpush1.bf16.xpose.msra.mxu0 0
    %3849 = vmatprep.subr.bf16.mxu0 0
    %3850 = vmatpush1.bf16.xpose.msra.mxu0 0
    %3851 = vmatprep.subr.bf16.mxu0 0
    %3852 = vmatpush1.bf16.xpose.msra.mxu0 0
    %3853 = vmatprep.subr.bf16.mxu0 %v1342
    %3854 = vmatpush1.bf16.xpose.msra.mxu0 %v1341
    %3855 = vmatprep.subr.bf16.mxu0 0
    %3856 = vmatpush2.bf16.xpose.msra.mxu0 0
    %3857 = vmatprep.subr.bf16.mxu0 0
    %3858 = vmatpush2.bf16.xpose.msra.mxu0 0
    %3859 = vmatprep.subr.bf16.mxu0 0
    %3860 = vmatpush2.bf16.xpose.msra.mxu0 0
    %3861 = vmatprep.subr.bf16.mxu0 0
    %3862 = vmatpush2.bf16.xpose.msra.mxu0 0
    %3863 = vmatprep.subr.bf16.mxu0 0
    %3864 = vmatpush2.bf16.xpose.msra.mxu0 0
    %3865 = vmatprep.subr.bf16.mxu0 0
    %3866 = vmatpush2.bf16.xpose.msra.mxu0 0
    %3867 = vmatprep.subr.bf16.mxu0 0
    %3868 = vmatpush2.bf16.xpose.msra.mxu0 0
    %3869 = vmatprep.subr.bf16.mxu0 0
    %3870 = vmatpush2.bf16.xpose.msra.mxu0 0
    %3871 = vmatprep.mubr.bf16.mxu0 %v853
    %3872 = vmatmul.mubr.bf16.gmra.mxu0 %v851
    %v3873 = vpop.f32.mrf.mxu0
    %v3874 = vadd.f32 %v3834, %v3873
    %v3875 = vpop.f32.mrf.mxu0
    %v3876 = vpop.f32.mrf.mxu0
    %v3877 = vpop.f32.mrf.mxu0
    %3878 = vdwg.mxu0
    %3879 = vmatprep.subr.bf16.mxu0 0
    %3880 = vmatpush1.bf16.xpose.msra.mxu0 0
    %3881 = vmatprep.subr.bf16.mxu0 0
    %3882 = vmatpush1.bf16.xpose.msra.mxu0 0
    %3883 = vmatprep.subr.bf16.mxu0 0
    %3884 = vmatpush1.bf16.xpose.msra.mxu0 0
    %3885 = vmatprep.subr.bf16.mxu0 0
    %3886 = vmatpush1.bf16.xpose.msra.mxu0 0
    %3887 = vmatprep.subr.bf16.mxu0 0
    %3888 = vmatpush1.bf16.xpose.msra.mxu0 0
    %3889 = vmatprep.subr.bf16.mxu0 0
    %3890 = vmatpush1.bf16.xpose.msra.mxu0 0
    %3891 = vmatprep.subr.bf16.mxu0 0
    %3892 = vmatpush1.bf16.xpose.msra.mxu0 0
    %3893 = vmatprep.subr.bf16.mxu0 %v1344
    %3894 = vmatpush1.bf16.xpose.msra.mxu0 %v1343
    %3895 = vmatprep.subr.bf16.mxu0 0
    %3896 = vmatpush2.bf16.xpose.msra.mxu0 0
    %3897 = vmatprep.subr.bf16.mxu0 0
    %3898 = vmatpush2.bf16.xpose.msra.mxu0 0
    %3899 = vmatprep.subr.bf16.mxu0 0
    %3900 = vmatpush2.bf16.xpose.msra.mxu0 0
    %3901 = vmatprep.subr.bf16.mxu0 0
    %3902 = vmatpush2.bf16.xpose.msra.mxu0 0
    %3903 = vmatprep.subr.bf16.mxu0 0
    %3904 = vmatpush2.bf16.xpose.msra.mxu0 0
    %3905 = vmatprep.subr.bf16.mxu0 0
    %3906 = vmatpush2.bf16.xpose.msra.mxu0 0
    %3907 = vmatprep.subr.bf16.mxu0 0
    %3908 = vmatpush2.bf16.xpose.msra.mxu0 0
    %3909 = vmatprep.subr.bf16.mxu0 0
    %3910 = vmatpush2.bf16.xpose.msra.mxu0 0
    %3911 = vmatprep.mubr.bf16.mxu0 %v891
    %3912 = vmatmul.mubr.bf16.gmra.mxu0 %v877
    %v3913 = vpop.f32.mrf.mxu0
    %v3914 = vadd.f32 %v3874, %v3913
    %v3915 = vpop.f32.mrf.mxu0
    %v3916 = vpop.f32.mrf.mxu0
    %v3917 = vpop.f32.mrf.mxu0
    %3918 = vdwg.mxu0
    %3919 = vmatprep.subr.bf16.mxu0 0
    %3920 = vmatpush1.bf16.xpose.msra.mxu0 0
    %3921 = vmatprep.subr.bf16.mxu0 0
    %3922 = vmatpush1.bf16.xpose.msra.mxu0 0
    %3923 = vmatprep.subr.bf16.mxu0 0
    %3924 = vmatpush1.bf16.xpose.msra.mxu0 0
    %3925 = vmatprep.subr.bf16.mxu0 0
    %3926 = vmatpush1.bf16.xpose.msra.mxu0 0
    %3927 = vmatprep.subr.bf16.mxu0 0
    %3928 = vmatpush1.bf16.xpose.msra.mxu0 0
    %3929 = vmatprep.subr.bf16.mxu0 0
    %3930 = vmatpush1.bf16.xpose.msra.mxu0 0
    %3931 = vmatprep.subr.bf16.mxu0 0
    %3932 = vmatpush1.bf16.xpose.msra.mxu0 0
    %3933 = vmatprep.subr.bf16.mxu0 %v1346
    %3934 = vmatpush1.bf16.xpose.msra.mxu0 %v1345
    %3935 = vmatprep.subr.bf16.mxu0 0
    %3936 = vmatpush2.bf16.xpose.msra.mxu0 0
    %3937 = vmatprep.subr.bf16.mxu0 0
    %3938 = vmatpush2.bf16.xpose.msra.mxu0 0
    %3939 = vmatprep.subr.bf16.mxu0 0
    %3940 = vmatpush2.bf16.xpose.msra.mxu0 0
    %3941 = vmatprep.subr.bf16.mxu0 0
    %3942 = vmatpush2.bf16.xpose.msra.mxu0 0
    %3943 = vmatprep.subr.bf16.mxu0 0
    %3944 = vmatpush2.bf16.xpose.msra.mxu0 0
    %3945 = vmatprep.subr.bf16.mxu0 0
    %3946 = vmatpush2.bf16.xpose.msra.mxu0 0
    %3947 = vmatprep.subr.bf16.mxu0 0
    %3948 = vmatpush2.bf16.xpose.msra.mxu0 0
    %3949 = vmatprep.subr.bf16.mxu0 0
    %3950 = vmatpush2.bf16.xpose.msra.mxu0 0
    %3951 = vmatprep.mubr.bf16.mxu0 %v901
    %3952 = vmatmul.mubr.bf16.gmra.mxu0 %v899
    %v3953 = vpop.f32.mrf.mxu0
    %v3954 = vadd.f32 %v3914, %v3953
    %v3955 = vpop.f32.mrf.mxu0
    %v3956 = vpop.f32.mrf.mxu0
    %v3957 = vpop.f32.mrf.mxu0
    %3958 = vdwg.mxu0
    %3959 = vmatprep.subr.bf16.mxu0 0
    %3960 = vmatpush1.bf16.xpose.msra.mxu0 0
    %3961 = vmatprep.subr.bf16.mxu0 0
    %3962 = vmatpush1.bf16.xpose.msra.mxu0 0
    %3963 = vmatprep.subr.bf16.mxu0 0
    %3964 = vmatpush1.bf16.xpose.msra.mxu0 0
    %3965 = vmatprep.subr.bf16.mxu0 0
    %3966 = vmatpush1.bf16.xpose.msra.mxu0 0
    %3967 = vmatprep.subr.bf16.mxu0 0
    %3968 = vmatpush1.bf16.xpose.msra.mxu0 0
    %3969 = vmatprep.subr.bf16.mxu0 0
    %3970 = vmatpush1.bf16.xpose.msra.mxu0 0
    %3971 = vmatprep.subr.bf16.mxu0 0
    %3972 = vmatpush1.bf16.xpose.msra.mxu0 0
    %3973 = vmatprep.subr.bf16.mxu0 %v1348
    %3974 = vmatpush1.bf16.xpose.msra.mxu0 %v1347
    %3975 = vmatprep.subr.bf16.mxu0 0
    %3976 = vmatpush2.bf16.xpose.msra.mxu0 0
    %3977 = vmatprep.subr.bf16.mxu0 0
    %3978 = vmatpush2.bf16.xpose.msra.mxu0 0
    %3979 = vmatprep.subr.bf16.mxu0 0
    %3980 = vmatpush2.bf16.xpose.msra.mxu0 0
    %3981 = vmatprep.subr.bf16.mxu0 0
    %3982 = vmatpush2.bf16.xpose.msra.mxu0 0
    %3983 = vmatprep.subr.bf16.mxu0 0
    %3984 = vmatpush2.bf16.xpose.msra.mxu0 0
    %3985 = vmatprep.subr.bf16.mxu0 0
    %3986 = vmatpush2.bf16.xpose.msra.mxu0 0
    %3987 = vmatprep.subr.bf16.mxu0 0
    %3988 = vmatpush2.bf16.xpose.msra.mxu0 0
    %3989 = vmatprep.subr.bf16.mxu0 0
    %3990 = vmatpush2.bf16.xpose.msra.mxu0 0
    %3991 = vmatprep.mubr.bf16.mxu0 %v898
    %3992 = vmatmul.mubr.bf16.gmra.mxu0 %v884
    %v3993 = vpop.f32.mrf.mxu0
    %v3994 = vadd.f32 %v3954, %v3993
    %v3995 = vpop.f32.mrf.mxu0
    %v3996 = vpop.f32.mrf.mxu0
    %v3997 = vpop.f32.mrf.mxu0
    %3998 = vdwg.mxu0
    %3999 = vmatprep.subr.bf16.mxu0 0
    %4000 = vmatpush1.bf16.xpose.msra.mxu0 0
    %4001 = vmatprep.subr.bf16.mxu0 0
    %4002 = vmatpush1.bf16.xpose.msra.mxu0 0
    %4003 = vmatprep.subr.bf16.mxu0 0
    %4004 = vmatpush1.bf16.xpose.msra.mxu0 0
    %4005 = vmatprep.subr.bf16.mxu0 0
    %4006 = vmatpush1.bf16.xpose.msra.mxu0 0
    %4007 = vmatprep.subr.bf16.mxu0 0
    %4008 = vmatpush1.bf16.xpose.msra.mxu0 0
    %4009 = vmatprep.subr.bf16.mxu0 0
    %4010 = vmatpush1.bf16.xpose.msra.mxu0 0
    %4011 = vmatprep.subr.bf16.mxu0 0
    %4012 = vmatpush1.bf16.xpose.msra.mxu0 0
    %4013 = vmatprep.subr.bf16.mxu0 %v1350
    %4014 = vmatpush1.bf16.xpose.msra.mxu0 %v1349
    %4015 = vmatprep.subr.bf16.mxu0 0
    %4016 = vmatpush2.bf16.xpose.msra.mxu0 0
    %4017 = vmatprep.subr.bf16.mxu0 0
    %4018 = vmatpush2.bf16.xpose.msra.mxu0 0
    %4019 = vmatprep.subr.bf16.mxu0 0
    %4020 = vmatpush2.bf16.xpose.msra.mxu0 0
    %4021 = vmatprep.subr.bf16.mxu0 0
    %4022 = vmatpush2.bf16.xpose.msra.mxu0 0
    %4023 = vmatprep.subr.bf16.mxu0 0
    %4024 = vmatpush2.bf16.xpose.msra.mxu0 0
    %4025 = vmatprep.subr.bf16.mxu0 0
    %4026 = vmatpush2.bf16.xpose.msra.mxu0 0
    %4027 = vmatprep.subr.bf16.mxu0 0
    %4028 = vmatpush2.bf16.xpose.msra.mxu0 0
    %4029 = vmatprep.subr.bf16.mxu0 0
    %4030 = vmatpush2.bf16.xpose.msra.mxu0 0
    %4031 = vmatprep.mubr.bf16.mxu0 %v902
    %4032 = vmatmul.mubr.bf16.gmra.mxu0 %v900
    %v4033 = vpop.f32.mrf.mxu0
    %v4034 = vadd.f32 %v3994, %v4033
    %v4035 = vpop.f32.mrf.mxu0
    %v4036 = vpop.f32.mrf.mxu0
    %v4037 = vpop.f32.mrf.mxu0
    %4038 = vdwg.mxu0
    %v4039 = vadd.f32 %v22, %v4034
    %vm4040 = vcmask 50176
    %4041 = vst.msk [vmem:[#allocation2] sm:$0x3] %vm4040, %v4039
    // Predicated region
    $region18: #{unet_forward.3} parent=1 // pred_check
      %p4042 = pneg %p16
    $region19: #{unet_forward.3} parent=1 // pred_check_branch
      %4044 = sbr.rel (%p4042) target = $region21
    $region20: #{unet_forward.3} parent=1 // pred_region
      %v4045 = vld [vmem:[#allocation2] sm:$0x3]
      %v4046 = vld [vmem:[%s2] sm:$0x1]
      %v4048 = vlaneseq
      %v4049 = vshrl.u32 %v4048, 7
      %v4050 = vsub.s32 0, %v4049
      %v4051 = vrot.slane %v4046, %v4050
      %v4053 = vadd.f32 %v4045, %v4051
      %4054 = vst.msk [vmem:[#allocation3] sm:$0x3] %vm4040, %v4053
    $region21: #{unet_forward.3} parent=1 // pred_fallthru
      _
    // Predicated region
    $region22: #{unet_forward.3} parent=1 // pred_check
      _
    $region23: #{unet_forward.3} parent=1 // pred_check_branch
      %4056 = sbr.rel (0) target = $region25
    $region24: #{unet_forward.3} parent=1 // pred_region
      %s4058 = ssub.s32 32, 32
      %4059 = vsyncadd [#allocation4], %s4058
      %s4061 = sshll.u32 [#allocation3], 4
      %s4062 = int_to_ptr.vmem [resolvable:$true] %s4061
      %4064 = dma.vmem_to_hbm [thread:$0]  %s4062, 32, %s3, [#allocation4]
    $region25: #{unet_forward.3} parent=1 // pred_fallthru
      _
    // Predicated region
    $region26: #{unet_forward.3} parent=1 // pred_check
      _
    $region27: #{unet_forward.3} parent=1 // pred_check_branch
      %4066 = sbr.rel (0) target = $region29
    $region28: #{unet_forward.3} parent=1 // pred_region
      %4067 = dma.done [#allocation4], 32
    $region29: #{unet_forward.3} parent=1 // pred_fallthru
      _
    %4068 = vsyncpa [#allocation4], 1

</llo_original>
